<compile_context>
chip_gen: v7x
topology: tpu7x:2x2x1
jax: 0.10.0
libtpu: 0.0.40
codegen_flags: <defaults>
</compile_context>

<pallas_src>
import jax
import jax.numpy as jnp
from jax.experimental import pallas as pl
from jax.experimental.pallas import tpu as pltpu

TAU = 20
INPUT_SIZE = 1
HIDDEN_SIZE = 10
OUTPUT_SIZE = 1
_LANE = 128


def _mgu_kernel(x_ref, h0_ref, wx_ref, bx_ref, wfh_ref, wch_ref, wl_ref, bl_ref,
                out_ref, fx_scr, cx_scr):
    # ---- hoist loop-invariant operands (one load each) ------------------------
    wfh_t = wfh_ref[...]                      # (hidden, hidden), already transposed
    wch_t = wch_ref[...]                      # (hidden, hidden), already transposed
    wx = wx_ref[...]                          # (2, hidden, 1): stacked [wfx; wcx] columns
    bx = bx_ref[...]                          # (2, hidden, 1): stacked [bf ; bc ] columns
    wfx_col, wcx_col = wx[0], wx[1]           # (hidden, 1)
    bf_col, bc_col = bx[0], bx[1]             # (hidden, 1)

    # ---- prologue: x-only projections, off the serial recurrence chain --------
    # One lane-dense (hidden, block_b) slab per gate per time step.
    for t in range(TAU):
        x_row = x_ref[pl.ds(t, 1), :]         # (1, block_b), lane-dense
        fx_scr[t] = wfx_col * x_row + bf_col  # (hidden, block_b)
        cx_scr[t] = wcx_col * x_row + bc_col

    # ---- recurrence: H carried in vregs as (hidden, block_b) ------------------
    h = h0_ref[...]                           # (hidden, block_b)
    for t in range(TAU):                      # TAU is compile-time constant -> full unroll
        f = jax.nn.sigmoid(
            fx_scr[t]
            + jnp.dot(wfh_t, h, preferred_element_type=jnp.float32))
        h_tilda = jnp.tanh(
            cx_scr[t]
            + jnp.dot(wch_t, f * h, preferred_element_type=jnp.float32))
        h = h + f * (h_tilda - h)             # == (1 - f) * h + f * h_tilda

    # ---- output projection: VPU weighted sum over hidden rows, lane-dense store
    wl = wl_ref[...]                          # (hidden, 1)
    out_ref[...] = (jnp.sum(h * wl, axis=0, keepdims=True)   # (1, block_b)
                    + bl_ref[...])


def _round_up(n, m):
    return -(-n // m) * m


def mgu_forward(x, h0, params):
    """x: (batch, tau) f32, h0: (batch, hidden) f32 -> (batch, 1) f32."""
    wfx, wfh, bf, wcx, wch, bc, wl, bl = params
    batch = x.shape[0]
    assert x.shape[1] == TAU

    # Batch lives on the lane axis: pad to a multiple of 128 and pick blocks.
    batch_p = _round_up(batch, _LANE)
    if batch_p <= 2048:
        block_b = batch_p                                  # one step: best on single-TC v5e/v6e
    elif batch_p <= 4096:
        block_b = _round_up(-(-batch_p // 2), _LANE)       # exactly two steps for v7x's 2 TCs
        batch_p = 2 * block_b
    else:
        block_b = 2048                                     # cap per-block VMEM footprint
        batch_p = _round_up(batch_p, block_b)
    grid = (batch_p // block_b,)

    # Glue: time-major, transposed (lane-dense) operands.
    x2 = x.T.astype(jnp.float32)                           # (tau, batch)
    h0t = h0.T.astype(jnp.float32)                         # (hidden, batch)
    if batch_p != batch:
        pad = batch_p - batch
        x2 = jnp.pad(x2, ((0, 0), (0, pad)))
        h0t = jnp.pad(h0t, ((0, 0), (0, pad)))

    # Stack the x-column weights/biases into single (2, hidden, 1) operands and
    # pre-transpose the hidden-block weights so the kernel does W^T @ H^T.
    wx = jnp.stack([wfx.reshape(HIDDEN_SIZE, 1), wcx.reshape(HIDDEN_SIZE, 1)])
    bx = jnp.stack([bf.reshape(HIDDEN_SIZE, 1), bc.reshape(HIDDEN_SIZE, 1)])
    wfh_t = wfh.T
    wch_t = wch.T
    wl_col = wl.reshape(HIDDEN_SIZE, OUTPUT_SIZE)
    bl2 = bl.reshape(1, OUTPUT_SIZE)

    def full_spec(shape):
        nd = len(shape)
        return pl.BlockSpec(shape, lambda i, _nd=nd: (0,) * _nd)

    out_t = pl.pallas_call(
        _mgu_kernel,
        out_shape=jax.ShapeDtypeStruct((OUTPUT_SIZE, batch_p), jnp.float32),
        grid=grid,
        in_specs=[
            pl.BlockSpec((TAU, block_b), lambda i: (0, i)),           # x, time-major
            pl.BlockSpec((HIDDEN_SIZE, block_b), lambda i: (0, i)),   # h0^T
            full_spec((2, HIDDEN_SIZE, 1)),                           # wx = [wfx; wcx]
            full_spec((2, HIDDEN_SIZE, 1)),                           # bx = [bf ; bc ]
            full_spec((HIDDEN_SIZE, HIDDEN_SIZE)),                    # wfh^T
            full_spec((HIDDEN_SIZE, HIDDEN_SIZE)),                    # wch^T
            full_spec((HIDDEN_SIZE, OUTPUT_SIZE)),                    # wl
            full_spec((1, OUTPUT_SIZE)),                              # bl
        ],
        out_specs=pl.BlockSpec((OUTPUT_SIZE, block_b), lambda i: (0, i)),
        scratch_shapes=[
            pltpu.VMEM((TAU, HIDDEN_SIZE, block_b), jnp.float32),     # x*wfx + bf per step
            pltpu.VMEM((TAU, HIDDEN_SIZE, block_b), jnp.float32),     # x*wcx + bc per step
        ],
        compiler_params=pltpu.CompilerParams(
            dimension_semantics=("parallel",)),
    )(x2, h0t, wx, bx, wfh_t, wch_t, wl_col, bl2)

    return out_t[:, :batch].T                                          # (batch, 1)


def mgu_reference(x, h0, params):
    """Pure-JAX reference mirroring the PyTorch loop."""
    wfx, wfh, bf, wcx, wch, bc, wl, bl = params
    h = h0
    xT = x.T  # (tau, batch)
    for t in range(TAU):
        xt = xT[t][:, None]                                   # (batch, 1)
        f = jax.nn.sigmoid(xt * wfx + h @ wfh + bf)
        h_tilda = jnp.tanh(xt * wcx + (f * h) @ wch + bc)
        h = (1.0 - f) * h + f * h_tilda
    return h @ wl + bl


def init_params(key):
    """Deterministic parameter init (shapes match the torch.nn.Linear layers).

    torch Linear weight is (out, in); we pre-split into the x-column and the
    hidden block and store them transposed so both kernel and reference do
    plain matmuls.
    """
    kf, kfb, kc, kcb, kl, klb = jax.random.split(key, 6)
    in_f = INPUT_SIZE + HIDDEN_SIZE
    bound_g = 1.0 / jnp.sqrt(in_f)
    bound_l = 1.0 / jnp.sqrt(HIDDEN_SIZE)

    wf = jax.random.uniform(kf, (HIDDEN_SIZE, in_f), jnp.float32, -bound_g, bound_g)
    bf = jax.random.uniform(kfb, (HIDDEN_SIZE,), jnp.float32, -bound_g, bound_g)
    wc = jax.random.uniform(kc, (HIDDEN_SIZE, in_f), jnp.float32, -bound_g, bound_g)
    bc = jax.random.uniform(kcb, (HIDDEN_SIZE,), jnp.float32, -bound_g, bound_g)
    wl = jax.random.uniform(kl, (OUTPUT_SIZE, HIDDEN_SIZE), jnp.float32, -bound_l, bound_l)
    bl = jax.random.uniform(klb, (OUTPUT_SIZE,), jnp.float32, -bound_l, bound_l)

    wfx = wf[:, :INPUT_SIZE].T                 # (1, hidden)
    wfh = wf[:, INPUT_SIZE:].T                 # (hidden, hidden), ref does h @ wfh
    wcx = wc[:, :INPUT_SIZE].T                 # (1, hidden)
    wch = wc[:, INPUT_SIZE:].T                 # (hidden, hidden)
    return (wfx, wfh, bf.reshape(1, HIDDEN_SIZE),
            wcx, wch, bc.reshape(1, HIDDEN_SIZE),
            wl.T, bl.reshape(1, OUTPUT_SIZE))


if __name__ == "__main__":
    key = jax.random.PRNGKey(0)
    k_x, k_h, k_p, k_x2, k_h2 = jax.random.split(key, 5)

    params = init_params(k_p)

    # Small case: one grid step, lane padding 8 -> 128.
    batch = 8
    # synthetic stand-in for the hospitalization series windows (x / 500 scale)
    x = jax.random.uniform(k_x, (batch, TAU), jnp.float32, 0.0, 1.0)
    # torch.randn(len(x), hidden) inside forward -> deterministic equivalent here
    h0 = jax.random.normal(k_h, (batch, HIDDEN_SIZE), jnp.float32)

    out = jax.block_until_ready(mgu_forward(x, h0, params))
    ref = mgu_reference(x, h0, params)
    assert out.shape == (batch, OUTPUT_SIZE)
    assert jnp.allclose(out, ref, atol=1e-5, rtol=1e-5), (out, ref)

    # Larger batch: exercises lane padding (200 -> 256) in a single block.
    batch2 = 200
    x2 = jax.random.uniform(k_x2, (batch2, TAU), jnp.float32, 0.0, 1.0)
    h02 = jax.random.normal(k_h2, (batch2, HIDDEN_SIZE), jnp.float32)
    out2 = jax.block_until_ready(mgu_forward(x2, h02, params))
    ref2 = mgu_reference(x2, h02, params)
    assert out2.shape == (batch2, OUTPUT_SIZE)
    assert jnp.allclose(out2, ref2, atol=1e-5, rtol=1e-5)

    print("KERNEL_OK")
</pallas_src>

<mosaic_0001>
module attributes {stable_mosaic.version = 11 : i64} {
  func.func @_mgu_kernel(%arg0: i32, %arg1: memref<20x128xf32, #tpu.memory_space<vmem>>, %arg2: memref<10x128xf32, #tpu.memory_space<vmem>>, %arg3: memref<2x10x1xf32, #tpu.memory_space<vmem>>, %arg4: memref<2x10x1xf32, #tpu.memory_space<vmem>>, %arg5: memref<10x10xf32, #tpu.memory_space<vmem>>, %arg6: memref<10x10xf32, #tpu.memory_space<vmem>>, %arg7: memref<10x1xf32, #tpu.memory_space<vmem>>, %arg8: memref<1x1xf32, #tpu.memory_space<vmem>>, %arg9: memref<1x128xf32, #tpu.memory_space<vmem>>, %arg10: memref<20x10x128xf32, #tpu.memory_space<vmem>>, %arg11: memref<20x10x128xf32, #tpu.memory_space<vmem>>) attributes {dimension_semantics = [#tpu.dimension_semantics<parallel>], iteration_bounds = array<i64: 1>, scalar_prefetch = 0 : i64, scratch_operands = 2 : i64, tpu.core_type = #tpu.core_type<tc>, window_params = [{transform_indices = @transform_0, window_bounds = array<i64: 20, 128>}, {transform_indices = @transform_1, window_bounds = array<i64: 10, 128>}, {pipeline_mode = #tpu.pipeline_mode<synchronous>, transform_indices = @transform_2, window_bounds = array<i64: 2, 10, 1>}, {pipeline_mode = #tpu.pipeline_mode<synchronous>, transform_indices = @transform_3, window_bounds = array<i64: 2, 10, 1>}, {pipeline_mode = #tpu.pipeline_mode<synchronous>, transform_indices = @transform_4, window_bounds = array<i64: 10, 10>}, {pipeline_mode = #tpu.pipeline_mode<synchronous>, transform_indices = @transform_5, window_bounds = array<i64: 10, 10>}, {pipeline_mode = #tpu.pipeline_mode<synchronous>, transform_indices = @transform_6, window_bounds = array<i64: 10, 1>}, {pipeline_mode = #tpu.pipeline_mode<synchronous>, transform_indices = @transform_7, window_bounds = array<i64: 1, 1>}, {transform_indices = @transform_8, window_bounds = array<i64: 1, 128>}]} {
    %c0 = arith.constant 0 : index
    %c0_0 = arith.constant 0 : index
    %0 = vector.load %arg5[%c0, %c0_0] : memref<10x10xf32, #tpu.memory_space<vmem>>, vector<10x10xf32>
    %c0_1 = arith.constant 0 : index
    %c0_2 = arith.constant 0 : index
    %1 = vector.load %arg6[%c0_1, %c0_2] : memref<10x10xf32, #tpu.memory_space<vmem>>, vector<10x10xf32>
    %c0_3 = arith.constant 0 : index
    %c0_4 = arith.constant 0 : index
    %c0_5 = arith.constant 0 : index
    %2 = vector.load %arg3[%c0_3, %c0_4, %c0_5] : memref<2x10x1xf32, #tpu.memory_space<vmem>>, vector<2x10x1xf32>
    %c0_6 = arith.constant 0 : index
    %c0_7 = arith.constant 0 : index
    %c0_8 = arith.constant 0 : index
    %3 = vector.load %arg4[%c0_6, %c0_7, %c0_8] : memref<2x10x1xf32, #tpu.memory_space<vmem>>, vector<2x10x1xf32>
    %4 = vector.extract_strided_slice %2 {offsets = [0, 0, 0], sizes = [1, 10, 1], strides = [1, 1, 1]} : vector<2x10x1xf32> to vector<1x10x1xf32>
    %5 = vector.shape_cast %4 : vector<1x10x1xf32> to vector<10x1xf32>
    %6 = vector.extract_strided_slice %2 {offsets = [1, 0, 0], sizes = [1, 10, 1], strides = [1, 1, 1]} : vector<2x10x1xf32> to vector<1x10x1xf32>
    %7 = vector.shape_cast %6 : vector<1x10x1xf32> to vector<10x1xf32>
    %8 = vector.extract_strided_slice %3 {offsets = [0, 0, 0], sizes = [1, 10, 1], strides = [1, 1, 1]} : vector<2x10x1xf32> to vector<1x10x1xf32>
    %9 = vector.shape_cast %8 : vector<1x10x1xf32> to vector<10x1xf32>
    %10 = vector.extract_strided_slice %3 {offsets = [1, 0, 0], sizes = [1, 10, 1], strides = [1, 1, 1]} : vector<2x10x1xf32> to vector<1x10x1xf32>
    %11 = vector.shape_cast %10 : vector<1x10x1xf32> to vector<10x1xf32>
    %c0_9 = arith.constant 0 : index
    %c0_10 = arith.constant 0 : index
    %12 = vector.load %arg1[%c0_9, %c0_10] : memref<20x128xf32, #tpu.memory_space<vmem>>, vector<1x128xf32>
    %13 = vector.broadcast %5 : vector<10x1xf32> to vector<10x128xf32>
    %14 = vector.broadcast %12 : vector<1x128xf32> to vector<10x128xf32>
    %15 = arith.mulf %13, %14 : vector<10x128xf32>
    %16 = vector.broadcast %9 : vector<10x1xf32> to vector<10x128xf32>
    %17 = arith.addf %15, %16 : vector<10x128xf32>
    %c0_11 = arith.constant 0 : index
    %c0_12 = arith.constant 0 : index
    %c0_13 = arith.constant 0 : index
    %18 = vector.load %arg10[%c0_11, %c0_12, %c0_13] : memref<20x10x128xf32, #tpu.memory_space<vmem>>, vector<1x10x128xf32>
    %19 = vector.shape_cast %18 : vector<1x10x128xf32> to vector<10x128xf32>
    %20 = vector.shape_cast %17 : vector<10x128xf32> to vector<1x10x128xf32>
    tpu.vector_store %arg10[%c0_11, %c0_12, %c0_13], %20 {strides = array<i32>} : memref<20x10x128xf32, #tpu.memory_space<vmem>>, vector<1x10x128xf32>,
    %21 = vector.broadcast %7 : vector<10x1xf32> to vector<10x128xf32>
    %22 = vector.broadcast %12 : vector<1x128xf32> to vector<10x128xf32>
    %23 = arith.mulf %21, %22 : vector<10x128xf32>
    %24 = vector.broadcast %11 : vector<10x1xf32> to vector<10x128xf32>
    %25 = arith.addf %23, %24 : vector<10x128xf32>
    %c0_14 = arith.constant 0 : index
    %c0_15 = arith.constant 0 : index
    %c0_16 = arith.constant 0 : index
    %26 = vector.load %arg11[%c0_14, %c0_15, %c0_16] : memref<20x10x128xf32, #tpu.memory_space<vmem>>, vector<1x10x128xf32>
    %27 = vector.shape_cast %26 : vector<1x10x128xf32> to vector<10x128xf32>
    %28 = vector.shape_cast %25 : vector<10x128xf32> to vector<1x10x128xf32>
    tpu.vector_store %arg11[%c0_14, %c0_15, %c0_16], %28 {strides = array<i32>} : memref<20x10x128xf32, #tpu.memory_space<vmem>>, vector<1x10x128xf32>,
    %c1 = arith.constant 1 : index
    %c0_17 = arith.constant 0 : index
    %29 = vector.load %arg1[%c1, %c0_17] : memref<20x128xf32, #tpu.memory_space<vmem>>, vector<1x128xf32>
    %30 = vector.broadcast %5 : vector<10x1xf32> to vector<10x128xf32>
    %31 = vector.broadcast %29 : vector<1x128xf32> to vector<10x128xf32>
    %32 = arith.mulf %30, %31 : vector<10x128xf32>
    %33 = vector.broadcast %9 : vector<10x1xf32> to vector<10x128xf32>
    %34 = arith.addf %32, %33 : vector<10x128xf32>
    %c1_18 = arith.constant 1 : index
    %c0_19 = arith.constant 0 : index
    %c0_20 = arith.constant 0 : index
    %35 = vector.load %arg10[%c1_18, %c0_19, %c0_20] : memref<20x10x128xf32, #tpu.memory_space<vmem>>, vector<1x10x128xf32>
    %36 = vector.shape_cast %35 : vector<1x10x128xf32> to vector<10x128xf32>
    %37 = vector.shape_cast %34 : vector<10x128xf32> to vector<1x10x128xf32>
    tpu.vector_store %arg10[%c1_18, %c0_19, %c0_20], %37 {strides = array<i32>} : memref<20x10x128xf32, #tpu.memory_space<vmem>>, vector<1x10x128xf32>,
    %38 = vector.broadcast %7 : vector<10x1xf32> to vector<10x128xf32>
    %39 = vector.broadcast %29 : vector<1x128xf32> to vector<10x128xf32>
    %40 = arith.mulf %38, %39 : vector<10x128xf32>
    %41 = vector.broadcast %11 : vector<10x1xf32> to vector<10x128xf32>
    %42 = arith.addf %40, %41 : vector<10x128xf32>
    %c1_21 = arith.constant 1 : index
    %c0_22 = arith.constant 0 : index
    %c0_23 = arith.constant 0 : index
    %43 = vector.load %arg11[%c1_21, %c0_22, %c0_23] : memref<20x10x128xf32, #tpu.memory_space<vmem>>, vector<1x10x128xf32>
    %44 = vector.shape_cast %43 : vector<1x10x128xf32> to vector<10x128xf32>
    %45 = vector.shape_cast %42 : vector<10x128xf32> to vector<1x10x128xf32>
    tpu.vector_store %arg11[%c1_21, %c0_22, %c0_23], %45 {strides = array<i32>} : memref<20x10x128xf32, #tpu.memory_space<vmem>>, vector<1x10x128xf32>,
    %c2 = arith.constant 2 : index
    %c0_24 = arith.constant 0 : index
    %46 = vector.load %arg1[%c2, %c0_24] : memref<20x128xf32, #tpu.memory_space<vmem>>, vector<1x128xf32>
    %47 = vector.broadcast %5 : vector<10x1xf32> to vector<10x128xf32>
    %48 = vector.broadcast %46 : vector<1x128xf32> to vector<10x128xf32>
    %49 = arith.mulf %47, %48 : vector<10x128xf32>
    %50 = vector.broadcast %9 : vector<10x1xf32> to vector<10x128xf32>
    %51 = arith.addf %49, %50 : vector<10x128xf32>
    %c2_25 = arith.constant 2 : index
    %c0_26 = arith.constant 0 : index
    %c0_27 = arith.constant 0 : index
    %52 = vector.load %arg10[%c2_25, %c0_26, %c0_27] : memref<20x10x128xf32, #tpu.memory_space<vmem>>, vector<1x10x128xf32>
    %53 = vector.shape_cast %52 : vector<1x10x128xf32> to vector<10x128xf32>
    %54 = vector.shape_cast %51 : vector<10x128xf32> to vector<1x10x128xf32>
    tpu.vector_store %arg10[%c2_25, %c0_26, %c0_27], %54 {strides = array<i32>} : memref<20x10x128xf32, #tpu.memory_space<vmem>>, vector<1x10x128xf32>,
    %55 = vector.broadcast %7 : vector<10x1xf32> to vector<10x128xf32>
    %56 = vector.broadcast %46 : vector<1x128xf32> to vector<10x128xf32>
    %57 = arith.mulf %55, %56 : vector<10x128xf32>
    %58 = vector.broadcast %11 : vector<10x1xf32> to vector<10x128xf32>
    %59 = arith.addf %57, %58 : vector<10x128xf32>
    %c2_28 = arith.constant 2 : index
    %c0_29 = arith.constant 0 : index
    %c0_30 = arith.constant 0 : index
    %60 = vector.load %arg11[%c2_28, %c0_29, %c0_30] : memref<20x10x128xf32, #tpu.memory_space<vmem>>, vector<1x10x128xf32>
    %61 = vector.shape_cast %60 : vector<1x10x128xf32> to vector<10x128xf32>
    %62 = vector.shape_cast %59 : vector<10x128xf32> to vector<1x10x128xf32>
    tpu.vector_store %arg11[%c2_28, %c0_29, %c0_30], %62 {strides = array<i32>} : memref<20x10x128xf32, #tpu.memory_space<vmem>>, vector<1x10x128xf32>,
    %c3 = arith.constant 3 : index
    %c0_31 = arith.constant 0 : index
    %63 = vector.load %arg1[%c3, %c0_31] : memref<20x128xf32, #tpu.memory_space<vmem>>, vector<1x128xf32>
    %64 = vector.broadcast %5 : vector<10x1xf32> to vector<10x128xf32>
    %65 = vector.broadcast %63 : vector<1x128xf32> to vector<10x128xf32>
    %66 = arith.mulf %64, %65 : vector<10x128xf32>
    %67 = vector.broadcast %9 : vector<10x1xf32> to vector<10x128xf32>
    %68 = arith.addf %66, %67 : vector<10x128xf32>
    %c3_32 = arith.constant 3 : index
    %c0_33 = arith.constant 0 : index
    %c0_34 = arith.constant 0 : index
    %69 = vector.load %arg10[%c3_32, %c0_33, %c0_34] : memref<20x10x128xf32, #tpu.memory_space<vmem>>, vector<1x10x128xf32>
    %70 = vector.shape_cast %69 : vector<1x10x128xf32> to vector<10x128xf32>
    %71 = vector.shape_cast %68 : vector<10x128xf32> to vector<1x10x128xf32>
    tpu.vector_store %arg10[%c3_32, %c0_33, %c0_34], %71 {strides = array<i32>} : memref<20x10x128xf32, #tpu.memory_space<vmem>>, vector<1x10x128xf32>,
    %72 = vector.broadcast %7 : vector<10x1xf32> to vector<10x128xf32>
    %73 = vector.broadcast %63 : vector<1x128xf32> to vector<10x128xf32>
    %74 = arith.mulf %72, %73 : vector<10x128xf32>
    %75 = vector.broadcast %11 : vector<10x1xf32> to vector<10x128xf32>
    %76 = arith.addf %74, %75 : vector<10x128xf32>
    %c3_35 = arith.constant 3 : index
    %c0_36 = arith.constant 0 : index
    %c0_37 = arith.constant 0 : index
    %77 = vector.load %arg11[%c3_35, %c0_36, %c0_37] : memref<20x10x128xf32, #tpu.memory_space<vmem>>, vector<1x10x128xf32>
    %78 = vector.shape_cast %77 : vector<1x10x128xf32> to vector<10x128xf32>
    %79 = vector.shape_cast %76 : vector<10x128xf32> to vector<1x10x128xf32>
    tpu.vector_store %arg11[%c3_35, %c0_36, %c0_37], %79 {strides = array<i32>} : memref<20x10x128xf32, #tpu.memory_space<vmem>>, vector<1x10x128xf32>,
    %c4 = arith.constant 4 : index
    %c0_38 = arith.constant 0 : index
    %80 = vector.load %arg1[%c4, %c0_38] : memref<20x128xf32, #tpu.memory_space<vmem>>, vector<1x128xf32>
    %81 = vector.broadcast %5 : vector<10x1xf32> to vector<10x128xf32>
    %82 = vector.broadcast %80 : vector<1x128xf32> to vector<10x128xf32>
    %83 = arith.mulf %81, %82 : vector<10x128xf32>
    %84 = vector.broadcast %9 : vector<10x1xf32> to vector<10x128xf32>
    %85 = arith.addf %83, %84 : vector<10x128xf32>
    %c4_39 = arith.constant 4 : index
    %c0_40 = arith.constant 0 : index
    %c0_41 = arith.constant 0 : index
    %86 = vector.load %arg10[%c4_39, %c0_40, %c0_41] : memref<20x10x128xf32, #tpu.memory_space<vmem>>, vector<1x10x128xf32>
    %87 = vector.shape_cast %86 : vector<1x10x128xf32> to vector<10x128xf32>
    %88 = vector.shape_cast %85 : vector<10x128xf32> to vector<1x10x128xf32>
    tpu.vector_store %arg10[%c4_39, %c0_40, %c0_41], %88 {strides = array<i32>} : memref<20x10x128xf32, #tpu.memory_space<vmem>>, vector<1x10x128xf32>,
    %89 = vector.broadcast %7 : vector<10x1xf32> to vector<10x128xf32>
    %90 = vector.broadcast %80 : vector<1x128xf32> to vector<10x128xf32>
    %91 = arith.mulf %89, %90 : vector<10x128xf32>
    %92 = vector.broadcast %11 : vector<10x1xf32> to vector<10x128xf32>
    %93 = arith.addf %91, %92 : vector<10x128xf32>
    %c4_42 = arith.constant 4 : index
    %c0_43 = arith.constant 0 : index
    %c0_44 = arith.constant 0 : index
    %94 = vector.load %arg11[%c4_42, %c0_43, %c0_44] : memref<20x10x128xf32, #tpu.memory_space<vmem>>, vector<1x10x128xf32>
    %95 = vector.shape_cast %94 : vector<1x10x128xf32> to vector<10x128xf32>
    %96 = vector.shape_cast %93 : vector<10x128xf32> to vector<1x10x128xf32>
    tpu.vector_store %arg11[%c4_42, %c0_43, %c0_44], %96 {strides = array<i32>} : memref<20x10x128xf32, #tpu.memory_space<vmem>>, vector<1x10x128xf32>,
    %c5 = arith.constant 5 : index
    %c0_45 = arith.constant 0 : index
    %97 = vector.load %arg1[%c5, %c0_45] : memref<20x128xf32, #tpu.memory_space<vmem>>, vector<1x128xf32>
    %98 = vector.broadcast %5 : vector<10x1xf32> to vector<10x128xf32>
    %99 = vector.broadcast %97 : vector<1x128xf32> to vector<10x128xf32>
    %100 = arith.mulf %98, %99 : vector<10x128xf32>
    %101 = vector.broadcast %9 : vector<10x1xf32> to vector<10x128xf32>
    %102 = arith.addf %100, %101 : vector<10x128xf32>
    %c5_46 = arith.constant 5 : index
    %c0_47 = arith.constant 0 : index
    %c0_48 = arith.constant 0 : index
    %103 = vector.load %arg10[%c5_46, %c0_47, %c0_48] : memref<20x10x128xf32, #tpu.memory_space<vmem>>, vector<1x10x128xf32>
    %104 = vector.shape_cast %103 : vector<1x10x128xf32> to vector<10x128xf32>
    %105 = vector.shape_cast %102 : vector<10x128xf32> to vector<1x10x128xf32>
    tpu.vector_store %arg10[%c5_46, %c0_47, %c0_48], %105 {strides = array<i32>} : memref<20x10x128xf32, #tpu.memory_space<vmem>>, vector<1x10x128xf32>,
    %106 = vector.broadcast %7 : vector<10x1xf32> to vector<10x128xf32>
    %107 = vector.broadcast %97 : vector<1x128xf32> to vector<10x128xf32>
    %108 = arith.mulf %106, %107 : vector<10x128xf32>
    %109 = vector.broadcast %11 : vector<10x1xf32> to vector<10x128xf32>
    %110 = arith.addf %108, %109 : vector<10x128xf32>
    %c5_49 = arith.constant 5 : index
    %c0_50 = arith.constant 0 : index
    %c0_51 = arith.constant 0 : index
    %111 = vector.load %arg11[%c5_49, %c0_50, %c0_51] : memref<20x10x128xf32, #tpu.memory_space<vmem>>, vector<1x10x128xf32>
    %112 = vector.shape_cast %111 : vector<1x10x128xf32> to vector<10x128xf32>
    %113 = vector.shape_cast %110 : vector<10x128xf32> to vector<1x10x128xf32>
    tpu.vector_store %arg11[%c5_49, %c0_50, %c0_51], %113 {strides = array<i32>} : memref<20x10x128xf32, #tpu.memory_space<vmem>>, vector<1x10x128xf32>,
    %c6 = arith.constant 6 : index
    %c0_52 = arith.constant 0 : index
    %114 = vector.load %arg1[%c6, %c0_52] : memref<20x128xf32, #tpu.memory_space<vmem>>, vector<1x128xf32>
    %115 = vector.broadcast %5 : vector<10x1xf32> to vector<10x128xf32>
    %116 = vector.broadcast %114 : vector<1x128xf32> to vector<10x128xf32>
    %117 = arith.mulf %115, %116 : vector<10x128xf32>
    %118 = vector.broadcast %9 : vector<10x1xf32> to vector<10x128xf32>
    %119 = arith.addf %117, %118 : vector<10x128xf32>
    %c6_53 = arith.constant 6 : index
    %c0_54 = arith.constant 0 : index
    %c0_55 = arith.constant 0 : index
    %120 = vector.load %arg10[%c6_53, %c0_54, %c0_55] : memref<20x10x128xf32, #tpu.memory_space<vmem>>, vector<1x10x128xf32>
    %121 = vector.shape_cast %120 : vector<1x10x128xf32> to vector<10x128xf32>
    %122 = vector.shape_cast %119 : vector<10x128xf32> to vector<1x10x128xf32>
    tpu.vector_store %arg10[%c6_53, %c0_54, %c0_55], %122 {strides = array<i32>} : memref<20x10x128xf32, #tpu.memory_space<vmem>>, vector<1x10x128xf32>,
    %123 = vector.broadcast %7 : vector<10x1xf32> to vector<10x128xf32>
    %124 = vector.broadcast %114 : vector<1x128xf32> to vector<10x128xf32>
    %125 = arith.mulf %123, %124 : vector<10x128xf32>
    %126 = vector.broadcast %11 : vector<10x1xf32> to vector<10x128xf32>
    %127 = arith.addf %125, %126 : vector<10x128xf32>
    %c6_56 = arith.constant 6 : index
    %c0_57 = arith.constant 0 : index
    %c0_58 = arith.constant 0 : index
    %128 = vector.load %arg11[%c6_56, %c0_57, %c0_58] : memref<20x10x128xf32, #tpu.memory_space<vmem>>, vector<1x10x128xf32>
    %129 = vector.shape_cast %128 : vector<1x10x128xf32> to vector<10x128xf32>
    %130 = vector.shape_cast %127 : vector<10x128xf32> to vector<1x10x128xf32>
    tpu.vector_store %arg11[%c6_56, %c0_57, %c0_58], %130 {strides = array<i32>} : memref<20x10x128xf32, #tpu.memory_space<vmem>>, vector<1x10x128xf32>,
    %c7 = arith.constant 7 : index
    %c0_59 = arith.constant 0 : index
    %131 = vector.load %arg1[%c7, %c0_59] : memref<20x128xf32, #tpu.memory_space<vmem>>, vector<1x128xf32>
    %132 = vector.broadcast %5 : vector<10x1xf32> to vector<10x128xf32>
    %133 = vector.broadcast %131 : vector<1x128xf32> to vector<10x128xf32>
    %134 = arith.mulf %132, %133 : vector<10x128xf32>
    %135 = vector.broadcast %9 : vector<10x1xf32> to vector<10x128xf32>
    %136 = arith.addf %134, %135 : vector<10x128xf32>
    %c7_60 = arith.constant 7 : index
    %c0_61 = arith.constant 0 : index
    %c0_62 = arith.constant 0 : index
    %137 = vector.load %arg10[%c7_60, %c0_61, %c0_62] : memref<20x10x128xf32, #tpu.memory_space<vmem>>, vector<1x10x128xf32>
    %138 = vector.shape_cast %137 : vector<1x10x128xf32> to vector<10x128xf32>
    %139 = vector.shape_cast %136 : vector<10x128xf32> to vector<1x10x128xf32>
    tpu.vector_store %arg10[%c7_60, %c0_61, %c0_62], %139 {strides = array<i32>} : memref<20x10x128xf32, #tpu.memory_space<vmem>>, vector<1x10x128xf32>,
    %140 = vector.broadcast %7 : vector<10x1xf32> to vector<10x128xf32>
    %141 = vector.broadcast %131 : vector<1x128xf32> to vector<10x128xf32>
    %142 = arith.mulf %140, %141 : vector<10x128xf32>
    %143 = vector.broadcast %11 : vector<10x1xf32> to vector<10x128xf32>
    %144 = arith.addf %142, %143 : vector<10x128xf32>
    %c7_63 = arith.constant 7 : index
    %c0_64 = arith.constant 0 : index
    %c0_65 = arith.constant 0 : index
    %145 = vector.load %arg11[%c7_63, %c0_64, %c0_65] : memref<20x10x128xf32, #tpu.memory_space<vmem>>, vector<1x10x128xf32>
    %146 = vector.shape_cast %145 : vector<1x10x128xf32> to vector<10x128xf32>
    %147 = vector.shape_cast %144 : vector<10x128xf32> to vector<1x10x128xf32>
    tpu.vector_store %arg11[%c7_63, %c0_64, %c0_65], %147 {strides = array<i32>} : memref<20x10x128xf32, #tpu.memory_space<vmem>>, vector<1x10x128xf32>,
    %c8 = arith.constant 8 : index
    %c0_66 = arith.constant 0 : index
    %148 = vector.load %arg1[%c8, %c0_66] : memref<20x128xf32, #tpu.memory_space<vmem>>, vector<1x128xf32>
    %149 = vector.broadcast %5 : vector<10x1xf32> to vector<10x128xf32>
    %150 = vector.broadcast %148 : vector<1x128xf32> to vector<10x128xf32>
    %151 = arith.mulf %149, %150 : vector<10x128xf32>
    %152 = vector.broadcast %9 : vector<10x1xf32> to vector<10x128xf32>
    %153 = arith.addf %151, %152 : vector<10x128xf32>
    %c8_67 = arith.constant 8 : index
    %c0_68 = arith.constant 0 : index
    %c0_69 = arith.constant 0 : index
    %154 = vector.load %arg10[%c8_67, %c0_68, %c0_69] : memref<20x10x128xf32, #tpu.memory_space<vmem>>, vector<1x10x128xf32>
    %155 = vector.shape_cast %154 : vector<1x10x128xf32> to vector<10x128xf32>
    %156 = vector.shape_cast %153 : vector<10x128xf32> to vector<1x10x128xf32>
    tpu.vector_store %arg10[%c8_67, %c0_68, %c0_69], %156 {strides = array<i32>} : memref<20x10x128xf32, #tpu.memory_space<vmem>>, vector<1x10x128xf32>,
    %157 = vector.broadcast %7 : vector<10x1xf32> to vector<10x128xf32>
    %158 = vector.broadcast %148 : vector<1x128xf32> to vector<10x128xf32>
    %159 = arith.mulf %157, %158 : vector<10x128xf32>
    %160 = vector.broadcast %11 : vector<10x1xf32> to vector<10x128xf32>
    %161 = arith.addf %159, %160 : vector<10x128xf32>
    %c8_70 = arith.constant 8 : index
    %c0_71 = arith.constant 0 : index
    %c0_72 = arith.constant 0 : index
    %162 = vector.load %arg11[%c8_70, %c0_71, %c0_72] : memref<20x10x128xf32, #tpu.memory_space<vmem>>, vector<1x10x128xf32>
    %163 = vector.shape_cast %162 : vector<1x10x128xf32> to vector<10x128xf32>
    %164 = vector.shape_cast %161 : vector<10x128xf32> to vector<1x10x128xf32>
    tpu.vector_store %arg11[%c8_70, %c0_71, %c0_72], %164 {strides = array<i32>} : memref<20x10x128xf32, #tpu.memory_space<vmem>>, vector<1x10x128xf32>,
    %c9 = arith.constant 9 : index
    %c0_73 = arith.constant 0 : index
    %165 = vector.load %arg1[%c9, %c0_73] : memref<20x128xf32, #tpu.memory_space<vmem>>, vector<1x128xf32>
    %166 = vector.broadcast %5 : vector<10x1xf32> to vector<10x128xf32>
    %167 = vector.broadcast %165 : vector<1x128xf32> to vector<10x128xf32>
    %168 = arith.mulf %166, %167 : vector<10x128xf32>
    %169 = vector.broadcast %9 : vector<10x1xf32> to vector<10x128xf32>
    %170 = arith.addf %168, %169 : vector<10x128xf32>
    %c9_74 = arith.constant 9 : index
    %c0_75 = arith.constant 0 : index
    %c0_76 = arith.constant 0 : index
    %171 = vector.load %arg10[%c9_74, %c0_75, %c0_76] : memref<20x10x128xf32, #tpu.memory_space<vmem>>, vector<1x10x128xf32>
    %172 = vector.shape_cast %171 : vector<1x10x128xf32> to vector<10x128xf32>
    %173 = vector.shape_cast %170 : vector<10x128xf32> to vector<1x10x128xf32>
    tpu.vector_store %arg10[%c9_74, %c0_75, %c0_76], %173 {strides = array<i32>} : memref<20x10x128xf32, #tpu.memory_space<vmem>>, vector<1x10x128xf32>,
    %174 = vector.broadcast %7 : vector<10x1xf32> to vector<10x128xf32>
    %175 = vector.broadcast %165 : vector<1x128xf32> to vector<10x128xf32>
    %176 = arith.mulf %174, %175 : vector<10x128xf32>
    %177 = vector.broadcast %11 : vector<10x1xf32> to vector<10x128xf32>
    %178 = arith.addf %176, %177 : vector<10x128xf32>
    %c9_77 = arith.constant 9 : index
    %c0_78 = arith.constant 0 : index
    %c0_79 = arith.constant 0 : index
    %179 = vector.load %arg11[%c9_77, %c0_78, %c0_79] : memref<20x10x128xf32, #tpu.memory_space<vmem>>, vector<1x10x128xf32>
    %180 = vector.shape_cast %179 : vector<1x10x128xf32> to vector<10x128xf32>
    %181 = vector.shape_cast %178 : vector<10x128xf32> to vector<1x10x128xf32>
    tpu.vector_store %arg11[%c9_77, %c0_78, %c0_79], %181 {strides = array<i32>} : memref<20x10x128xf32, #tpu.memory_space<vmem>>, vector<1x10x128xf32>,
    %c10 = arith.constant 10 : index
    %c0_80 = arith.constant 0 : index
    %182 = vector.load %arg1[%c10, %c0_80] : memref<20x128xf32, #tpu.memory_space<vmem>>, vector<1x128xf32>
    %183 = vector.broadcast %5 : vector<10x1xf32> to vector<10x128xf32>
    %184 = vector.broadcast %182 : vector<1x128xf32> to vector<10x128xf32>
    %185 = arith.mulf %183, %184 : vector<10x128xf32>
    %186 = vector.broadcast %9 : vector<10x1xf32> to vector<10x128xf32>
    %187 = arith.addf %185, %186 : vector<10x128xf32>
    %c10_81 = arith.constant 10 : index
    %c0_82 = arith.constant 0 : index
    %c0_83 = arith.constant 0 : index
    %188 = vector.load %arg10[%c10_81, %c0_82, %c0_83] : memref<20x10x128xf32, #tpu.memory_space<vmem>>, vector<1x10x128xf32>
    %189 = vector.shape_cast %188 : vector<1x10x128xf32> to vector<10x128xf32>
    %190 = vector.shape_cast %187 : vector<10x128xf32> to vector<1x10x128xf32>
    tpu.vector_store %arg10[%c10_81, %c0_82, %c0_83], %190 {strides = array<i32>} : memref<20x10x128xf32, #tpu.memory_space<vmem>>, vector<1x10x128xf32>,
    %191 = vector.broadcast %7 : vector<10x1xf32> to vector<10x128xf32>
    %192 = vector.broadcast %182 : vector<1x128xf32> to vector<10x128xf32>
    %193 = arith.mulf %191, %192 : vector<10x128xf32>
    %194 = vector.broadcast %11 : vector<10x1xf32> to vector<10x128xf32>
    %195 = arith.addf %193, %194 : vector<10x128xf32>
    %c10_84 = arith.constant 10 : index
    %c0_85 = arith.constant 0 : index
    %c0_86 = arith.constant 0 : index
    %196 = vector.load %arg11[%c10_84, %c0_85, %c0_86] : memref<20x10x128xf32, #tpu.memory_space<vmem>>, vector<1x10x128xf32>
    %197 = vector.shape_cast %196 : vector<1x10x128xf32> to vector<10x128xf32>
    %198 = vector.shape_cast %195 : vector<10x128xf32> to vector<1x10x128xf32>
    tpu.vector_store %arg11[%c10_84, %c0_85, %c0_86], %198 {strides = array<i32>} : memref<20x10x128xf32, #tpu.memory_space<vmem>>, vector<1x10x128xf32>,
    %c11 = arith.constant 11 : index
    %c0_87 = arith.constant 0 : index
    %199 = vector.load %arg1[%c11, %c0_87] : memref<20x128xf32, #tpu.memory_space<vmem>>, vector<1x128xf32>
    %200 = vector.broadcast %5 : vector<10x1xf32> to vector<10x128xf32>
    %201 = vector.broadcast %199 : vector<1x128xf32> to vector<10x128xf32>
    %202 = arith.mulf %200, %201 : vector<10x128xf32>
    %203 = vector.broadcast %9 : vector<10x1xf32> to vector<10x128xf32>
    %204 = arith.addf %202, %203 : vector<10x128xf32>
    %c11_88 = arith.constant 11 : index
    %c0_89 = arith.constant 0 : index
    %c0_90 = arith.constant 0 : index
    %205 = vector.load %arg10[%c11_88, %c0_89, %c0_90] : memref<20x10x128xf32, #tpu.memory_space<vmem>>, vector<1x10x128xf32>
    %206 = vector.shape_cast %205 : vector<1x10x128xf32> to vector<10x128xf32>
    %207 = vector.shape_cast %204 : vector<10x128xf32> to vector<1x10x128xf32>
    tpu.vector_store %arg10[%c11_88, %c0_89, %c0_90], %207 {strides = array<i32>} : memref<20x10x128xf32, #tpu.memory_space<vmem>>, vector<1x10x128xf32>,
    %208 = vector.broadcast %7 : vector<10x1xf32> to vector<10x128xf32>
    %209 = vector.broadcast %199 : vector<1x128xf32> to vector<10x128xf32>
    %210 = arith.mulf %208, %209 : vector<10x128xf32>
    %211 = vector.broadcast %11 : vector<10x1xf32> to vector<10x128xf32>
    %212 = arith.addf %210, %211 : vector<10x128xf32>
    %c11_91 = arith.constant 11 : index
    %c0_92 = arith.constant 0 : index
    %c0_93 = arith.constant 0 : index
    %213 = vector.load %arg11[%c11_91, %c0_92, %c0_93] : memref<20x10x128xf32, #tpu.memory_space<vmem>>, vector<1x10x128xf32>
    %214 = vector.shape_cast %213 : vector<1x10x128xf32> to vector<10x128xf32>
    %215 = vector.shape_cast %212 : vector<10x128xf32> to vector<1x10x128xf32>
    tpu.vector_store %arg11[%c11_91, %c0_92, %c0_93], %215 {strides = array<i32>} : memref<20x10x128xf32, #tpu.memory_space<vmem>>, vector<1x10x128xf32>,
    %c12 = arith.constant 12 : index
    %c0_94 = arith.constant 0 : index
    %216 = vector.load %arg1[%c12, %c0_94] : memref<20x128xf32, #tpu.memory_space<vmem>>, vector<1x128xf32>
    %217 = vector.broadcast %5 : vector<10x1xf32> to vector<10x128xf32>
    %218 = vector.broadcast %216 : vector<1x128xf32> to vector<10x128xf32>
    %219 = arith.mulf %217, %218 : vector<10x128xf32>
    %220 = vector.broadcast %9 : vector<10x1xf32> to vector<10x128xf32>
    %221 = arith.addf %219, %220 : vector<10x128xf32>
    %c12_95 = arith.constant 12 : index
    %c0_96 = arith.constant 0 : index
    %c0_97 = arith.constant 0 : index
    %222 = vector.load %arg10[%c12_95, %c0_96, %c0_97] : memref<20x10x128xf32, #tpu.memory_space<vmem>>, vector<1x10x128xf32>
    %223 = vector.shape_cast %222 : vector<1x10x128xf32> to vector<10x128xf32>
    %224 = vector.shape_cast %221 : vector<10x128xf32> to vector<1x10x128xf32>
    tpu.vector_store %arg10[%c12_95, %c0_96, %c0_97], %224 {strides = array<i32>} : memref<20x10x128xf32, #tpu.memory_space<vmem>>, vector<1x10x128xf32>,
    %225 = vector.broadcast %7 : vector<10x1xf32> to vector<10x128xf32>
    %226 = vector.broadcast %216 : vector<1x128xf32> to vector<10x128xf32>
    %227 = arith.mulf %225, %226 : vector<10x128xf32>
    %228 = vector.broadcast %11 : vector<10x1xf32> to vector<10x128xf32>
    %229 = arith.addf %227, %228 : vector<10x128xf32>
    %c12_98 = arith.constant 12 : index
    %c0_99 = arith.constant 0 : index
    %c0_100 = arith.constant 0 : index
    %230 = vector.load %arg11[%c12_98, %c0_99, %c0_100] : memref<20x10x128xf32, #tpu.memory_space<vmem>>, vector<1x10x128xf32>
    %231 = vector.shape_cast %230 : vector<1x10x128xf32> to vector<10x128xf32>
    %232 = vector.shape_cast %229 : vector<10x128xf32> to vector<1x10x128xf32>
    tpu.vector_store %arg11[%c12_98, %c0_99, %c0_100], %232 {strides = array<i32>} : memref<20x10x128xf32, #tpu.memory_space<vmem>>, vector<1x10x128xf32>,
    %c13 = arith.constant 13 : index
    %c0_101 = arith.constant 0 : index
    %233 = vector.load %arg1[%c13, %c0_101] : memref<20x128xf32, #tpu.memory_space<vmem>>, vector<1x128xf32>
    %234 = vector.broadcast %5 : vector<10x1xf32> to vector<10x128xf32>
    %235 = vector.broadcast %233 : vector<1x128xf32> to vector<10x128xf32>
    %236 = arith.mulf %234, %235 : vector<10x128xf32>
    %237 = vector.broadcast %9 : vector<10x1xf32> to vector<10x128xf32>
    %238 = arith.addf %236, %237 : vector<10x128xf32>
    %c13_102 = arith.constant 13 : index
    %c0_103 = arith.constant 0 : index
    %c0_104 = arith.constant 0 : index
    %239 = vector.load %arg10[%c13_102, %c0_103, %c0_104] : memref<20x10x128xf32, #tpu.memory_space<vmem>>, vector<1x10x128xf32>
    %240 = vector.shape_cast %239 : vector<1x10x128xf32> to vector<10x128xf32>
    %241 = vector.shape_cast %238 : vector<10x128xf32> to vector<1x10x128xf32>
    tpu.vector_store %arg10[%c13_102, %c0_103, %c0_104], %241 {strides = array<i32>} : memref<20x10x128xf32, #tpu.memory_space<vmem>>, vector<1x10x128xf32>,
    %242 = vector.broadcast %7 : vector<10x1xf32> to vector<10x128xf32>
    %243 = vector.broadcast %233 : vector<1x128xf32> to vector<10x128xf32>
    %244 = arith.mulf %242, %243 : vector<10x128xf32>
    %245 = vector.broadcast %11 : vector<10x1xf32> to vector<10x128xf32>
    %246 = arith.addf %244, %245 : vector<10x128xf32>
    %c13_105 = arith.constant 13 : index
    %c0_106 = arith.constant 0 : index
    %c0_107 = arith.constant 0 : index
    %247 = vector.load %arg11[%c13_105, %c0_106, %c0_107] : memref<20x10x128xf32, #tpu.memory_space<vmem>>, vector<1x10x128xf32>
    %248 = vector.shape_cast %247 : vector<1x10x128xf32> to vector<10x128xf32>
    %249 = vector.shape_cast %246 : vector<10x128xf32> to vector<1x10x128xf32>
    tpu.vector_store %arg11[%c13_105, %c0_106, %c0_107], %249 {strides = array<i32>} : memref<20x10x128xf32, #tpu.memory_space<vmem>>, vector<1x10x128xf32>,
    %c14 = arith.constant 14 : index
    %c0_108 = arith.constant 0 : index
    %250 = vector.load %arg1[%c14, %c0_108] : memref<20x128xf32, #tpu.memory_space<vmem>>, vector<1x128xf32>
    %251 = vector.broadcast %5 : vector<10x1xf32> to vector<10x128xf32>
    %252 = vector.broadcast %250 : vector<1x128xf32> to vector<10x128xf32>
    %253 = arith.mulf %251, %252 : vector<10x128xf32>
    %254 = vector.broadcast %9 : vector<10x1xf32> to vector<10x128xf32>
    %255 = arith.addf %253, %254 : vector<10x128xf32>
    %c14_109 = arith.constant 14 : index
    %c0_110 = arith.constant 0 : index
    %c0_111 = arith.constant 0 : index
    %256 = vector.load %arg10[%c14_109, %c0_110, %c0_111] : memref<20x10x128xf32, #tpu.memory_space<vmem>>, vector<1x10x128xf32>
    %257 = vector.shape_cast %256 : vector<1x10x128xf32> to vector<10x128xf32>
    %258 = vector.shape_cast %255 : vector<10x128xf32> to vector<1x10x128xf32>
    tpu.vector_store %arg10[%c14_109, %c0_110, %c0_111], %258 {strides = array<i32>} : memref<20x10x128xf32, #tpu.memory_space<vmem>>, vector<1x10x128xf32>,
    %259 = vector.broadcast %7 : vector<10x1xf32> to vector<10x128xf32>
    %260 = vector.broadcast %250 : vector<1x128xf32> to vector<10x128xf32>
    %261 = arith.mulf %259, %260 : vector<10x128xf32>
    %262 = vector.broadcast %11 : vector<10x1xf32> to vector<10x128xf32>
    %263 = arith.addf %261, %262 : vector<10x128xf32>
    %c14_112 = arith.constant 14 : index
    %c0_113 = arith.constant 0 : index
    %c0_114 = arith.constant 0 : index
    %264 = vector.load %arg11[%c14_112, %c0_113, %c0_114] : memref<20x10x128xf32, #tpu.memory_space<vmem>>, vector<1x10x128xf32>
    %265 = vector.shape_cast %264 : vector<1x10x128xf32> to vector<10x128xf32>
    %266 = vector.shape_cast %263 : vector<10x128xf32> to vector<1x10x128xf32>
    tpu.vector_store %arg11[%c14_112, %c0_113, %c0_114], %266 {strides = array<i32>} : memref<20x10x128xf32, #tpu.memory_space<vmem>>, vector<1x10x128xf32>,
    %c15 = arith.constant 15 : index
    %c0_115 = arith.constant 0 : index
    %267 = vector.load %arg1[%c15, %c0_115] : memref<20x128xf32, #tpu.memory_space<vmem>>, vector<1x128xf32>
    %268 = vector.broadcast %5 : vector<10x1xf32> to vector<10x128xf32>
    %269 = vector.broadcast %267 : vector<1x128xf32> to vector<10x128xf32>
    %270 = arith.mulf %268, %269 : vector<10x128xf32>
    %271 = vector.broadcast %9 : vector<10x1xf32> to vector<10x128xf32>
    %272 = arith.addf %270, %271 : vector<10x128xf32>
    %c15_116 = arith.constant 15 : index
    %c0_117 = arith.constant 0 : index
    %c0_118 = arith.constant 0 : index
    %273 = vector.load %arg10[%c15_116, %c0_117, %c0_118] : memref<20x10x128xf32, #tpu.memory_space<vmem>>, vector<1x10x128xf32>
    %274 = vector.shape_cast %273 : vector<1x10x128xf32> to vector<10x128xf32>
    %275 = vector.shape_cast %272 : vector<10x128xf32> to vector<1x10x128xf32>
    tpu.vector_store %arg10[%c15_116, %c0_117, %c0_118], %275 {strides = array<i32>} : memref<20x10x128xf32, #tpu.memory_space<vmem>>, vector<1x10x128xf32>,
    %276 = vector.broadcast %7 : vector<10x1xf32> to vector<10x128xf32>
    %277 = vector.broadcast %267 : vector<1x128xf32> to vector<10x128xf32>
    %278 = arith.mulf %276, %277 : vector<10x128xf32>
    %279 = vector.broadcast %11 : vector<10x1xf32> to vector<10x128xf32>
    %280 = arith.addf %278, %279 : vector<10x128xf32>
    %c15_119 = arith.constant 15 : index
    %c0_120 = arith.constant 0 : index
    %c0_121 = arith.constant 0 : index
    %281 = vector.load %arg11[%c15_119, %c0_120, %c0_121] : memref<20x10x128xf32, #tpu.memory_space<vmem>>, vector<1x10x128xf32>
    %282 = vector.shape_cast %281 : vector<1x10x128xf32> to vector<10x128xf32>
    %283 = vector.shape_cast %280 : vector<10x128xf32> to vector<1x10x128xf32>
    tpu.vector_store %arg11[%c15_119, %c0_120, %c0_121], %283 {strides = array<i32>} : memref<20x10x128xf32, #tpu.memory_space<vmem>>, vector<1x10x128xf32>,
    %c16 = arith.constant 16 : index
    %c0_122 = arith.constant 0 : index
    %284 = vector.load %arg1[%c16, %c0_122] : memref<20x128xf32, #tpu.memory_space<vmem>>, vector<1x128xf32>
    %285 = vector.broadcast %5 : vector<10x1xf32> to vector<10x128xf32>
    %286 = vector.broadcast %284 : vector<1x128xf32> to vector<10x128xf32>
    %287 = arith.mulf %285, %286 : vector<10x128xf32>
    %288 = vector.broadcast %9 : vector<10x1xf32> to vector<10x128xf32>
    %289 = arith.addf %287, %288 : vector<10x128xf32>
    %c16_123 = arith.constant 16 : index
    %c0_124 = arith.constant 0 : index
    %c0_125 = arith.constant 0 : index
    %290 = vector.load %arg10[%c16_123, %c0_124, %c0_125] : memref<20x10x128xf32, #tpu.memory_space<vmem>>, vector<1x10x128xf32>
    %291 = vector.shape_cast %290 : vector<1x10x128xf32> to vector<10x128xf32>
    %292 = vector.shape_cast %289 : vector<10x128xf32> to vector<1x10x128xf32>
    tpu.vector_store %arg10[%c16_123, %c0_124, %c0_125], %292 {strides = array<i32>} : memref<20x10x128xf32, #tpu.memory_space<vmem>>, vector<1x10x128xf32>,
    %293 = vector.broadcast %7 : vector<10x1xf32> to vector<10x128xf32>
    %294 = vector.broadcast %284 : vector<1x128xf32> to vector<10x128xf32>
    %295 = arith.mulf %293, %294 : vector<10x128xf32>
    %296 = vector.broadcast %11 : vector<10x1xf32> to vector<10x128xf32>
    %297 = arith.addf %295, %296 : vector<10x128xf32>
    %c16_126 = arith.constant 16 : index
    %c0_127 = arith.constant 0 : index
    %c0_128 = arith.constant 0 : index
    %298 = vector.load %arg11[%c16_126, %c0_127, %c0_128] : memref<20x10x128xf32, #tpu.memory_space<vmem>>, vector<1x10x128xf32>
    %299 = vector.shape_cast %298 : vector<1x10x128xf32> to vector<10x128xf32>
    %300 = vector.shape_cast %297 : vector<10x128xf32> to vector<1x10x128xf32>
    tpu.vector_store %arg11[%c16_126, %c0_127, %c0_128], %300 {strides = array<i32>} : memref<20x10x128xf32, #tpu.memory_space<vmem>>, vector<1x10x128xf32>,
    %c17 = arith.constant 17 : index
    %c0_129 = arith.constant 0 : index
    %301 = vector.load %arg1[%c17, %c0_129] : memref<20x128xf32, #tpu.memory_space<vmem>>, vector<1x128xf32>
    %302 = vector.broadcast %5 : vector<10x1xf32> to vector<10x128xf32>
    %303 = vector.broadcast %301 : vector<1x128xf32> to vector<10x128xf32>
    %304 = arith.mulf %302, %303 : vector<10x128xf32>
    %305 = vector.broadcast %9 : vector<10x1xf32> to vector<10x128xf32>
    %306 = arith.addf %304, %305 : vector<10x128xf32>
    %c17_130 = arith.constant 17 : index
    %c0_131 = arith.constant 0 : index
    %c0_132 = arith.constant 0 : index
    %307 = vector.load %arg10[%c17_130, %c0_131, %c0_132] : memref<20x10x128xf32, #tpu.memory_space<vmem>>, vector<1x10x128xf32>
    %308 = vector.shape_cast %307 : vector<1x10x128xf32> to vector<10x128xf32>
    %309 = vector.shape_cast %306 : vector<10x128xf32> to vector<1x10x128xf32>
    tpu.vector_store %arg10[%c17_130, %c0_131, %c0_132], %309 {strides = array<i32>} : memref<20x10x128xf32, #tpu.memory_space<vmem>>, vector<1x10x128xf32>,
    %310 = vector.broadcast %7 : vector<10x1xf32> to vector<10x128xf32>
    %311 = vector.broadcast %301 : vector<1x128xf32> to vector<10x128xf32>
    %312 = arith.mulf %310, %311 : vector<10x128xf32>
    %313 = vector.broadcast %11 : vector<10x1xf32> to vector<10x128xf32>
    %314 = arith.addf %312, %313 : vector<10x128xf32>
    %c17_133 = arith.constant 17 : index
    %c0_134 = arith.constant 0 : index
    %c0_135 = arith.constant 0 : index
    %315 = vector.load %arg11[%c17_133, %c0_134, %c0_135] : memref<20x10x128xf32, #tpu.memory_space<vmem>>, vector<1x10x128xf32>
    %316 = vector.shape_cast %315 : vector<1x10x128xf32> to vector<10x128xf32>
    %317 = vector.shape_cast %314 : vector<10x128xf32> to vector<1x10x128xf32>
    tpu.vector_store %arg11[%c17_133, %c0_134, %c0_135], %317 {strides = array<i32>} : memref<20x10x128xf32, #tpu.memory_space<vmem>>, vector<1x10x128xf32>,
    %c18 = arith.constant 18 : index
    %c0_136 = arith.constant 0 : index
    %318 = vector.load %arg1[%c18, %c0_136] : memref<20x128xf32, #tpu.memory_space<vmem>>, vector<1x128xf32>
    %319 = vector.broadcast %5 : vector<10x1xf32> to vector<10x128xf32>
    %320 = vector.broadcast %318 : vector<1x128xf32> to vector<10x128xf32>
    %321 = arith.mulf %319, %320 : vector<10x128xf32>
    %322 = vector.broadcast %9 : vector<10x1xf32> to vector<10x128xf32>
    %323 = arith.addf %321, %322 : vector<10x128xf32>
    %c18_137 = arith.constant 18 : index
    %c0_138 = arith.constant 0 : index
    %c0_139 = arith.constant 0 : index
    %324 = vector.load %arg10[%c18_137, %c0_138, %c0_139] : memref<20x10x128xf32, #tpu.memory_space<vmem>>, vector<1x10x128xf32>
    %325 = vector.shape_cast %324 : vector<1x10x128xf32> to vector<10x128xf32>
    %326 = vector.shape_cast %323 : vector<10x128xf32> to vector<1x10x128xf32>
    tpu.vector_store %arg10[%c18_137, %c0_138, %c0_139], %326 {strides = array<i32>} : memref<20x10x128xf32, #tpu.memory_space<vmem>>, vector<1x10x128xf32>,
    %327 = vector.broadcast %7 : vector<10x1xf32> to vector<10x128xf32>
    %328 = vector.broadcast %318 : vector<1x128xf32> to vector<10x128xf32>
    %329 = arith.mulf %327, %328 : vector<10x128xf32>
    %330 = vector.broadcast %11 : vector<10x1xf32> to vector<10x128xf32>
    %331 = arith.addf %329, %330 : vector<10x128xf32>
    %c18_140 = arith.constant 18 : index
    %c0_141 = arith.constant 0 : index
    %c0_142 = arith.constant 0 : index
    %332 = vector.load %arg11[%c18_140, %c0_141, %c0_142] : memref<20x10x128xf32, #tpu.memory_space<vmem>>, vector<1x10x128xf32>
    %333 = vector.shape_cast %332 : vector<1x10x128xf32> to vector<10x128xf32>
    %334 = vector.shape_cast %331 : vector<10x128xf32> to vector<1x10x128xf32>
    tpu.vector_store %arg11[%c18_140, %c0_141, %c0_142], %334 {strides = array<i32>} : memref<20x10x128xf32, #tpu.memory_space<vmem>>, vector<1x10x128xf32>,
    %c19 = arith.constant 19 : index
    %c0_143 = arith.constant 0 : index
    %335 = vector.load %arg1[%c19, %c0_143] : memref<20x128xf32, #tpu.memory_space<vmem>>, vector<1x128xf32>
    %336 = vector.broadcast %5 : vector<10x1xf32> to vector<10x128xf32>
    %337 = vector.broadcast %335 : vector<1x128xf32> to vector<10x128xf32>
    %338 = arith.mulf %336, %337 : vector<10x128xf32>
    %339 = vector.broadcast %9 : vector<10x1xf32> to vector<10x128xf32>
    %340 = arith.addf %338, %339 : vector<10x128xf32>
    %c19_144 = arith.constant 19 : index
    %c0_145 = arith.constant 0 : index
    %c0_146 = arith.constant 0 : index
    %341 = vector.load %arg10[%c19_144, %c0_145, %c0_146] : memref<20x10x128xf32, #tpu.memory_space<vmem>>, vector<1x10x128xf32>
    %342 = vector.shape_cast %341 : vector<1x10x128xf32> to vector<10x128xf32>
    %343 = vector.shape_cast %340 : vector<10x128xf32> to vector<1x10x128xf32>
    tpu.vector_store %arg10[%c19_144, %c0_145, %c0_146], %343 {strides = array<i32>} : memref<20x10x128xf32, #tpu.memory_space<vmem>>, vector<1x10x128xf32>,
    %344 = vector.broadcast %7 : vector<10x1xf32> to vector<10x128xf32>
    %345 = vector.broadcast %335 : vector<1x128xf32> to vector<10x128xf32>
    %346 = arith.mulf %344, %345 : vector<10x128xf32>
    %347 = vector.broadcast %11 : vector<10x1xf32> to vector<10x128xf32>
    %348 = arith.addf %346, %347 : vector<10x128xf32>
    %c19_147 = arith.constant 19 : index
    %c0_148 = arith.constant 0 : index
    %c0_149 = arith.constant 0 : index
    %349 = vector.load %arg11[%c19_147, %c0_148, %c0_149] : memref<20x10x128xf32, #tpu.memory_space<vmem>>, vector<1x10x128xf32>
    %350 = vector.shape_cast %349 : vector<1x10x128xf32> to vector<10x128xf32>
    %351 = vector.shape_cast %348 : vector<10x128xf32> to vector<1x10x128xf32>
    tpu.vector_store %arg11[%c19_147, %c0_148, %c0_149], %351 {strides = array<i32>} : memref<20x10x128xf32, #tpu.memory_space<vmem>>, vector<1x10x128xf32>,
    %c0_150 = arith.constant 0 : index
    %c0_151 = arith.constant 0 : index
    %352 = vector.load %arg2[%c0_150, %c0_151] : memref<10x128xf32, #tpu.memory_space<vmem>>, vector<10x128xf32>
    %c0_152 = arith.constant 0 : index
    %c0_153 = arith.constant 0 : index
    %c0_154 = arith.constant 0 : index
    %353 = vector.load %arg10[%c0_152, %c0_153, %c0_154] : memref<20x10x128xf32, #tpu.memory_space<vmem>>, vector<1x10x128xf32>
    %354 = vector.shape_cast %353 : vector<1x10x128xf32> to vector<10x128xf32>
    %cst = arith.constant dense<0.000000e+00> : vector<10x128xf32>
    %355 = tpu.matmul %0, %352, %cst {dimension_numbers = #tpu.dot_dimension_numbers<[1], [0], [0], [1], [0, 0, 1, 1], [], []>} : vector<10x10xf32>, vector<10x128xf32>, vector<10x128xf32> -> vector<10x128xf32>
    %356 = arith.addf %354, %355 : vector<10x128xf32>
    %357 = arith.negf %356 : vector<10x128xf32>
    %358 = math.exp %357 : vector<10x128xf32>
    %cst_155 = arith.constant 1.000000e+00 : f32
    %359 = vector.broadcast %cst_155 : f32 to vector<10x128xf32>
    %360 = arith.addf %359, %358 : vector<10x128xf32>
    %361 = arith.divf %359, %360 : vector<10x128xf32>
    %c0_156 = arith.constant 0 : index
    %c0_157 = arith.constant 0 : index
    %c0_158 = arith.constant 0 : index
    %362 = vector.load %arg11[%c0_156, %c0_157, %c0_158] : memref<20x10x128xf32, #tpu.memory_space<vmem>>, vector<1x10x128xf32>
    %363 = vector.shape_cast %362 : vector<1x10x128xf32> to vector<10x128xf32>
    %364 = arith.mulf %361, %352 : vector<10x128xf32>
    %cst_159 = arith.constant dense<0.000000e+00> : vector<10x128xf32>
    %365 = tpu.matmul %1, %364, %cst_159 {dimension_numbers = #tpu.dot_dimension_numbers<[1], [0], [0], [1], [0, 0, 1, 1], [], []>} : vector<10x10xf32>, vector<10x128xf32>, vector<10x128xf32> -> vector<10x128xf32>
    %366 = arith.addf %363, %365 : vector<10x128xf32>
    %367 = math.tanh %366 : vector<10x128xf32>
    %368 = arith.subf %367, %352 : vector<10x128xf32>
    %369 = arith.mulf %361, %368 : vector<10x128xf32>
    %370 = arith.addf %352, %369 : vector<10x128xf32>
    %c1_160 = arith.constant 1 : index
    %c0_161 = arith.constant 0 : index
    %c0_162 = arith.constant 0 : index
    %371 = vector.load %arg10[%c1_160, %c0_161, %c0_162] : memref<20x10x128xf32, #tpu.memory_space<vmem>>, vector<1x10x128xf32>
    %372 = vector.shape_cast %371 : vector<1x10x128xf32> to vector<10x128xf32>
    %cst_163 = arith.constant dense<0.000000e+00> : vector<10x128xf32>
    %373 = tpu.matmul %0, %370, %cst_163 {dimension_numbers = #tpu.dot_dimension_numbers<[1], [0], [0], [1], [0, 0, 1, 1], [], []>} : vector<10x10xf32>, vector<10x128xf32>, vector<10x128xf32> -> vector<10x128xf32>
    %374 = arith.addf %372, %373 : vector<10x128xf32>
    %375 = arith.negf %374 : vector<10x128xf32>
    %376 = math.exp %375 : vector<10x128xf32>
    %cst_164 = arith.constant 1.000000e+00 : f32
    %377 = vector.broadcast %cst_164 : f32 to vector<10x128xf32>
    %378 = arith.addf %377, %376 : vector<10x128xf32>
    %379 = arith.divf %377, %378 : vector<10x128xf32>
    %c1_165 = arith.constant 1 : index
    %c0_166 = arith.constant 0 : index
    %c0_167 = arith.constant 0 : index
    %380 = vector.load %arg11[%c1_165, %c0_166, %c0_167] : memref<20x10x128xf32, #tpu.memory_space<vmem>>, vector<1x10x128xf32>
    %381 = vector.shape_cast %380 : vector<1x10x128xf32> to vector<10x128xf32>
    %382 = arith.mulf %379, %370 : vector<10x128xf32>
    %cst_168 = arith.constant dense<0.000000e+00> : vector<10x128xf32>
    %383 = tpu.matmul %1, %382, %cst_168 {dimension_numbers = #tpu.dot_dimension_numbers<[1], [0], [0], [1], [0, 0, 1, 1], [], []>} : vector<10x10xf32>, vector<10x128xf32>, vector<10x128xf32> -> vector<10x128xf32>
    %384 = arith.addf %381, %383 : vector<10x128xf32>
    %385 = math.tanh %384 : vector<10x128xf32>
    %386 = arith.subf %385, %370 : vector<10x128xf32>
    %387 = arith.mulf %379, %386 : vector<10x128xf32>
    %388 = arith.addf %370, %387 : vector<10x128xf32>
    %c2_169 = arith.constant 2 : index
    %c0_170 = arith.constant 0 : index
    %c0_171 = arith.constant 0 : index
    %389 = vector.load %arg10[%c2_169, %c0_170, %c0_171] : memref<20x10x128xf32, #tpu.memory_space<vmem>>, vector<1x10x128xf32>
    %390 = vector.shape_cast %389 : vector<1x10x128xf32> to vector<10x128xf32>
    %cst_172 = arith.constant dense<0.000000e+00> : vector<10x128xf32>
    %391 = tpu.matmul %0, %388, %cst_172 {dimension_numbers = #tpu.dot_dimension_numbers<[1], [0], [0], [1], [0, 0, 1, 1], [], []>} : vector<10x10xf32>, vector<10x128xf32>, vector<10x128xf32> -> vector<10x128xf32>
    %392 = arith.addf %390, %391 : vector<10x128xf32>
    %393 = arith.negf %392 : vector<10x128xf32>
    %394 = math.exp %393 : vector<10x128xf32>
    %cst_173 = arith.constant 1.000000e+00 : f32
    %395 = vector.broadcast %cst_173 : f32 to vector<10x128xf32>
    %396 = arith.addf %395, %394 : vector<10x128xf32>
    %397 = arith.divf %395, %396 : vector<10x128xf32>
    %c2_174 = arith.constant 2 : index
    %c0_175 = arith.constant 0 : index
    %c0_176 = arith.constant 0 : index
    %398 = vector.load %arg11[%c2_174, %c0_175, %c0_176] : memref<20x10x128xf32, #tpu.memory_space<vmem>>, vector<1x10x128xf32>
    %399 = vector.shape_cast %398 : vector<1x10x128xf32> to vector<10x128xf32>
    %400 = arith.mulf %397, %388 : vector<10x128xf32>
    %cst_177 = arith.constant dense<0.000000e+00> : vector<10x128xf32>
    %401 = tpu.matmul %1, %400, %cst_177 {dimension_numbers = #tpu.dot_dimension_numbers<[1], [0], [0], [1], [0, 0, 1, 1], [], []>} : vector<10x10xf32>, vector<10x128xf32>, vector<10x128xf32> -> vector<10x128xf32>
    %402 = arith.addf %399, %401 : vector<10x128xf32>
    %403 = math.tanh %402 : vector<10x128xf32>
    %404 = arith.subf %403, %388 : vector<10x128xf32>
    %405 = arith.mulf %397, %404 : vector<10x128xf32>
    %406 = arith.addf %388, %405 : vector<10x128xf32>
    %c3_178 = arith.constant 3 : index
    %c0_179 = arith.constant 0 : index
    %c0_180 = arith.constant 0 : index
    %407 = vector.load %arg10[%c3_178, %c0_179, %c0_180] : memref<20x10x128xf32, #tpu.memory_space<vmem>>, vector<1x10x128xf32>
    %408 = vector.shape_cast %407 : vector<1x10x128xf32> to vector<10x128xf32>
    %cst_181 = arith.constant dense<0.000000e+00> : vector<10x128xf32>
    %409 = tpu.matmul %0, %406, %cst_181 {dimension_numbers = #tpu.dot_dimension_numbers<[1], [0], [0], [1], [0, 0, 1, 1], [], []>} : vector<10x10xf32>, vector<10x128xf32>, vector<10x128xf32> -> vector<10x128xf32>
    %410 = arith.addf %408, %409 : vector<10x128xf32>
    %411 = arith.negf %410 : vector<10x128xf32>
    %412 = math.exp %411 : vector<10x128xf32>
    %cst_182 = arith.constant 1.000000e+00 : f32
    %413 = vector.broadcast %cst_182 : f32 to vector<10x128xf32>
    %414 = arith.addf %413, %412 : vector<10x128xf32>
    %415 = arith.divf %413, %414 : vector<10x128xf32>
    %c3_183 = arith.constant 3 : index
    %c0_184 = arith.constant 0 : index
    %c0_185 = arith.constant 0 : index
    %416 = vector.load %arg11[%c3_183, %c0_184, %c0_185] : memref<20x10x128xf32, #tpu.memory_space<vmem>>, vector<1x10x128xf32>
    %417 = vector.shape_cast %416 : vector<1x10x128xf32> to vector<10x128xf32>
    %418 = arith.mulf %415, %406 : vector<10x128xf32>
    %cst_186 = arith.constant dense<0.000000e+00> : vector<10x128xf32>
    %419 = tpu.matmul %1, %418, %cst_186 {dimension_numbers = #tpu.dot_dimension_numbers<[1], [0], [0], [1], [0, 0, 1, 1], [], []>} : vector<10x10xf32>, vector<10x128xf32>, vector<10x128xf32> -> vector<10x128xf32>
    %420 = arith.addf %417, %419 : vector<10x128xf32>
    %421 = math.tanh %420 : vector<10x128xf32>
    %422 = arith.subf %421, %406 : vector<10x128xf32>
    %423 = arith.mulf %415, %422 : vector<10x128xf32>
    %424 = arith.addf %406, %423 : vector<10x128xf32>
    %c4_187 = arith.constant 4 : index
    %c0_188 = arith.constant 0 : index
    %c0_189 = arith.constant 0 : index
    %425 = vector.load %arg10[%c4_187, %c0_188, %c0_189] : memref<20x10x128xf32, #tpu.memory_space<vmem>>, vector<1x10x128xf32>
    %426 = vector.shape_cast %425 : vector<1x10x128xf32> to vector<10x128xf32>
    %cst_190 = arith.constant dense<0.000000e+00> : vector<10x128xf32>
    %427 = tpu.matmul %0, %424, %cst_190 {dimension_numbers = #tpu.dot_dimension_numbers<[1], [0], [0], [1], [0, 0, 1, 1], [], []>} : vector<10x10xf32>, vector<10x128xf32>, vector<10x128xf32> -> vector<10x128xf32>
    %428 = arith.addf %426, %427 : vector<10x128xf32>
    %429 = arith.negf %428 : vector<10x128xf32>
    %430 = math.exp %429 : vector<10x128xf32>
    %cst_191 = arith.constant 1.000000e+00 : f32
    %431 = vector.broadcast %cst_191 : f32 to vector<10x128xf32>
    %432 = arith.addf %431, %430 : vector<10x128xf32>
    %433 = arith.divf %431, %432 : vector<10x128xf32>
    %c4_192 = arith.constant 4 : index
    %c0_193 = arith.constant 0 : index
    %c0_194 = arith.constant 0 : index
    %434 = vector.load %arg11[%c4_192, %c0_193, %c0_194] : memref<20x10x128xf32, #tpu.memory_space<vmem>>, vector<1x10x128xf32>
    %435 = vector.shape_cast %434 : vector<1x10x128xf32> to vector<10x128xf32>
    %436 = arith.mulf %433, %424 : vector<10x128xf32>
    %cst_195 = arith.constant dense<0.000000e+00> : vector<10x128xf32>
    %437 = tpu.matmul %1, %436, %cst_195 {dimension_numbers = #tpu.dot_dimension_numbers<[1], [0], [0], [1], [0, 0, 1, 1], [], []>} : vector<10x10xf32>, vector<10x128xf32>, vector<10x128xf32> -> vector<10x128xf32>
    %438 = arith.addf %435, %437 : vector<10x128xf32>
    %439 = math.tanh %438 : vector<10x128xf32>
    %440 = arith.subf %439, %424 : vector<10x128xf32>
    %441 = arith.mulf %433, %440 : vector<10x128xf32>
    %442 = arith.addf %424, %441 : vector<10x128xf32>
    %c5_196 = arith.constant 5 : index
    %c0_197 = arith.constant 0 : index
    %c0_198 = arith.constant 0 : index
    %443 = vector.load %arg10[%c5_196, %c0_197, %c0_198] : memref<20x10x128xf32, #tpu.memory_space<vmem>>, vector<1x10x128xf32>
    %444 = vector.shape_cast %443 : vector<1x10x128xf32> to vector<10x128xf32>
    %cst_199 = arith.constant dense<0.000000e+00> : vector<10x128xf32>
    %445 = tpu.matmul %0, %442, %cst_199 {dimension_numbers = #tpu.dot_dimension_numbers<[1], [0], [0], [1], [0, 0, 1, 1], [], []>} : vector<10x10xf32>, vector<10x128xf32>, vector<10x128xf32> -> vector<10x128xf32>
    %446 = arith.addf %444, %445 : vector<10x128xf32>
    %447 = arith.negf %446 : vector<10x128xf32>
    %448 = math.exp %447 : vector<10x128xf32>
    %cst_200 = arith.constant 1.000000e+00 : f32
    %449 = vector.broadcast %cst_200 : f32 to vector<10x128xf32>
    %450 = arith.addf %449, %448 : vector<10x128xf32>
    %451 = arith.divf %449, %450 : vector<10x128xf32>
    %c5_201 = arith.constant 5 : index
    %c0_202 = arith.constant 0 : index
    %c0_203 = arith.constant 0 : index
    %452 = vector.load %arg11[%c5_201, %c0_202, %c0_203] : memref<20x10x128xf32, #tpu.memory_space<vmem>>, vector<1x10x128xf32>
    %453 = vector.shape_cast %452 : vector<1x10x128xf32> to vector<10x128xf32>
    %454 = arith.mulf %451, %442 : vector<10x128xf32>
    %cst_204 = arith.constant dense<0.000000e+00> : vector<10x128xf32>
    %455 = tpu.matmul %1, %454, %cst_204 {dimension_numbers = #tpu.dot_dimension_numbers<[1], [0], [0], [1], [0, 0, 1, 1], [], []>} : vector<10x10xf32>, vector<10x128xf32>, vector<10x128xf32> -> vector<10x128xf32>
    %456 = arith.addf %453, %455 : vector<10x128xf32>
    %457 = math.tanh %456 : vector<10x128xf32>
    %458 = arith.subf %457, %442 : vector<10x128xf32>
    %459 = arith.mulf %451, %458 : vector<10x128xf32>
    %460 = arith.addf %442, %459 : vector<10x128xf32>
    %c6_205 = arith.constant 6 : index
    %c0_206 = arith.constant 0 : index
    %c0_207 = arith.constant 0 : index
    %461 = vector.load %arg10[%c6_205, %c0_206, %c0_207] : memref<20x10x128xf32, #tpu.memory_space<vmem>>, vector<1x10x128xf32>
    %462 = vector.shape_cast %461 : vector<1x10x128xf32> to vector<10x128xf32>
    %cst_208 = arith.constant dense<0.000000e+00> : vector<10x128xf32>
    %463 = tpu.matmul %0, %460, %cst_208 {dimension_numbers = #tpu.dot_dimension_numbers<[1], [0], [0], [1], [0, 0, 1, 1], [], []>} : vector<10x10xf32>, vector<10x128xf32>, vector<10x128xf32> -> vector<10x128xf32>
    %464 = arith.addf %462, %463 : vector<10x128xf32>
    %465 = arith.negf %464 : vector<10x128xf32>
    %466 = math.exp %465 : vector<10x128xf32>
    %cst_209 = arith.constant 1.000000e+00 : f32
    %467 = vector.broadcast %cst_209 : f32 to vector<10x128xf32>
    %468 = arith.addf %467, %466 : vector<10x128xf32>
    %469 = arith.divf %467, %468 : vector<10x128xf32>
    %c6_210 = arith.constant 6 : index
    %c0_211 = arith.constant 0 : index
    %c0_212 = arith.constant 0 : index
    %470 = vector.load %arg11[%c6_210, %c0_211, %c0_212] : memref<20x10x128xf32, #tpu.memory_space<vmem>>, vector<1x10x128xf32>
    %471 = vector.shape_cast %470 : vector<1x10x128xf32> to vector<10x128xf32>
    %472 = arith.mulf %469, %460 : vector<10x128xf32>
    %cst_213 = arith.constant dense<0.000000e+00> : vector<10x128xf32>
    %473 = tpu.matmul %1, %472, %cst_213 {dimension_numbers = #tpu.dot_dimension_numbers<[1], [0], [0], [1], [0, 0, 1, 1], [], []>} : vector<10x10xf32>, vector<10x128xf32>, vector<10x128xf32> -> vector<10x128xf32>
    %474 = arith.addf %471, %473 : vector<10x128xf32>
    %475 = math.tanh %474 : vector<10x128xf32>
    %476 = arith.subf %475, %460 : vector<10x128xf32>
    %477 = arith.mulf %469, %476 : vector<10x128xf32>
    %478 = arith.addf %460, %477 : vector<10x128xf32>
    %c7_214 = arith.constant 7 : index
    %c0_215 = arith.constant 0 : index
    %c0_216 = arith.constant 0 : index
    %479 = vector.load %arg10[%c7_214, %c0_215, %c0_216] : memref<20x10x128xf32, #tpu.memory_space<vmem>>, vector<1x10x128xf32>
    %480 = vector.shape_cast %479 : vector<1x10x128xf32> to vector<10x128xf32>
    %cst_217 = arith.constant dense<0.000000e+00> : vector<10x128xf32>
    %481 = tpu.matmul %0, %478, %cst_217 {dimension_numbers = #tpu.dot_dimension_numbers<[1], [0], [0], [1], [0, 0, 1, 1], [], []>} : vector<10x10xf32>, vector<10x128xf32>, vector<10x128xf32> -> vector<10x128xf32>
    %482 = arith.addf %480, %481 : vector<10x128xf32>
    %483 = arith.negf %482 : vector<10x128xf32>
    %484 = math.exp %483 : vector<10x128xf32>
    %cst_218 = arith.constant 1.000000e+00 : f32
    %485 = vector.broadcast %cst_218 : f32 to vector<10x128xf32>
    %486 = arith.addf %485, %484 : vector<10x128xf32>
    %487 = arith.divf %485, %486 : vector<10x128xf32>
    %c7_219 = arith.constant 7 : index
    %c0_220 = arith.constant 0 : index
    %c0_221 = arith.constant 0 : index
    %488 = vector.load %arg11[%c7_219, %c0_220, %c0_221] : memref<20x10x128xf32, #tpu.memory_space<vmem>>, vector<1x10x128xf32>
    %489 = vector.shape_cast %488 : vector<1x10x128xf32> to vector<10x128xf32>
    %490 = arith.mulf %487, %478 : vector<10x128xf32>
    %cst_222 = arith.constant dense<0.000000e+00> : vector<10x128xf32>
    %491 = tpu.matmul %1, %490, %cst_222 {dimension_numbers = #tpu.dot_dimension_numbers<[1], [0], [0], [1], [0, 0, 1, 1], [], []>} : vector<10x10xf32>, vector<10x128xf32>, vector<10x128xf32> -> vector<10x128xf32>
    %492 = arith.addf %489, %491 : vector<10x128xf32>
    %493 = math.tanh %492 : vector<10x128xf32>
    %494 = arith.subf %493, %478 : vector<10x128xf32>
    %495 = arith.mulf %487, %494 : vector<10x128xf32>
    %496 = arith.addf %478, %495 : vector<10x128xf32>
    %c8_223 = arith.constant 8 : index
    %c0_224 = arith.constant 0 : index
    %c0_225 = arith.constant 0 : index
    %497 = vector.load %arg10[%c8_223, %c0_224, %c0_225] : memref<20x10x128xf32, #tpu.memory_space<vmem>>, vector<1x10x128xf32>
    %498 = vector.shape_cast %497 : vector<1x10x128xf32> to vector<10x128xf32>
    %cst_226 = arith.constant dense<0.000000e+00> : vector<10x128xf32>
    %499 = tpu.matmul %0, %496, %cst_226 {dimension_numbers = #tpu.dot_dimension_numbers<[1], [0], [0], [1], [0, 0, 1, 1], [], []>} : vector<10x10xf32>, vector<10x128xf32>, vector<10x128xf32> -> vector<10x128xf32>
    %500 = arith.addf %498, %499 : vector<10x128xf32>
    %501 = arith.negf %500 : vector<10x128xf32>
    %502 = math.exp %501 : vector<10x128xf32>
    %cst_227 = arith.constant 1.000000e+00 : f32
    %503 = vector.broadcast %cst_227 : f32 to vector<10x128xf32>
    %504 = arith.addf %503, %502 : vector<10x128xf32>
    %505 = arith.divf %503, %504 : vector<10x128xf32>
    %c8_228 = arith.constant 8 : index
    %c0_229 = arith.constant 0 : index
    %c0_230 = arith.constant 0 : index
    %506 = vector.load %arg11[%c8_228, %c0_229, %c0_230] : memref<20x10x128xf32, #tpu.memory_space<vmem>>, vector<1x10x128xf32>
    %507 = vector.shape_cast %506 : vector<1x10x128xf32> to vector<10x128xf32>
    %508 = arith.mulf %505, %496 : vector<10x128xf32>
    %cst_231 = arith.constant dense<0.000000e+00> : vector<10x128xf32>
    %509 = tpu.matmul %1, %508, %cst_231 {dimension_numbers = #tpu.dot_dimension_numbers<[1], [0], [0], [1], [0, 0, 1, 1], [], []>} : vector<10x10xf32>, vector<10x128xf32>, vector<10x128xf32> -> vector<10x128xf32>
    %510 = arith.addf %507, %509 : vector<10x128xf32>
    %511 = math.tanh %510 : vector<10x128xf32>
    %512 = arith.subf %511, %496 : vector<10x128xf32>
    %513 = arith.mulf %505, %512 : vector<10x128xf32>
    %514 = arith.addf %496, %513 : vector<10x128xf32>
    %c9_232 = arith.constant 9 : index
    %c0_233 = arith.constant 0 : index
    %c0_234 = arith.constant 0 : index
    %515 = vector.load %arg10[%c9_232, %c0_233, %c0_234] : memref<20x10x128xf32, #tpu.memory_space<vmem>>, vector<1x10x128xf32>
    %516 = vector.shape_cast %515 : vector<1x10x128xf32> to vector<10x128xf32>
    %cst_235 = arith.constant dense<0.000000e+00> : vector<10x128xf32>
    %517 = tpu.matmul %0, %514, %cst_235 {dimension_numbers = #tpu.dot_dimension_numbers<[1], [0], [0], [1], [0, 0, 1, 1], [], []>} : vector<10x10xf32>, vector<10x128xf32>, vector<10x128xf32> -> vector<10x128xf32>
    %518 = arith.addf %516, %517 : vector<10x128xf32>
    %519 = arith.negf %518 : vector<10x128xf32>
    %520 = math.exp %519 : vector<10x128xf32>
    %cst_236 = arith.constant 1.000000e+00 : f32
    %521 = vector.broadcast %cst_236 : f32 to vector<10x128xf32>
    %522 = arith.addf %521, %520 : vector<10x128xf32>
    %523 = arith.divf %521, %522 : vector<10x128xf32>
    %c9_237 = arith.constant 9 : index
    %c0_238 = arith.constant 0 : index
    %c0_239 = arith.constant 0 : index
    %524 = vector.load %arg11[%c9_237, %c0_238, %c0_239] : memref<20x10x128xf32, #tpu.memory_space<vmem>>, vector<1x10x128xf32>
    %525 = vector.shape_cast %524 : vector<1x10x128xf32> to vector<10x128xf32>
    %526 = arith.mulf %523, %514 : vector<10x128xf32>
    %cst_240 = arith.constant dense<0.000000e+00> : vector<10x128xf32>
    %527 = tpu.matmul %1, %526, %cst_240 {dimension_numbers = #tpu.dot_dimension_numbers<[1], [0], [0], [1], [0, 0, 1, 1], [], []>} : vector<10x10xf32>, vector<10x128xf32>, vector<10x128xf32> -> vector<10x128xf32>
    %528 = arith.addf %525, %527 : vector<10x128xf32>
    %529 = math.tanh %528 : vector<10x128xf32>
    %530 = arith.subf %529, %514 : vector<10x128xf32>
    %531 = arith.mulf %523, %530 : vector<10x128xf32>
    %532 = arith.addf %514, %531 : vector<10x128xf32>
    %c10_241 = arith.constant 10 : index
    %c0_242 = arith.constant 0 : index
    %c0_243 = arith.constant 0 : index
    %533 = vector.load %arg10[%c10_241, %c0_242, %c0_243] : memref<20x10x128xf32, #tpu.memory_space<vmem>>, vector<1x10x128xf32>
    %534 = vector.shape_cast %533 : vector<1x10x128xf32> to vector<10x128xf32>
    %cst_244 = arith.constant dense<0.000000e+00> : vector<10x128xf32>
    %535 = tpu.matmul %0, %532, %cst_244 {dimension_numbers = #tpu.dot_dimension_numbers<[1], [0], [0], [1], [0, 0, 1, 1], [], []>} : vector<10x10xf32>, vector<10x128xf32>, vector<10x128xf32> -> vector<10x128xf32>
    %536 = arith.addf %534, %535 : vector<10x128xf32>
    %537 = arith.negf %536 : vector<10x128xf32>
    %538 = math.exp %537 : vector<10x128xf32>
    %cst_245 = arith.constant 1.000000e+00 : f32
    %539 = vector.broadcast %cst_245 : f32 to vector<10x128xf32>
    %540 = arith.addf %539, %538 : vector<10x128xf32>
    %541 = arith.divf %539, %540 : vector<10x128xf32>
    %c10_246 = arith.constant 10 : index
    %c0_247 = arith.constant 0 : index
    %c0_248 = arith.constant 0 : index
    %542 = vector.load %arg11[%c10_246, %c0_247, %c0_248] : memref<20x10x128xf32, #tpu.memory_space<vmem>>, vector<1x10x128xf32>
    %543 = vector.shape_cast %542 : vector<1x10x128xf32> to vector<10x128xf32>
    %544 = arith.mulf %541, %532 : vector<10x128xf32>
    %cst_249 = arith.constant dense<0.000000e+00> : vector<10x128xf32>
    %545 = tpu.matmul %1, %544, %cst_249 {dimension_numbers = #tpu.dot_dimension_numbers<[1], [0], [0], [1], [0, 0, 1, 1], [], []>} : vector<10x10xf32>, vector<10x128xf32>, vector<10x128xf32> -> vector<10x128xf32>
    %546 = arith.addf %543, %545 : vector<10x128xf32>
    %547 = math.tanh %546 : vector<10x128xf32>
    %548 = arith.subf %547, %532 : vector<10x128xf32>
    %549 = arith.mulf %541, %548 : vector<10x128xf32>
    %550 = arith.addf %532, %549 : vector<10x128xf32>
    %c11_250 = arith.constant 11 : index
    %c0_251 = arith.constant 0 : index
    %c0_252 = arith.constant 0 : index
    %551 = vector.load %arg10[%c11_250, %c0_251, %c0_252] : memref<20x10x128xf32, #tpu.memory_space<vmem>>, vector<1x10x128xf32>
    %552 = vector.shape_cast %551 : vector<1x10x128xf32> to vector<10x128xf32>
    %cst_253 = arith.constant dense<0.000000e+00> : vector<10x128xf32>
    %553 = tpu.matmul %0, %550, %cst_253 {dimension_numbers = #tpu.dot_dimension_numbers<[1], [0], [0], [1], [0, 0, 1, 1], [], []>} : vector<10x10xf32>, vector<10x128xf32>, vector<10x128xf32> -> vector<10x128xf32>
    %554 = arith.addf %552, %553 : vector<10x128xf32>
    %555 = arith.negf %554 : vector<10x128xf32>
    %556 = math.exp %555 : vector<10x128xf32>
    %cst_254 = arith.constant 1.000000e+00 : f32
    %557 = vector.broadcast %cst_254 : f32 to vector<10x128xf32>
    %558 = arith.addf %557, %556 : vector<10x128xf32>
    %559 = arith.divf %557, %558 : vector<10x128xf32>
    %c11_255 = arith.constant 11 : index
    %c0_256 = arith.constant 0 : index
    %c0_257 = arith.constant 0 : index
    %560 = vector.load %arg11[%c11_255, %c0_256, %c0_257] : memref<20x10x128xf32, #tpu.memory_space<vmem>>, vector<1x10x128xf32>
    %561 = vector.shape_cast %560 : vector<1x10x128xf32> to vector<10x128xf32>
    %562 = arith.mulf %559, %550 : vector<10x128xf32>
    %cst_258 = arith.constant dense<0.000000e+00> : vector<10x128xf32>
    %563 = tpu.matmul %1, %562, %cst_258 {dimension_numbers = #tpu.dot_dimension_numbers<[1], [0], [0], [1], [0, 0, 1, 1], [], []>} : vector<10x10xf32>, vector<10x128xf32>, vector<10x128xf32> -> vector<10x128xf32>
    %564 = arith.addf %561, %563 : vector<10x128xf32>
    %565 = math.tanh %564 : vector<10x128xf32>
    %566 = arith.subf %565, %550 : vector<10x128xf32>
    %567 = arith.mulf %559, %566 : vector<10x128xf32>
    %568 = arith.addf %550, %567 : vector<10x128xf32>
    %c12_259 = arith.constant 12 : index
    %c0_260 = arith.constant 0 : index
    %c0_261 = arith.constant 0 : index
    %569 = vector.load %arg10[%c12_259, %c0_260, %c0_261] : memref<20x10x128xf32, #tpu.memory_space<vmem>>, vector<1x10x128xf32>
    %570 = vector.shape_cast %569 : vector<1x10x128xf32> to vector<10x128xf32>
    %cst_262 = arith.constant dense<0.000000e+00> : vector<10x128xf32>
    %571 = tpu.matmul %0, %568, %cst_262 {dimension_numbers = #tpu.dot_dimension_numbers<[1], [0], [0], [1], [0, 0, 1, 1], [], []>} : vector<10x10xf32>, vector<10x128xf32>, vector<10x128xf32> -> vector<10x128xf32>
    %572 = arith.addf %570, %571 : vector<10x128xf32>
    %573 = arith.negf %572 : vector<10x128xf32>
    %574 = math.exp %573 : vector<10x128xf32>
    %cst_263 = arith.constant 1.000000e+00 : f32
    %575 = vector.broadcast %cst_263 : f32 to vector<10x128xf32>
    %576 = arith.addf %575, %574 : vector<10x128xf32>
    %577 = arith.divf %575, %576 : vector<10x128xf32>
    %c12_264 = arith.constant 12 : index
    %c0_265 = arith.constant 0 : index
    %c0_266 = arith.constant 0 : index
    %578 = vector.load %arg11[%c12_264, %c0_265, %c0_266] : memref<20x10x128xf32, #tpu.memory_space<vmem>>, vector<1x10x128xf32>
    %579 = vector.shape_cast %578 : vector<1x10x128xf32> to vector<10x128xf32>
    %580 = arith.mulf %577, %568 : vector<10x128xf32>
    %cst_267 = arith.constant dense<0.000000e+00> : vector<10x128xf32>
    %581 = tpu.matmul %1, %580, %cst_267 {dimension_numbers = #tpu.dot_dimension_numbers<[1], [0], [0], [1], [0, 0, 1, 1], [], []>} : vector<10x10xf32>, vector<10x128xf32>, vector<10x128xf32> -> vector<10x128xf32>
    %582 = arith.addf %579, %581 : vector<10x128xf32>
    %583 = math.tanh %582 : vector<10x128xf32>
    %584 = arith.subf %583, %568 : vector<10x128xf32>
    %585 = arith.mulf %577, %584 : vector<10x128xf32>
    %586 = arith.addf %568, %585 : vector<10x128xf32>
    %c13_268 = arith.constant 13 : index
    %c0_269 = arith.constant 0 : index
    %c0_270 = arith.constant 0 : index
    %587 = vector.load %arg10[%c13_268, %c0_269, %c0_270] : memref<20x10x128xf32, #tpu.memory_space<vmem>>, vector<1x10x128xf32>
    %588 = vector.shape_cast %587 : vector<1x10x128xf32> to vector<10x128xf32>
    %cst_271 = arith.constant dense<0.000000e+00> : vector<10x128xf32>
    %589 = tpu.matmul %0, %586, %cst_271 {dimension_numbers = #tpu.dot_dimension_numbers<[1], [0], [0], [1], [0, 0, 1, 1], [], []>} : vector<10x10xf32>, vector<10x128xf32>, vector<10x128xf32> -> vector<10x128xf32>
    %590 = arith.addf %588, %589 : vector<10x128xf32>
    %591 = arith.negf %590 : vector<10x128xf32>
    %592 = math.exp %591 : vector<10x128xf32>
    %cst_272 = arith.constant 1.000000e+00 : f32
    %593 = vector.broadcast %cst_272 : f32 to vector<10x128xf32>
    %594 = arith.addf %593, %592 : vector<10x128xf32>
    %595 = arith.divf %593, %594 : vector<10x128xf32>
    %c13_273 = arith.constant 13 : index
    %c0_274 = arith.constant 0 : index
    %c0_275 = arith.constant 0 : index
    %596 = vector.load %arg11[%c13_273, %c0_274, %c0_275] : memref<20x10x128xf32, #tpu.memory_space<vmem>>, vector<1x10x128xf32>
    %597 = vector.shape_cast %596 : vector<1x10x128xf32> to vector<10x128xf32>
    %598 = arith.mulf %595, %586 : vector<10x128xf32>
    %cst_276 = arith.constant dense<0.000000e+00> : vector<10x128xf32>
    %599 = tpu.matmul %1, %598, %cst_276 {dimension_numbers = #tpu.dot_dimension_numbers<[1], [0], [0], [1], [0, 0, 1, 1], [], []>} : vector<10x10xf32>, vector<10x128xf32>, vector<10x128xf32> -> vector<10x128xf32>
    %600 = arith.addf %597, %599 : vector<10x128xf32>
    %601 = math.tanh %600 : vector<10x128xf32>
    %602 = arith.subf %601, %586 : vector<10x128xf32>
    %603 = arith.mulf %595, %602 : vector<10x128xf32>
    %604 = arith.addf %586, %603 : vector<10x128xf32>
    %c14_277 = arith.constant 14 : index
    %c0_278 = arith.constant 0 : index
    %c0_279 = arith.constant 0 : index
    %605 = vector.load %arg10[%c14_277, %c0_278, %c0_279] : memref<20x10x128xf32, #tpu.memory_space<vmem>>, vector<1x10x128xf32>
    %606 = vector.shape_cast %605 : vector<1x10x128xf32> to vector<10x128xf32>
    %cst_280 = arith.constant dense<0.000000e+00> : vector<10x128xf32>
    %607 = tpu.matmul %0, %604, %cst_280 {dimension_numbers = #tpu.dot_dimension_numbers<[1], [0], [0], [1], [0, 0, 1, 1], [], []>} : vector<10x10xf32>, vector<10x128xf32>, vector<10x128xf32> -> vector<10x128xf32>
    %608 = arith.addf %606, %607 : vector<10x128xf32>
    %609 = arith.negf %608 : vector<10x128xf32>
    %610 = math.exp %609 : vector<10x128xf32>
    %cst_281 = arith.constant 1.000000e+00 : f32
    %611 = vector.broadcast %cst_281 : f32 to vector<10x128xf32>
    %612 = arith.addf %611, %610 : vector<10x128xf32>
    %613 = arith.divf %611, %612 : vector<10x128xf32>
    %c14_282 = arith.constant 14 : index
    %c0_283 = arith.constant 0 : index
    %c0_284 = arith.constant 0 : index
    %614 = vector.load %arg11[%c14_282, %c0_283, %c0_284] : memref<20x10x128xf32, #tpu.memory_space<vmem>>, vector<1x10x128xf32>
    %615 = vector.shape_cast %614 : vector<1x10x128xf32> to vector<10x128xf32>
    %616 = arith.mulf %613, %604 : vector<10x128xf32>
    %cst_285 = arith.constant dense<0.000000e+00> : vector<10x128xf32>
    %617 = tpu.matmul %1, %616, %cst_285 {dimension_numbers = #tpu.dot_dimension_numbers<[1], [0], [0], [1], [0, 0, 1, 1], [], []>} : vector<10x10xf32>, vector<10x128xf32>, vector<10x128xf32> -> vector<10x128xf32>
    %618 = arith.addf %615, %617 : vector<10x128xf32>
    %619 = math.tanh %618 : vector<10x128xf32>
    %620 = arith.subf %619, %604 : vector<10x128xf32>
    %621 = arith.mulf %613, %620 : vector<10x128xf32>
    %622 = arith.addf %604, %621 : vector<10x128xf32>
    %c15_286 = arith.constant 15 : index
    %c0_287 = arith.constant 0 : index
    %c0_288 = arith.constant 0 : index
    %623 = vector.load %arg10[%c15_286, %c0_287, %c0_288] : memref<20x10x128xf32, #tpu.memory_space<vmem>>, vector<1x10x128xf32>
    %624 = vector.shape_cast %623 : vector<1x10x128xf32> to vector<10x128xf32>
    %cst_289 = arith.constant dense<0.000000e+00> : vector<10x128xf32>
    %625 = tpu.matmul %0, %622, %cst_289 {dimension_numbers = #tpu.dot_dimension_numbers<[1], [0], [0], [1], [0, 0, 1, 1], [], []>} : vector<10x10xf32>, vector<10x128xf32>, vector<10x128xf32> -> vector<10x128xf32>
    %626 = arith.addf %624, %625 : vector<10x128xf32>
    %627 = arith.negf %626 : vector<10x128xf32>
    %628 = math.exp %627 : vector<10x128xf32>
    %cst_290 = arith.constant 1.000000e+00 : f32
    %629 = vector.broadcast %cst_290 : f32 to vector<10x128xf32>
    %630 = arith.addf %629, %628 : vector<10x128xf32>
    %631 = arith.divf %629, %630 : vector<10x128xf32>
    %c15_291 = arith.constant 15 : index
    %c0_292 = arith.constant 0 : index
    %c0_293 = arith.constant 0 : index
    %632 = vector.load %arg11[%c15_291, %c0_292, %c0_293] : memref<20x10x128xf32, #tpu.memory_space<vmem>>, vector<1x10x128xf32>
    %633 = vector.shape_cast %632 : vector<1x10x128xf32> to vector<10x128xf32>
    %634 = arith.mulf %631, %622 : vector<10x128xf32>
    %cst_294 = arith.constant dense<0.000000e+00> : vector<10x128xf32>
    %635 = tpu.matmul %1, %634, %cst_294 {dimension_numbers = #tpu.dot_dimension_numbers<[1], [0], [0], [1], [0, 0, 1, 1], [], []>} : vector<10x10xf32>, vector<10x128xf32>, vector<10x128xf32> -> vector<10x128xf32>
    %636 = arith.addf %633, %635 : vector<10x128xf32>
    %637 = math.tanh %636 : vector<10x128xf32>
    %638 = arith.subf %637, %622 : vector<10x128xf32>
    %639 = arith.mulf %631, %638 : vector<10x128xf32>
    %640 = arith.addf %622, %639 : vector<10x128xf32>
    %c16_295 = arith.constant 16 : index
    %c0_296 = arith.constant 0 : index
    %c0_297 = arith.constant 0 : index
    %641 = vector.load %arg10[%c16_295, %c0_296, %c0_297] : memref<20x10x128xf32, #tpu.memory_space<vmem>>, vector<1x10x128xf32>
    %642 = vector.shape_cast %641 : vector<1x10x128xf32> to vector<10x128xf32>
    %cst_298 = arith.constant dense<0.000000e+00> : vector<10x128xf32>
    %643 = tpu.matmul %0, %640, %cst_298 {dimension_numbers = #tpu.dot_dimension_numbers<[1], [0], [0], [1], [0, 0, 1, 1], [], []>} : vector<10x10xf32>, vector<10x128xf32>, vector<10x128xf32> -> vector<10x128xf32>
    %644 = arith.addf %642, %643 : vector<10x128xf32>
    %645 = arith.negf %644 : vector<10x128xf32>
    %646 = math.exp %645 : vector<10x128xf32>
    %cst_299 = arith.constant 1.000000e+00 : f32
    %647 = vector.broadcast %cst_299 : f32 to vector<10x128xf32>
    %648 = arith.addf %647, %646 : vector<10x128xf32>
    %649 = arith.divf %647, %648 : vector<10x128xf32>
    %c16_300 = arith.constant 16 : index
    %c0_301 = arith.constant 0 : index
    %c0_302 = arith.constant 0 : index
    %650 = vector.load %arg11[%c16_300, %c0_301, %c0_302] : memref<20x10x128xf32, #tpu.memory_space<vmem>>, vector<1x10x128xf32>
    %651 = vector.shape_cast %650 : vector<1x10x128xf32> to vector<10x128xf32>
    %652 = arith.mulf %649, %640 : vector<10x128xf32>
    %cst_303 = arith.constant dense<0.000000e+00> : vector<10x128xf32>
    %653 = tpu.matmul %1, %652, %cst_303 {dimension_numbers = #tpu.dot_dimension_numbers<[1], [0], [0], [1], [0, 0, 1, 1], [], []>} : vector<10x10xf32>, vector<10x128xf32>, vector<10x128xf32> -> vector<10x128xf32>
    %654 = arith.addf %651, %653 : vector<10x128xf32>
    %655 = math.tanh %654 : vector<10x128xf32>
    %656 = arith.subf %655, %640 : vector<10x128xf32>
    %657 = arith.mulf %649, %656 : vector<10x128xf32>
    %658 = arith.addf %640, %657 : vector<10x128xf32>
    %c17_304 = arith.constant 17 : index
    %c0_305 = arith.constant 0 : index
    %c0_306 = arith.constant 0 : index
    %659 = vector.load %arg10[%c17_304, %c0_305, %c0_306] : memref<20x10x128xf32, #tpu.memory_space<vmem>>, vector<1x10x128xf32>
    %660 = vector.shape_cast %659 : vector<1x10x128xf32> to vector<10x128xf32>
    %cst_307 = arith.constant dense<0.000000e+00> : vector<10x128xf32>
    %661 = tpu.matmul %0, %658, %cst_307 {dimension_numbers = #tpu.dot_dimension_numbers<[1], [0], [0], [1], [0, 0, 1, 1], [], []>} : vector<10x10xf32>, vector<10x128xf32>, vector<10x128xf32> -> vector<10x128xf32>
    %662 = arith.addf %660, %661 : vector<10x128xf32>
    %663 = arith.negf %662 : vector<10x128xf32>
    %664 = math.exp %663 : vector<10x128xf32>
    %cst_308 = arith.constant 1.000000e+00 : f32
    %665 = vector.broadcast %cst_308 : f32 to vector<10x128xf32>
    %666 = arith.addf %665, %664 : vector<10x128xf32>
    %667 = arith.divf %665, %666 : vector<10x128xf32>
    %c17_309 = arith.constant 17 : index
    %c0_310 = arith.constant 0 : index
    %c0_311 = arith.constant 0 : index
    %668 = vector.load %arg11[%c17_309, %c0_310, %c0_311] : memref<20x10x128xf32, #tpu.memory_space<vmem>>, vector<1x10x128xf32>
    %669 = vector.shape_cast %668 : vector<1x10x128xf32> to vector<10x128xf32>
    %670 = arith.mulf %667, %658 : vector<10x128xf32>
    %cst_312 = arith.constant dense<0.000000e+00> : vector<10x128xf32>
    %671 = tpu.matmul %1, %670, %cst_312 {dimension_numbers = #tpu.dot_dimension_numbers<[1], [0], [0], [1], [0, 0, 1, 1], [], []>} : vector<10x10xf32>, vector<10x128xf32>, vector<10x128xf32> -> vector<10x128xf32>
    %672 = arith.addf %669, %671 : vector<10x128xf32>
    %673 = math.tanh %672 : vector<10x128xf32>
    %674 = arith.subf %673, %658 : vector<10x128xf32>
    %675 = arith.mulf %667, %674 : vector<10x128xf32>
    %676 = arith.addf %658, %675 : vector<10x128xf32>
    %c18_313 = arith.constant 18 : index
    %c0_314 = arith.constant 0 : index
    %c0_315 = arith.constant 0 : index
    %677 = vector.load %arg10[%c18_313, %c0_314, %c0_315] : memref<20x10x128xf32, #tpu.memory_space<vmem>>, vector<1x10x128xf32>
    %678 = vector.shape_cast %677 : vector<1x10x128xf32> to vector<10x128xf32>
    %cst_316 = arith.constant dense<0.000000e+00> : vector<10x128xf32>
    %679 = tpu.matmul %0, %676, %cst_316 {dimension_numbers = #tpu.dot_dimension_numbers<[1], [0], [0], [1], [0, 0, 1, 1], [], []>} : vector<10x10xf32>, vector<10x128xf32>, vector<10x128xf32> -> vector<10x128xf32>
    %680 = arith.addf %678, %679 : vector<10x128xf32>
    %681 = arith.negf %680 : vector<10x128xf32>
    %682 = math.exp %681 : vector<10x128xf32>
    %cst_317 = arith.constant 1.000000e+00 : f32
    %683 = vector.broadcast %cst_317 : f32 to vector<10x128xf32>
    %684 = arith.addf %683, %682 : vector<10x128xf32>
    %685 = arith.divf %683, %684 : vector<10x128xf32>
    %c18_318 = arith.constant 18 : index
    %c0_319 = arith.constant 0 : index
    %c0_320 = arith.constant 0 : index
    %686 = vector.load %arg11[%c18_318, %c0_319, %c0_320] : memref<20x10x128xf32, #tpu.memory_space<vmem>>, vector<1x10x128xf32>
    %687 = vector.shape_cast %686 : vector<1x10x128xf32> to vector<10x128xf32>
    %688 = arith.mulf %685, %676 : vector<10x128xf32>
    %cst_321 = arith.constant dense<0.000000e+00> : vector<10x128xf32>
    %689 = tpu.matmul %1, %688, %cst_321 {dimension_numbers = #tpu.dot_dimension_numbers<[1], [0], [0], [1], [0, 0, 1, 1], [], []>} : vector<10x10xf32>, vector<10x128xf32>, vector<10x128xf32> -> vector<10x128xf32>
    %690 = arith.addf %687, %689 : vector<10x128xf32>
    %691 = math.tanh %690 : vector<10x128xf32>
    %692 = arith.subf %691, %676 : vector<10x128xf32>
    %693 = arith.mulf %685, %692 : vector<10x128xf32>
    %694 = arith.addf %676, %693 : vector<10x128xf32>
    %c19_322 = arith.constant 19 : index
    %c0_323 = arith.constant 0 : index
    %c0_324 = arith.constant 0 : index
    %695 = vector.load %arg10[%c19_322, %c0_323, %c0_324] : memref<20x10x128xf32, #tpu.memory_space<vmem>>, vector<1x10x128xf32>
    %696 = vector.shape_cast %695 : vector<1x10x128xf32> to vector<10x128xf32>
    %cst_325 = arith.constant dense<0.000000e+00> : vector<10x128xf32>
    %697 = tpu.matmul %0, %694, %cst_325 {dimension_numbers = #tpu.dot_dimension_numbers<[1], [0], [0], [1], [0, 0, 1, 1], [], []>} : vector<10x10xf32>, vector<10x128xf32>, vector<10x128xf32> -> vector<10x128xf32>
    %698 = arith.addf %696, %697 : vector<10x128xf32>
    %699 = arith.negf %698 : vector<10x128xf32>
    %700 = math.exp %699 : vector<10x128xf32>
    %cst_326 = arith.constant 1.000000e+00 : f32
    %701 = vector.broadcast %cst_326 : f32 to vector<10x128xf32>
    %702 = arith.addf %701, %700 : vector<10x128xf32>
    %703 = arith.divf %701, %702 : vector<10x128xf32>
    %c19_327 = arith.constant 19 : index
    %c0_328 = arith.constant 0 : index
    %c0_329 = arith.constant 0 : index
    %704 = vector.load %arg11[%c19_327, %c0_328, %c0_329] : memref<20x10x128xf32, #tpu.memory_space<vmem>>, vector<1x10x128xf32>
    %705 = vector.shape_cast %704 : vector<1x10x128xf32> to vector<10x128xf32>
    %706 = arith.mulf %703, %694 : vector<10x128xf32>
    %cst_330 = arith.constant dense<0.000000e+00> : vector<10x128xf32>
    %707 = tpu.matmul %1, %706, %cst_330 {dimension_numbers = #tpu.dot_dimension_numbers<[1], [0], [0], [1], [0, 0, 1, 1], [], []>} : vector<10x10xf32>, vector<10x128xf32>, vector<10x128xf32> -> vector<10x128xf32>
    %708 = arith.addf %705, %707 : vector<10x128xf32>
    %709 = math.tanh %708 : vector<10x128xf32>
    %710 = arith.subf %709, %694 : vector<10x128xf32>
    %711 = arith.mulf %703, %710 : vector<10x128xf32>
    %712 = arith.addf %694, %711 : vector<10x128xf32>
    %c0_331 = arith.constant 0 : index
    %c0_332 = arith.constant 0 : index
    %713 = vector.load %arg7[%c0_331, %c0_332] : memref<10x1xf32, #tpu.memory_space<vmem>>, vector<10x1xf32>
    %714 = vector.broadcast %713 : vector<10x1xf32> to vector<10x128xf32>
    %715 = arith.mulf %712, %714 : vector<10x128xf32>
    %cst_333 = arith.constant dense<0.000000e+00> : vector<128xf32>
    %716 = vector.multi_reduction <add>, %715, %cst_333 [0] : vector<10x128xf32> to vector<128xf32>
    %717 = vector.shape_cast %716 : vector<128xf32> to vector<1x128xf32>
    %c0_334 = arith.constant 0 : index
    %c0_335 = arith.constant 0 : index
    %718 = vector.load %arg8[%c0_334, %c0_335] : memref<1x1xf32, #tpu.memory_space<vmem>>, vector<1x1xf32>
    %719 = vector.broadcast %718 : vector<1x1xf32> to vector<1x128xf32>
    %720 = arith.addf %717, %719 : vector<1x128xf32>
    %c0_336 = arith.constant 0 : index
    %c0_337 = arith.constant 0 : index
    %721 = vector.load %arg9[%c0_336, %c0_337] : memref<1x128xf32, #tpu.memory_space<vmem>>, vector<1x128xf32>
    tpu.vector_store %arg9[%c0_336, %c0_337], %720 {strides = array<i32>} : memref<1x128xf32, #tpu.memory_space<vmem>>, vector<1x128xf32>,
    return
  }
  func.func @transform_0(%arg0: i32) -> (i32, i32) {
    %c0_i32 = arith.constant 0 : i32
    %c0_i32_0 = arith.constant 0 : i32
    return %c0_i32, %arg0 : i32, i32
  }
  func.func @transform_1(%arg0: i32) -> (i32, i32) {
    %c0_i32 = arith.constant 0 : i32
    %c0_i32_0 = arith.constant 0 : i32
    return %c0_i32, %arg0 : i32, i32
  }
  func.func @transform_2(%arg0: i32) -> (i32, i32, i32) {
    %c0_i32 = arith.constant 0 : i32
    %c0_i32_0 = arith.constant 0 : i32
    %c0_i32_1 = arith.constant 0 : i32
    %c0_i32_2 = arith.constant 0 : i32
    return %c0_i32, %c0_i32_0, %c0_i32_1 : i32, i32, i32
  }
  func.func @transform_3(%arg0: i32) -> (i32, i32, i32) {
    %c0_i32 = arith.constant 0 : i32
    %c0_i32_0 = arith.constant 0 : i32
    %c0_i32_1 = arith.constant 0 : i32
    %c0_i32_2 = arith.constant 0 : i32
    return %c0_i32, %c0_i32_0, %c0_i32_1 : i32, i32, i32
  }
  func.func @transform_4(%arg0: i32) -> (i32, i32) {
    %c0_i32 = arith.constant 0 : i32
    %c0_i32_0 = arith.constant 0 : i32
    %c0_i32_1 = arith.constant 0 : i32
    return %c0_i32, %c0_i32_0 : i32, i32
  }
  func.func @transform_5(%arg0: i32) -> (i32, i32) {
    %c0_i32 = arith.constant 0 : i32
    %c0_i32_0 = arith.constant 0 : i32
    %c0_i32_1 = arith.constant 0 : i32
    return %c0_i32, %c0_i32_0 : i32, i32
  }
  func.func @transform_6(%arg0: i32) -> (i32, i32) {
    %c0_i32 = arith.constant 0 : i32
    %c0_i32_0 = arith.constant 0 : i32
    %c0_i32_1 = arith.constant 0 : i32
    return %c0_i32, %c0_i32_0 : i32, i32
  }
  func.func @transform_7(%arg0: i32) -> (i32, i32) {
    %c0_i32 = arith.constant 0 : i32
    %c0_i32_0 = arith.constant 0 : i32
    %c0_i32_1 = arith.constant 0 : i32
    return %c0_i32, %c0_i32_0 : i32, i32
  }
  func.func @transform_8(%arg0: i32) -> (i32, i32) {
    %c0_i32 = arith.constant 0 : i32
    %c0_i32_0 = arith.constant 0 : i32
    return %c0_i32, %arg0 : i32, i32
  }
}

</mosaic_0001>

<llo_original>
// kernel: tpu_custom_call.1
$region0: #{tpu_custom_call.1}
  #allocation0 [shape = 'u32[]', space=smem, size = 0x4, offset = 0x4, fixed_abs, tag = 'smem constant byte address 0x4 - core index']
  #allocation1 [shape = 'u32[144,128]{1,0:T(1,128)}', space=vmem, size = 0x12000, scoped, tag = 'internal scratch']
  #allocation2 [shape = 'f32[20,10,128]{2,1,0:T(8,128)}', space=vmem, size = 0x28000, scoped, tag = 'scratch operand']
  #allocation3 [shape = 'f32[20,10,128]{2,1,0:T(8,128)}', space=vmem, size = 0x28000, scoped, tag = 'scratch operand']
  #allocation4 [shape = 'f32[1,1]{1,0:T(1,128)S(1)}', space=vmem, size = 0x200, scoped, tag = 'scoped memory for tpu_custom_call.1']
  %s0 = inlined_call_operand.vmem [shape: f32[20,128], index: 0, kind: input, shape index: {}]
  %s1 = inlined_call_operand.vmem [shape: f32[10,128], index: 1, kind: input, shape index: {}]
  %s2 = inlined_call_operand.vmem [shape: f32[2,10,1], index: 2, kind: input, shape index: {}]
  %s3 = inlined_call_operand.vmem [shape: f32[2,10,1], index: 3, kind: input, shape index: {}]
  %s4 = inlined_call_operand.vmem [shape: f32[10,10], index: 4, kind: input, shape index: {}]
  %s5 = inlined_call_operand.vmem [shape: f32[10,10], index: 5, kind: input, shape index: {}]
  %s6 = inlined_call_operand.vmem [shape: f32[10,1], index: 6, kind: input, shape index: {}]
  %s7 = inlined_call_operand.<no memory space> [shape: f32[1,1], index: 7, kind: input, shape index: {}]
  %s8 = inlined_call_operand.hbm [shape: f32[1,128], index: 8, kind: output, shape index: {}]
  %s9 = sld [smem:[#allocation0]]
  $region42: #{tpu_custom_call.1} parent=0
    _
  %s11 = ssub.s32 1, %s9
  %s12 = scalar_select 0, %s11, %s9
  %v13 = vstv %s7
  %14 = vst [vmem:[#allocation4] sm:$0x1] %v13
  $region1: #{tpu_custom_call.1} parent=0
    #allocation5 [shape = 'u8[512]{0}', space=vmem, size = 0x400, scoped, tag = 'output window, operand 0, single buffered']
    #allocation6 [shape = 's32[1]{0}', space=sflag, size = 0x4, scoped, tag = 'scoped memory for tpu_custom_call.1']
    %15 = vsyncpa [#allocation6], 0
    // Predicated region
    $region2: #{tpu_custom_call.1} parent=1 // pred_check
      _
    $region3: #{tpu_custom_call.1} parent=1 // pred_check_branch
      %17 = sbr.rel (0) target = $region5
    $region4: #{tpu_custom_call.1} parent=1 // pred_region
      _
    $region5: #{tpu_custom_call.1} parent=1 // pred_fallthru
      _
    // Predicated region
    $region6: #{tpu_custom_call.1} parent=1 // pred_check
      _
    $region7: #{tpu_custom_call.1} parent=1 // pred_check_branch
      %19 = sbr.rel (0) target = $region9
    $region8: #{tpu_custom_call.1} parent=1 // pred_region
      _
    $region9: #{tpu_custom_call.1} parent=1 // pred_fallthru
      _
    // Predicated region
    $region10: #{tpu_custom_call.1} parent=1 // pred_check
      _
    $region11: #{tpu_custom_call.1} parent=1 // pred_check_branch
      %21 = sbr.rel (0) target = $region13
    $region12: #{tpu_custom_call.1} parent=1 // pred_region
      _
    $region13: #{tpu_custom_call.1} parent=1 // pred_fallthru
      _
    // Predicated region
    $region14: #{tpu_custom_call.1} parent=1 // pred_check
      _
    $region15: #{tpu_custom_call.1} parent=1 // pred_check_branch
      %23 = sbr.rel (0) target = $region17
    $region16: #{tpu_custom_call.1} parent=1 // pred_region
      _
    $region17: #{tpu_custom_call.1} parent=1 // pred_fallthru
      _
    // Predicated region
    $region18: #{tpu_custom_call.1} parent=1 // pred_check
      _
    $region19: #{tpu_custom_call.1} parent=1 // pred_check_branch
      %25 = sbr.rel (0) target = $region21
    $region20: #{tpu_custom_call.1} parent=1 // pred_region
      _
    $region21: #{tpu_custom_call.1} parent=1 // pred_fallthru
      _
    // Predicated region
    $region22: #{tpu_custom_call.1} parent=1 // pred_check
      _
    $region23: #{tpu_custom_call.1} parent=1 // pred_check_branch
      %27 = sbr.rel (0) target = $region25
    $region24: #{tpu_custom_call.1} parent=1 // pred_region
      _
    $region25: #{tpu_custom_call.1} parent=1 // pred_fallthru
      _
    // Predicated region
    $region26: #{tpu_custom_call.1} parent=1 // pred_check
      _
    $region27: #{tpu_custom_call.1} parent=1 // pred_check_branch
      %29 = sbr.rel (0) target = $region29
    $region28: #{tpu_custom_call.1} parent=1 // pred_region
      _
    $region29: #{tpu_custom_call.1} parent=1 // pred_fallthru
      _
    // Predicated region
    $region30: #{tpu_custom_call.1} parent=1 // pred_check
      _
    $region31: #{tpu_custom_call.1} parent=1 // pred_check_branch
      %31 = sbr.rel (0) target = $region33
    $region32: #{tpu_custom_call.1} parent=1 // pred_region
      _
    $region33: #{tpu_custom_call.1} parent=1 // pred_fallthru
      _
    %v32 = vld [vmem:[%s4] sm:$0xff]
    %v33 = vld [vmem:[%s4 + $0x8] sm:$0x3]
    %v34 = vld [vmem:[%s5] sm:$0xff]
    %v35 = vld [vmem:[%s5 + $0x8] sm:$0x3]
    %v36 = vld [vmem:[%s2] sm:$0xff]
    %v37 = vld [vmem:[%s2 + $0x8] sm:$0x3]
    %v38 = vld [vmem:[%s2 + $0x10] sm:$0xff]
    %v39 = vld [vmem:[%s2 + $0x18] sm:$0x3]
    %v40 = vld [vmem:[%s3] sm:$0xff]
    %v41 = vld [vmem:[%s3 + $0x8] sm:$0x3]
    %v42 = vld [vmem:[%s3 + $0x10] sm:$0xff]
    %v43 = vld [vmem:[%s3 + $0x18] sm:$0x3]
    %v44 = vld [vmem:[%s0] sm:$0x1]
    %46 = vset.pattern.permute.xlu0 0
    %47 = vperm.xlu0 %46, %v36
    %v48 = vpop.permute.xlu0 %47
    %51 = vset.pattern.permute.xlu0 0
    %52 = vperm.xlu0 %51, %v37
    %v53 = vpop.permute.xlu0 %52
    %v55 = vlaneseq
    %v56 = vshrl.u32 %v55, 7
    %v57 = vsub.s32 0, %v56
    %v58 = vrot.slane %v44, %v57
    %v59 = vmul.f32 %v48, %v58
    %v60 = vmul.f32 %v53, %v58
    %62 = vset.pattern.permute.xlu0 0
    %63 = vperm.xlu0 %62, %v40
    %v64 = vpop.permute.xlu0 %63
    %67 = vset.pattern.permute.xlu0 0
    %68 = vperm.xlu0 %67, %v41
    %v69 = vpop.permute.xlu0 %68
    %v71 = vadd.f32 %v59, %v64
    %v72 = vadd.f32 %v60, %v69
    %73 = vst [vmem:[#allocation2] sm:$0xff] %v71
    %74 = vst [vmem:[#allocation2 + $0x8] sm:$0x3] %v72
    %76 = vset.pattern.permute.xlu0 0
    %77 = vperm.xlu0 %76, %v38
    %v78 = vpop.permute.xlu0 %77
    %81 = vset.pattern.permute.xlu0 0
    %82 = vperm.xlu0 %81, %v39
    %v83 = vpop.permute.xlu0 %82
    %v85 = vmul.f32 %v78, %v58
    %v86 = vmul.f32 %v83, %v58
    %88 = vset.pattern.permute.xlu0 0
    %89 = vperm.xlu0 %88, %v42
    %v90 = vpop.permute.xlu0 %89
    %93 = vset.pattern.permute.xlu0 0
    %94 = vperm.xlu0 %93, %v43
    %v95 = vpop.permute.xlu0 %94
    %v97 = vadd.f32 %v85, %v90
    %v98 = vadd.f32 %v86, %v95
    %99 = vst [vmem:[#allocation3] sm:$0xff] %v97
    %100 = vst [vmem:[#allocation3 + $0x8] sm:$0x3] %v98
    %v101 = vld [vmem:[%s0 + $0x1] sm:$0x1]
    %v102 = vlaneseq
    %v103 = vshrl.u32 %v102, 7
    %v104 = vsub.s32 0, %v103
    %v105 = vrot.slane %v101, %v104
    %v106 = vmul.f32 %v48, %v105
    %v107 = vmul.f32 %v53, %v105
    %v108 = vadd.f32 %v106, %v64
    %v109 = vadd.f32 %v107, %v69
    %s110 = scalar_lea.vmem [#allocation2], 16
    %111 = vst [vmem:[%s110] sm:$0xff] %v108
    %112 = vst [vmem:[%s110 + $0x8] sm:$0x3] %v109
    %v113 = vmul.f32 %v78, %v105
    %v114 = vmul.f32 %v83, %v105
    %v115 = vadd.f32 %v113, %v90
    %v116 = vadd.f32 %v114, %v95
    %s117 = scalar_lea.vmem [#allocation3], 16
    %118 = vst [vmem:[%s117] sm:$0xff] %v115
    %119 = vst [vmem:[%s117 + $0x8] sm:$0x3] %v116
    %v120 = vld [vmem:[%s0 + $0x2] sm:$0x1]
    %v121 = vlaneseq
    %v122 = vshrl.u32 %v121, 7
    %v123 = vsub.s32 0, %v122
    %v124 = vrot.slane %v120, %v123
    %v125 = vmul.f32 %v48, %v124
    %v126 = vmul.f32 %v53, %v124
    %v127 = vadd.f32 %v125, %v64
    %v128 = vadd.f32 %v126, %v69
    %s129 = scalar_lea.vmem [#allocation2], 32
    %130 = vst [vmem:[%s129] sm:$0xff] %v127
    %131 = vst [vmem:[%s129 + $0x8] sm:$0x3] %v128
    %v132 = vmul.f32 %v78, %v124
    %v133 = vmul.f32 %v83, %v124
    %v134 = vadd.f32 %v132, %v90
    %v135 = vadd.f32 %v133, %v95
    %s136 = scalar_lea.vmem [#allocation3], 32
    %137 = vst [vmem:[%s136] sm:$0xff] %v134
    %138 = vst [vmem:[%s136 + $0x8] sm:$0x3] %v135
    %v139 = vld [vmem:[%s0 + $0x3] sm:$0x1]
    %v140 = vlaneseq
    %v141 = vshrl.u32 %v140, 7
    %v142 = vsub.s32 0, %v141
    %v143 = vrot.slane %v139, %v142
    %v144 = vmul.f32 %v48, %v143
    %v145 = vmul.f32 %v53, %v143
    %v146 = vadd.f32 %v144, %v64
    %v147 = vadd.f32 %v145, %v69
    %s148 = scalar_lea.vmem [#allocation2], 48
    %149 = vst [vmem:[%s148] sm:$0xff] %v146
    %150 = vst [vmem:[%s148 + $0x8] sm:$0x3] %v147
    %v151 = vmul.f32 %v78, %v143
    %v152 = vmul.f32 %v83, %v143
    %v153 = vadd.f32 %v151, %v90
    %v154 = vadd.f32 %v152, %v95
    %s155 = scalar_lea.vmem [#allocation3], 48
    %156 = vst [vmem:[%s155] sm:$0xff] %v153
    %157 = vst [vmem:[%s155 + $0x8] sm:$0x3] %v154
    %v158 = vld [vmem:[%s0 + $0x4] sm:$0x1]
    %v159 = vlaneseq
    %v160 = vshrl.u32 %v159, 7
    %v161 = vsub.s32 0, %v160
    %v162 = vrot.slane %v158, %v161
    %v163 = vmul.f32 %v48, %v162
    %v164 = vmul.f32 %v53, %v162
    %v165 = vadd.f32 %v163, %v64
    %v166 = vadd.f32 %v164, %v69
    %s167 = scalar_lea.vmem [#allocation2], 64
    %168 = vst [vmem:[%s167] sm:$0xff] %v165
    %169 = vst [vmem:[%s167 + $0x8] sm:$0x3] %v166
    %v170 = vmul.f32 %v78, %v162
    %v171 = vmul.f32 %v83, %v162
    %v172 = vadd.f32 %v170, %v90
    %v173 = vadd.f32 %v171, %v95
    %s174 = scalar_lea.vmem [#allocation3], 64
    %175 = vst [vmem:[%s174] sm:$0xff] %v172
    %176 = vst [vmem:[%s174 + $0x8] sm:$0x3] %v173
    %v177 = vld [vmem:[%s0 + $0x5] sm:$0x1]
    %v178 = vlaneseq
    %v179 = vshrl.u32 %v178, 7
    %v180 = vsub.s32 0, %v179
    %v181 = vrot.slane %v177, %v180
    %v182 = vmul.f32 %v48, %v181
    %v183 = vmul.f32 %v53, %v181
    %v184 = vadd.f32 %v182, %v64
    %v185 = vadd.f32 %v183, %v69
    %s186 = scalar_lea.vmem [#allocation2], 80
    %187 = vst [vmem:[%s186] sm:$0xff] %v184
    %188 = vst [vmem:[%s186 + $0x8] sm:$0x3] %v185
    %v189 = vmul.f32 %v78, %v181
    %v190 = vmul.f32 %v83, %v181
    %v191 = vadd.f32 %v189, %v90
    %v192 = vadd.f32 %v190, %v95
    %s193 = scalar_lea.vmem [#allocation3], 80
    %194 = vst [vmem:[%s193] sm:$0xff] %v191
    %195 = vst [vmem:[%s193 + $0x8] sm:$0x3] %v192
    %v196 = vld [vmem:[%s0 + $0x6] sm:$0x1]
    %v197 = vlaneseq
    %v198 = vshrl.u32 %v197, 7
    %v199 = vsub.s32 0, %v198
    %v200 = vrot.slane %v196, %v199
    %v201 = vmul.f32 %v48, %v200
    %v202 = vmul.f32 %v53, %v200
    %v203 = vadd.f32 %v201, %v64
    %v204 = vadd.f32 %v202, %v69
    %s205 = scalar_lea.vmem [#allocation2], 96
    %206 = vst [vmem:[%s205] sm:$0xff] %v203
    %207 = vst [vmem:[%s205 + $0x8] sm:$0x3] %v204
    %v208 = vmul.f32 %v78, %v200
    %v209 = vmul.f32 %v83, %v200
    %v210 = vadd.f32 %v208, %v90
    %v211 = vadd.f32 %v209, %v95
    %s212 = scalar_lea.vmem [#allocation3], 96
    %213 = vst [vmem:[%s212] sm:$0xff] %v210
    %214 = vst [vmem:[%s212 + $0x8] sm:$0x3] %v211
    %v215 = vld [vmem:[%s0 + $0x7] sm:$0x1]
    %v216 = vlaneseq
    %v217 = vshrl.u32 %v216, 7
    %v218 = vsub.s32 0, %v217
    %v219 = vrot.slane %v215, %v218
    %v220 = vmul.f32 %v48, %v219
    %v221 = vmul.f32 %v53, %v219
    %v222 = vadd.f32 %v220, %v64
    %v223 = vadd.f32 %v221, %v69
    %s224 = scalar_lea.vmem [#allocation2], 112
    %225 = vst [vmem:[%s224] sm:$0xff] %v222
    %226 = vst [vmem:[%s224 + $0x8] sm:$0x3] %v223
    %v227 = vmul.f32 %v78, %v219
    %v228 = vmul.f32 %v83, %v219
    %v229 = vadd.f32 %v227, %v90
    %v230 = vadd.f32 %v228, %v95
    %s231 = scalar_lea.vmem [#allocation3], 112
    %232 = vst [vmem:[%s231] sm:$0xff] %v229
    %233 = vst [vmem:[%s231 + $0x8] sm:$0x3] %v230
    %v234 = vld [vmem:[%s0 + $0x8] sm:$0x1]
    %v235 = vlaneseq
    %v236 = vshrl.u32 %v235, 7
    %v237 = vsub.s32 0, %v236
    %v238 = vrot.slane %v234, %v237
    %v239 = vmul.f32 %v48, %v238
    %v240 = vmul.f32 %v53, %v238
    %v241 = vadd.f32 %v239, %v64
    %v242 = vadd.f32 %v240, %v69
    %s243 = scalar_lea.vmem [#allocation2], 128
    %244 = vst [vmem:[%s243] sm:$0xff] %v241
    %245 = vst [vmem:[%s243 + $0x8] sm:$0x3] %v242
    %v246 = vmul.f32 %v78, %v238
    %v247 = vmul.f32 %v83, %v238
    %v248 = vadd.f32 %v246, %v90
    %v249 = vadd.f32 %v247, %v95
    %s250 = scalar_lea.vmem [#allocation3], 128
    %251 = vst [vmem:[%s250] sm:$0xff] %v248
    %252 = vst [vmem:[%s250 + $0x8] sm:$0x3] %v249
    %v253 = vld [vmem:[%s0 + $0x9] sm:$0x1]
    %v254 = vlaneseq
    %v255 = vshrl.u32 %v254, 7
    %v256 = vsub.s32 0, %v255
    %v257 = vrot.slane %v253, %v256
    %v258 = vmul.f32 %v48, %v257
    %v259 = vmul.f32 %v53, %v257
    %v260 = vadd.f32 %v258, %v64
    %v261 = vadd.f32 %v259, %v69
    %s262 = scalar_lea.vmem [#allocation2], 144
    %263 = vst [vmem:[%s262] sm:$0xff] %v260
    %264 = vst [vmem:[%s262 + $0x8] sm:$0x3] %v261
    %v265 = vmul.f32 %v78, %v257
    %v266 = vmul.f32 %v83, %v257
    %v267 = vadd.f32 %v265, %v90
    %v268 = vadd.f32 %v266, %v95
    %s269 = scalar_lea.vmem [#allocation3], 144
    %270 = vst [vmem:[%s269] sm:$0xff] %v267
    %271 = vst [vmem:[%s269 + $0x8] sm:$0x3] %v268
    %v272 = vld [vmem:[%s0 + $0xa] sm:$0x1]
    %v273 = vlaneseq
    %v274 = vshrl.u32 %v273, 7
    %v275 = vsub.s32 0, %v274
    %v276 = vrot.slane %v272, %v275
    %v277 = vmul.f32 %v48, %v276
    %v278 = vmul.f32 %v53, %v276
    %v279 = vadd.f32 %v277, %v64
    %v280 = vadd.f32 %v278, %v69
    %s281 = scalar_lea.vmem [#allocation2], 160
    %282 = vst [vmem:[%s281] sm:$0xff] %v279
    %283 = vst [vmem:[%s281 + $0x8] sm:$0x3] %v280
    %v284 = vmul.f32 %v78, %v276
    %v285 = vmul.f32 %v83, %v276
    %v286 = vadd.f32 %v284, %v90
    %v287 = vadd.f32 %v285, %v95
    %s288 = scalar_lea.vmem [#allocation3], 160
    %289 = vst [vmem:[%s288] sm:$0xff] %v286
    %290 = vst [vmem:[%s288 + $0x8] sm:$0x3] %v287
    %v291 = vld [vmem:[%s0 + $0xb] sm:$0x1]
    %v292 = vlaneseq
    %v293 = vshrl.u32 %v292, 7
    %v294 = vsub.s32 0, %v293
    %v295 = vrot.slane %v291, %v294
    %v296 = vmul.f32 %v48, %v295
    %v297 = vmul.f32 %v53, %v295
    %v298 = vadd.f32 %v296, %v64
    %v299 = vadd.f32 %v297, %v69
    %s300 = scalar_lea.vmem [#allocation2], 176
    %301 = vst [vmem:[%s300] sm:$0xff] %v298
    %302 = vst [vmem:[%s300 + $0x8] sm:$0x3] %v299
    %v303 = vmul.f32 %v78, %v295
    %v304 = vmul.f32 %v83, %v295
    %v305 = vadd.f32 %v303, %v90
    %v306 = vadd.f32 %v304, %v95
    %s307 = scalar_lea.vmem [#allocation3], 176
    %308 = vst [vmem:[%s307] sm:$0xff] %v305
    %309 = vst [vmem:[%s307 + $0x8] sm:$0x3] %v306
    %v310 = vld [vmem:[%s0 + $0xc] sm:$0x1]
    %v311 = vlaneseq
    %v312 = vshrl.u32 %v311, 7
    %v313 = vsub.s32 0, %v312
    %v314 = vrot.slane %v310, %v313
    %v315 = vmul.f32 %v48, %v314
    %v316 = vmul.f32 %v53, %v314
    %v317 = vadd.f32 %v315, %v64
    %v318 = vadd.f32 %v316, %v69
    %s319 = scalar_lea.vmem [#allocation2], 192
    %320 = vst [vmem:[%s319] sm:$0xff] %v317
    %321 = vst [vmem:[%s319 + $0x8] sm:$0x3] %v318
    %v322 = vmul.f32 %v78, %v314
    %v323 = vmul.f32 %v83, %v314
    %v324 = vadd.f32 %v322, %v90
    %v325 = vadd.f32 %v323, %v95
    %s326 = scalar_lea.vmem [#allocation3], 192
    %327 = vst [vmem:[%s326] sm:$0xff] %v324
    %328 = vst [vmem:[%s326 + $0x8] sm:$0x3] %v325
    %v329 = vld [vmem:[%s0 + $0xd] sm:$0x1]
    %v330 = vlaneseq
    %v331 = vshrl.u32 %v330, 7
    %v332 = vsub.s32 0, %v331
    %v333 = vrot.slane %v329, %v332
    %v334 = vmul.f32 %v48, %v333
    %v335 = vmul.f32 %v53, %v333
    %v336 = vadd.f32 %v334, %v64
    %v337 = vadd.f32 %v335, %v69
    %s338 = scalar_lea.vmem [#allocation2], 208
    %339 = vst [vmem:[%s338] sm:$0xff] %v336
    %340 = vst [vmem:[%s338 + $0x8] sm:$0x3] %v337
    %v341 = vmul.f32 %v78, %v333
    %v342 = vmul.f32 %v83, %v333
    %v343 = vadd.f32 %v341, %v90
    %v344 = vadd.f32 %v342, %v95
    %s345 = scalar_lea.vmem [#allocation3], 208
    %346 = vst [vmem:[%s345] sm:$0xff] %v343
    %347 = vst [vmem:[%s345 + $0x8] sm:$0x3] %v344
    %v348 = vld [vmem:[%s0 + $0xe] sm:$0x1]
    %v349 = vlaneseq
    %v350 = vshrl.u32 %v349, 7
    %v351 = vsub.s32 0, %v350
    %v352 = vrot.slane %v348, %v351
    %v353 = vmul.f32 %v48, %v352
    %v354 = vmul.f32 %v53, %v352
    %v355 = vadd.f32 %v353, %v64
    %v356 = vadd.f32 %v354, %v69
    %s357 = scalar_lea.vmem [#allocation2], 224
    %358 = vst [vmem:[%s357] sm:$0xff] %v355
    %359 = vst [vmem:[%s357 + $0x8] sm:$0x3] %v356
    %v360 = vmul.f32 %v78, %v352
    %v361 = vmul.f32 %v83, %v352
    %v362 = vadd.f32 %v360, %v90
    %v363 = vadd.f32 %v361, %v95
    %s364 = scalar_lea.vmem [#allocation3], 224
    %365 = vst [vmem:[%s364] sm:$0xff] %v362
    %366 = vst [vmem:[%s364 + $0x8] sm:$0x3] %v363
    %v367 = vld [vmem:[%s0 + $0xf] sm:$0x1]
    %v368 = vlaneseq
    %v369 = vshrl.u32 %v368, 7
    %v370 = vsub.s32 0, %v369
    %v371 = vrot.slane %v367, %v370
    %v372 = vmul.f32 %v48, %v371
    %v373 = vmul.f32 %v53, %v371
    %v374 = vadd.f32 %v372, %v64
    %v375 = vadd.f32 %v373, %v69
    %s376 = scalar_lea.vmem [#allocation2], 240
    %377 = vst [vmem:[%s376] sm:$0xff] %v374
    %378 = vst [vmem:[%s376 + $0x8] sm:$0x3] %v375
    %v379 = vmul.f32 %v78, %v371
    %v380 = vmul.f32 %v83, %v371
    %v381 = vadd.f32 %v379, %v90
    %v382 = vadd.f32 %v380, %v95
    %s383 = scalar_lea.vmem [#allocation3], 240
    %384 = vst [vmem:[%s383] sm:$0xff] %v381
    %385 = vst [vmem:[%s383 + $0x8] sm:$0x3] %v382
    %v386 = vld [vmem:[%s0 + $0x10] sm:$0x1]
    %v387 = vlaneseq
    %v388 = vshrl.u32 %v387, 7
    %v389 = vsub.s32 0, %v388
    %v390 = vrot.slane %v386, %v389
    %v391 = vmul.f32 %v48, %v390
    %v392 = vmul.f32 %v53, %v390
    %v393 = vadd.f32 %v391, %v64
    %v394 = vadd.f32 %v392, %v69
    %s395 = scalar_lea.vmem [#allocation2], 256
    %396 = vst [vmem:[%s395] sm:$0xff] %v393
    %397 = vst [vmem:[%s395 + $0x8] sm:$0x3] %v394
    %v398 = vmul.f32 %v78, %v390
    %v399 = vmul.f32 %v83, %v390
    %v400 = vadd.f32 %v398, %v90
    %v401 = vadd.f32 %v399, %v95
    %s402 = scalar_lea.vmem [#allocation3], 256
    %403 = vst [vmem:[%s402] sm:$0xff] %v400
    %404 = vst [vmem:[%s402 + $0x8] sm:$0x3] %v401
    %v405 = vld [vmem:[%s0 + $0x11] sm:$0x1]
    %v406 = vlaneseq
    %v407 = vshrl.u32 %v406, 7
    %v408 = vsub.s32 0, %v407
    %v409 = vrot.slane %v405, %v408
    %v410 = vmul.f32 %v48, %v409
    %v411 = vmul.f32 %v53, %v409
    %v412 = vadd.f32 %v410, %v64
    %v413 = vadd.f32 %v411, %v69
    %s414 = scalar_lea.vmem [#allocation2], 272
    %415 = vst [vmem:[%s414] sm:$0xff] %v412
    %416 = vst [vmem:[%s414 + $0x8] sm:$0x3] %v413
    %v417 = vmul.f32 %v78, %v409
    %v418 = vmul.f32 %v83, %v409
    %v419 = vadd.f32 %v417, %v90
    %v420 = vadd.f32 %v418, %v95
    %s421 = scalar_lea.vmem [#allocation3], 272
    %422 = vst [vmem:[%s421] sm:$0xff] %v419
    %423 = vst [vmem:[%s421 + $0x8] sm:$0x3] %v420
    %v424 = vld [vmem:[%s0 + $0x12] sm:$0x1]
    %v425 = vlaneseq
    %v426 = vshrl.u32 %v425, 7
    %v427 = vsub.s32 0, %v426
    %v428 = vrot.slane %v424, %v427
    %v429 = vmul.f32 %v48, %v428
    %v430 = vmul.f32 %v53, %v428
    %v431 = vadd.f32 %v429, %v64
    %v432 = vadd.f32 %v430, %v69
    %s433 = scalar_lea.vmem [#allocation2], 288
    %434 = vst [vmem:[%s433] sm:$0xff] %v431
    %435 = vst [vmem:[%s433 + $0x8] sm:$0x3] %v432
    %v436 = vmul.f32 %v78, %v428
    %v437 = vmul.f32 %v83, %v428
    %v438 = vadd.f32 %v436, %v90
    %v439 = vadd.f32 %v437, %v95
    %s440 = scalar_lea.vmem [#allocation3], 288
    %441 = vst [vmem:[%s440] sm:$0xff] %v438
    %442 = vst [vmem:[%s440 + $0x8] sm:$0x3] %v439
    %v443 = vld [vmem:[%s0 + $0x13] sm:$0x1]
    %v444 = vlaneseq
    %v445 = vshrl.u32 %v444, 7
    %v446 = vsub.s32 0, %v445
    %v447 = vrot.slane %v443, %v446
    %v448 = vmul.f32 %v48, %v447
    %v449 = vmul.f32 %v53, %v447
    %v450 = vadd.f32 %v448, %v64
    %v451 = vadd.f32 %v449, %v69
    %s452 = scalar_lea.vmem [#allocation2], 304
    %453 = vst [vmem:[%s452] sm:$0xff] %v450
    %454 = vst [vmem:[%s452 + $0x8] sm:$0x3] %v451
    %v455 = vmul.f32 %v78, %v447
    %v456 = vmul.f32 %v83, %v447
    %v457 = vadd.f32 %v455, %v90
    %v458 = vadd.f32 %v456, %v95
    %s459 = scalar_lea.vmem [#allocation3], 304
    %460 = vst [vmem:[%s459] sm:$0xff] %v457
    %461 = vst [vmem:[%s459 + $0x8] sm:$0x3] %v458
    %v462 = vld [vmem:[%s1] sm:$0xff]
    %v463 = vld [vmem:[%s1 + $0x8] sm:$0x3]
    %v464 = vld [vmem:[#allocation2] sm:$0xff]
    %v465 = vld [vmem:[#allocation2 + $0x8] sm:$0x3]
    %vm466 = vcmask 80896
    %v468 = vsel %vm466, %v32, 0
    %v471 = vsel %vm466, %v33, 0
    %vm473 = vcmask 1041408
    %v475 = vsel %vm473, %v463, 0
    %477 = vmatprep.subr.mxu0 0.0
    %478 = vmatpush1.msra.mxu0 %v462
    %479 = vmatprep.subr.mxu0 0.0
    %480 = vmatpush1.msra.mxu0 %v475
    %481 = vmatprep.subr.mxu0 0.0
    %482 = vmatpush1.msra.mxu0 0.0
    %483 = vmatprep.subr.mxu0 0.0
    %484 = vmatpush1.msra.mxu0 0.0
    %485 = vmatprep.subr.mxu0 0.0
    %486 = vmatpush1.msra.mxu0 0.0
    %487 = vmatprep.subr.mxu0 0.0
    %488 = vmatpush1.msra.mxu0 0.0
    %489 = vmatprep.subr.mxu0 0.0
    %490 = vmatpush1.msra.mxu0 0.0
    %491 = vmatprep.subr.mxu0 0.0
    %492 = vmatpush1.msra.mxu0 0.0
    %493 = vmatprep.subr.mxu0 0.0
    %494 = vmatpush1.msra.mxu0 0.0
    %495 = vmatprep.subr.mxu0 0.0
    %496 = vmatpush1.msra.mxu0 0.0
    %497 = vmatprep.subr.mxu0 0.0
    %498 = vmatpush1.msra.mxu0 0.0
    %499 = vmatprep.subr.mxu0 0.0
    %500 = vmatpush1.msra.mxu0 0.0
    %501 = vmatprep.subr.mxu0 0.0
    %502 = vmatpush1.msra.mxu0 0.0
    %503 = vmatprep.subr.mxu0 0.0
    %504 = vmatpush1.msra.mxu0 0.0
    %505 = vmatprep.subr.mxu0 0.0
    %506 = vmatpush1.msra.mxu0 0.0
    %507 = vmatprep.subr.mxu0 0.0
    %508 = vmatpush1.msra.mxu0 0.0
    %509 = vmatprep.subr.mxu0 0.0
    %510 = vmatpush1.msra.mxu0 0.0
    %511 = vmatprep.subr.mxu0 0.0
    %512 = vmatpush1.msra.mxu0 0.0
    %513 = vmatprep.subr.mxu0 0.0
    %514 = vmatpush1.msra.mxu0 0.0
    %515 = vmatprep.subr.mxu0 0.0
    %516 = vmatpush1.msra.mxu0 0.0
    %517 = vmatprep.subr.mxu0 0.0
    %518 = vmatpush1.msra.mxu0 0.0
    %519 = vmatprep.subr.mxu0 0.0
    %520 = vmatpush1.msra.mxu0 0.0
    %521 = vmatprep.subr.mxu0 0.0
    %522 = vmatpush1.msra.mxu0 0.0
    %523 = vmatprep.subr.mxu0 0.0
    %524 = vmatpush1.msra.mxu0 0.0
    %525 = vmatprep.subr.mxu0 0.0
    %526 = vmatpush1.msra.mxu0 0.0
    %527 = vmatprep.subr.mxu0 0.0
    %528 = vmatpush1.msra.mxu0 0.0
    %529 = vmatprep.subr.mxu0 0.0
    %530 = vmatpush1.msra.mxu0 0.0
    %531 = vmatprep.subr.mxu0 0.0
    %532 = vmatpush1.msra.mxu0 0.0
    %533 = vmatprep.subr.mxu0 0.0
    %534 = vmatpush1.msra.mxu0 0.0
    %535 = vmatprep.subr.mxu0 0.0
    %536 = vmatpush1.msra.mxu0 0.0
    %537 = vmatprep.subr.mxu0 0.0
    %538 = vmatpush1.msra.mxu0 0.0
    %539 = vmatprep.subr.mxu0 0.0
    %540 = vmatpush1.msra.mxu0 0.0
    %541 = vmatprep.mubr.f32.mxu0 0.0
    %542 = vmatmul.mubr.f32.gmra.mrb[0].mxu0 %v468
    %v543 = vpop.f32.mrb[0].mxu0
    %v544 = vadd.f32 0.0, %v543
    %v545 = vpop.f32.mrb[0].mxu0
    %546 = vmatprep.mubr.f32.mxu0 0.0
    %547 = vmatmul.mubr.f32.gmra.mrb[0].mxu0 %v471
    %v548 = vpop.f32.mrb[0].mxu0
    %v549 = vadd.f32 0.0, %v548
    %v550 = vpop.f32.mrb[0].mxu0
    %551 = vdwg.mxu0
    %v552 = vadd.f32 %v464, %v544
    %v553 = vadd.f32 %v465, %v549
    %v554 = vxor.u32 %v552, 2147483648
    %v555 = vxor.u32 %v553, 2147483648
    %v556 = vmul.f32 %v554, 1.442695
    %v557 = vpow.pop %v556
    %v558 = vmul.f32 %v555, 1.442695
    %v559 = vpow.pop %v558
    %v560 = vadd.f32 %v557, 1.0
    %v561 = vadd.f32 %v559, 1.0
    %v562 = vrcp.pop %v560
    %v563 = vmul.f32 1.0, %v562
    %v564 = vrcp.pop %v561
    %v565 = vmul.f32 1.0, %v564
    %v566 = vld [vmem:[#allocation3] sm:$0xff]
    %v567 = vld [vmem:[#allocation3 + $0x8] sm:$0x3]
    %v568 = vmul.f32 %v563, %v462
    %v569 = vmul.f32 %v565, %v463
    %v571 = vsel %vm466, %v34, 0
    %v574 = vsel %vm466, %v35, 0
    %v577 = vsel %vm473, %v569, 0
    %579 = vmatprep.subr.mxu0 0.0
    %580 = vmatpush1.msra.mxu0 %v568
    %581 = vmatprep.subr.mxu0 0.0
    %582 = vmatpush1.msra.mxu0 %v577
    %583 = vmatprep.subr.mxu0 0.0
    %584 = vmatpush1.msra.mxu0 0.0
    %585 = vmatprep.subr.mxu0 0.0
    %586 = vmatpush1.msra.mxu0 0.0
    %587 = vmatprep.subr.mxu0 0.0
    %588 = vmatpush1.msra.mxu0 0.0
    %589 = vmatprep.subr.mxu0 0.0
    %590 = vmatpush1.msra.mxu0 0.0
    %591 = vmatprep.subr.mxu0 0.0
    %592 = vmatpush1.msra.mxu0 0.0
    %593 = vmatprep.subr.mxu0 0.0
    %594 = vmatpush1.msra.mxu0 0.0
    %595 = vmatprep.subr.mxu0 0.0
    %596 = vmatpush1.msra.mxu0 0.0
    %597 = vmatprep.subr.mxu0 0.0
    %598 = vmatpush1.msra.mxu0 0.0
    %599 = vmatprep.subr.mxu0 0.0
    %600 = vmatpush1.msra.mxu0 0.0
    %601 = vmatprep.subr.mxu0 0.0
    %602 = vmatpush1.msra.mxu0 0.0
    %603 = vmatprep.subr.mxu0 0.0
    %604 = vmatpush1.msra.mxu0 0.0
    %605 = vmatprep.subr.mxu0 0.0
    %606 = vmatpush1.msra.mxu0 0.0
    %607 = vmatprep.subr.mxu0 0.0
    %608 = vmatpush1.msra.mxu0 0.0
    %609 = vmatprep.subr.mxu0 0.0
    %610 = vmatpush1.msra.mxu0 0.0
    %611 = vmatprep.subr.mxu0 0.0
    %612 = vmatpush1.msra.mxu0 0.0
    %613 = vmatprep.subr.mxu0 0.0
    %614 = vmatpush1.msra.mxu0 0.0
    %615 = vmatprep.subr.mxu0 0.0
    %616 = vmatpush1.msra.mxu0 0.0
    %617 = vmatprep.subr.mxu0 0.0
    %618 = vmatpush1.msra.mxu0 0.0
    %619 = vmatprep.subr.mxu0 0.0
    %620 = vmatpush1.msra.mxu0 0.0
    %621 = vmatprep.subr.mxu0 0.0
    %622 = vmatpush1.msra.mxu0 0.0
    %623 = vmatprep.subr.mxu0 0.0
    %624 = vmatpush1.msra.mxu0 0.0
    %625 = vmatprep.subr.mxu0 0.0
    %626 = vmatpush1.msra.mxu0 0.0
    %627 = vmatprep.subr.mxu0 0.0
    %628 = vmatpush1.msra.mxu0 0.0
    %629 = vmatprep.subr.mxu0 0.0
    %630 = vmatpush1.msra.mxu0 0.0
    %631 = vmatprep.subr.mxu0 0.0
    %632 = vmatpush1.msra.mxu0 0.0
    %633 = vmatprep.subr.mxu0 0.0
    %634 = vmatpush1.msra.mxu0 0.0
    %635 = vmatprep.subr.mxu0 0.0
    %636 = vmatpush1.msra.mxu0 0.0
    %637 = vmatprep.subr.mxu0 0.0
    %638 = vmatpush1.msra.mxu0 0.0
    %639 = vmatprep.subr.mxu0 0.0
    %640 = vmatpush1.msra.mxu0 0.0
    %641 = vmatprep.subr.mxu0 0.0
    %642 = vmatpush1.msra.mxu0 0.0
    %643 = vmatprep.mubr.f32.mxu0 0.0
    %644 = vmatmul.mubr.f32.gmra.mrb[0].mxu0 %v571
    %v645 = vpop.f32.mrb[0].mxu0
    %v646 = vadd.f32 0.0, %v645
    %v647 = vpop.f32.mrb[0].mxu0
    %648 = vmatprep.mubr.f32.mxu0 0.0
    %649 = vmatmul.mubr.f32.gmra.mrb[0].mxu0 %v574
    %v650 = vpop.f32.mrb[0].mxu0
    %v651 = vadd.f32 0.0, %v650
    %v652 = vpop.f32.mrb[0].mxu0
    %653 = vdwg.mxu0
    %v654 = vadd.f32 %v566, %v646
    %v655 = vadd.f32 %v567, %v651
    %v656 = vtanh.pop %v654
    %v657 = vtanh.pop %v655
    %v658 = vsub.f32 %v656, %v462
    %v659 = vsub.f32 %v657, %v463
    %v660 = vmul.f32 %v563, %v658
    %v661 = vmul.f32 %v565, %v659
    %v662 = vadd.f32 %v462, %v660
    %v663 = vadd.f32 %v463, %v661
    %v664 = vld [vmem:[%s110] sm:$0xff]
    %v665 = vld [vmem:[%s110 + $0x8] sm:$0x3]
    %v667 = vsel %vm473, %v663, 0
    %669 = vmatprep.subr.mxu0 0.0
    %670 = vmatpush1.msra.mxu0 %v662
    %671 = vmatprep.subr.mxu0 0.0
    %672 = vmatpush1.msra.mxu0 %v667
    %673 = vmatprep.subr.mxu0 0.0
    %674 = vmatpush1.msra.mxu0 0.0
    %675 = vmatprep.subr.mxu0 0.0
    %676 = vmatpush1.msra.mxu0 0.0
    %677 = vmatprep.subr.mxu0 0.0
    %678 = vmatpush1.msra.mxu0 0.0
    %679 = vmatprep.subr.mxu0 0.0
    %680 = vmatpush1.msra.mxu0 0.0
    %681 = vmatprep.subr.mxu0 0.0
    %682 = vmatpush1.msra.mxu0 0.0
    %683 = vmatprep.subr.mxu0 0.0
    %684 = vmatpush1.msra.mxu0 0.0
    %685 = vmatprep.subr.mxu0 0.0
    %686 = vmatpush1.msra.mxu0 0.0
    %687 = vmatprep.subr.mxu0 0.0
    %688 = vmatpush1.msra.mxu0 0.0
    %689 = vmatprep.subr.mxu0 0.0
    %690 = vmatpush1.msra.mxu0 0.0
    %691 = vmatprep.subr.mxu0 0.0
    %692 = vmatpush1.msra.mxu0 0.0
    %693 = vmatprep.subr.mxu0 0.0
    %694 = vmatpush1.msra.mxu0 0.0
    %695 = vmatprep.subr.mxu0 0.0
    %696 = vmatpush1.msra.mxu0 0.0
    %697 = vmatprep.subr.mxu0 0.0
    %698 = vmatpush1.msra.mxu0 0.0
    %699 = vmatprep.subr.mxu0 0.0
    %700 = vmatpush1.msra.mxu0 0.0
    %701 = vmatprep.subr.mxu0 0.0
    %702 = vmatpush1.msra.mxu0 0.0
    %703 = vmatprep.subr.mxu0 0.0
    %704 = vmatpush1.msra.mxu0 0.0
    %705 = vmatprep.subr.mxu0 0.0
    %706 = vmatpush1.msra.mxu0 0.0
    %707 = vmatprep.subr.mxu0 0.0
    %708 = vmatpush1.msra.mxu0 0.0
    %709 = vmatprep.subr.mxu0 0.0
    %710 = vmatpush1.msra.mxu0 0.0
    %711 = vmatprep.subr.mxu0 0.0
    %712 = vmatpush1.msra.mxu0 0.0
    %713 = vmatprep.subr.mxu0 0.0
    %714 = vmatpush1.msra.mxu0 0.0
    %715 = vmatprep.subr.mxu0 0.0
    %716 = vmatpush1.msra.mxu0 0.0
    %717 = vmatprep.subr.mxu0 0.0
    %718 = vmatpush1.msra.mxu0 0.0
    %719 = vmatprep.subr.mxu0 0.0
    %720 = vmatpush1.msra.mxu0 0.0
    %721 = vmatprep.subr.mxu0 0.0
    %722 = vmatpush1.msra.mxu0 0.0
    %723 = vmatprep.subr.mxu0 0.0
    %724 = vmatpush1.msra.mxu0 0.0
    %725 = vmatprep.subr.mxu0 0.0
    %726 = vmatpush1.msra.mxu0 0.0
    %727 = vmatprep.subr.mxu0 0.0
    %728 = vmatpush1.msra.mxu0 0.0
    %729 = vmatprep.subr.mxu0 0.0
    %730 = vmatpush1.msra.mxu0 0.0
    %731 = vmatprep.subr.mxu0 0.0
    %732 = vmatpush1.msra.mxu0 0.0
    %733 = vmatprep.mubr.f32.mxu0 0.0
    %734 = vmatmul.mubr.f32.gmra.mrb[0].mxu0 %v468
    %v735 = vpop.f32.mrb[0].mxu0
    %v736 = vadd.f32 0.0, %v735
    %v737 = vpop.f32.mrb[0].mxu0
    %738 = vmatprep.mubr.f32.mxu0 0.0
    %739 = vmatmul.mubr.f32.gmra.mrb[0].mxu0 %v471
    %v740 = vpop.f32.mrb[0].mxu0
    %v741 = vadd.f32 0.0, %v740
    %v742 = vpop.f32.mrb[0].mxu0
    %743 = vdwg.mxu0
    %v744 = vadd.f32 %v664, %v736
    %v745 = vadd.f32 %v665, %v741
    %v746 = vxor.u32 %v744, 2147483648
    %v747 = vxor.u32 %v745, 2147483648
    %v748 = vmul.f32 %v746, 1.442695
    %v749 = vpow.pop %v748
    %v750 = vmul.f32 %v747, 1.442695
    %v751 = vpow.pop %v750
    %v752 = vadd.f32 %v749, 1.0
    %v753 = vadd.f32 %v751, 1.0
    %v754 = vrcp.pop %v752
    %v755 = vmul.f32 1.0, %v754
    %v756 = vrcp.pop %v753
    %v757 = vmul.f32 1.0, %v756
    %v758 = vld [vmem:[%s117] sm:$0xff]
    %v759 = vld [vmem:[%s117 + $0x8] sm:$0x3]
    %v760 = vmul.f32 %v755, %v662
    %v761 = vmul.f32 %v757, %v663
    %v763 = vsel %vm473, %v761, 0
    %765 = vmatprep.subr.mxu0 0.0
    %766 = vmatpush1.msra.mxu0 %v760
    %767 = vmatprep.subr.mxu0 0.0
    %768 = vmatpush1.msra.mxu0 %v763
    %769 = vmatprep.subr.mxu0 0.0
    %770 = vmatpush1.msra.mxu0 0.0
    %771 = vmatprep.subr.mxu0 0.0
    %772 = vmatpush1.msra.mxu0 0.0
    %773 = vmatprep.subr.mxu0 0.0
    %774 = vmatpush1.msra.mxu0 0.0
    %775 = vmatprep.subr.mxu0 0.0
    %776 = vmatpush1.msra.mxu0 0.0
    %777 = vmatprep.subr.mxu0 0.0
    %778 = vmatpush1.msra.mxu0 0.0
    %779 = vmatprep.subr.mxu0 0.0
    %780 = vmatpush1.msra.mxu0 0.0
    %781 = vmatprep.subr.mxu0 0.0
    %782 = vmatpush1.msra.mxu0 0.0
    %783 = vmatprep.subr.mxu0 0.0
    %784 = vmatpush1.msra.mxu0 0.0
    %785 = vmatprep.subr.mxu0 0.0
    %786 = vmatpush1.msra.mxu0 0.0
    %787 = vmatprep.subr.mxu0 0.0
    %788 = vmatpush1.msra.mxu0 0.0
    %789 = vmatprep.subr.mxu0 0.0
    %790 = vmatpush1.msra.mxu0 0.0
    %791 = vmatprep.subr.mxu0 0.0
    %792 = vmatpush1.msra.mxu0 0.0
    %793 = vmatprep.subr.mxu0 0.0
    %794 = vmatpush1.msra.mxu0 0.0
    %795 = vmatprep.subr.mxu0 0.0
    %796 = vmatpush1.msra.mxu0 0.0
    %797 = vmatprep.subr.mxu0 0.0
    %798 = vmatpush1.msra.mxu0 0.0
    %799 = vmatprep.subr.mxu0 0.0
    %800 = vmatpush1.msra.mxu0 0.0
    %801 = vmatprep.subr.mxu0 0.0
    %802 = vmatpush1.msra.mxu0 0.0
    %803 = vmatprep.subr.mxu0 0.0
    %804 = vmatpush1.msra.mxu0 0.0
    %805 = vmatprep.subr.mxu0 0.0
    %806 = vmatpush1.msra.mxu0 0.0
    %807 = vmatprep.subr.mxu0 0.0
    %808 = vmatpush1.msra.mxu0 0.0
    %809 = vmatprep.subr.mxu0 0.0
    %810 = vmatpush1.msra.mxu0 0.0
    %811 = vmatprep.subr.mxu0 0.0
    %812 = vmatpush1.msra.mxu0 0.0
    %813 = vmatprep.subr.mxu0 0.0
    %814 = vmatpush1.msra.mxu0 0.0
    %815 = vmatprep.subr.mxu0 0.0
    %816 = vmatpush1.msra.mxu0 0.0
    %817 = vmatprep.subr.mxu0 0.0
    %818 = vmatpush1.msra.mxu0 0.0
    %819 = vmatprep.subr.mxu0 0.0
    %820 = vmatpush1.msra.mxu0 0.0
    %821 = vmatprep.subr.mxu0 0.0
    %822 = vmatpush1.msra.mxu0 0.0
    %823 = vmatprep.subr.mxu0 0.0
    %824 = vmatpush1.msra.mxu0 0.0
    %825 = vmatprep.subr.mxu0 0.0
    %826 = vmatpush1.msra.mxu0 0.0
    %827 = vmatprep.subr.mxu0 0.0
    %828 = vmatpush1.msra.mxu0 0.0
    %829 = vmatprep.mubr.f32.mxu0 0.0
    %830 = vmatmul.mubr.f32.gmra.mrb[0].mxu0 %v571
    %v831 = vpop.f32.mrb[0].mxu0
    %v832 = vadd.f32 0.0, %v831
    %v833 = vpop.f32.mrb[0].mxu0
    %834 = vmatprep.mubr.f32.mxu0 0.0
    %835 = vmatmul.mubr.f32.gmra.mrb[0].mxu0 %v574
    %v836 = vpop.f32.mrb[0].mxu0
    %v837 = vadd.f32 0.0, %v836
    %v838 = vpop.f32.mrb[0].mxu0
    %839 = vdwg.mxu0
    %v840 = vadd.f32 %v758, %v832
    %v841 = vadd.f32 %v759, %v837
    %v842 = vtanh.pop %v840
    %v843 = vtanh.pop %v841
    %v844 = vsub.f32 %v842, %v662
    %v845 = vsub.f32 %v843, %v663
    %v846 = vmul.f32 %v755, %v844
    %v847 = vmul.f32 %v757, %v845
    %v848 = vadd.f32 %v662, %v846
    %v849 = vadd.f32 %v663, %v847
    %v850 = vld [vmem:[%s129] sm:$0xff]
    %v851 = vld [vmem:[%s129 + $0x8] sm:$0x3]
    %v853 = vsel %vm473, %v849, 0
    %855 = vmatprep.subr.mxu0 0.0
    %856 = vmatpush1.msra.mxu0 %v848
    %857 = vmatprep.subr.mxu0 0.0
    %858 = vmatpush1.msra.mxu0 %v853
    %859 = vmatprep.subr.mxu0 0.0
    %860 = vmatpush1.msra.mxu0 0.0
    %861 = vmatprep.subr.mxu0 0.0
    %862 = vmatpush1.msra.mxu0 0.0
    %863 = vmatprep.subr.mxu0 0.0
    %864 = vmatpush1.msra.mxu0 0.0
    %865 = vmatprep.subr.mxu0 0.0
    %866 = vmatpush1.msra.mxu0 0.0
    %867 = vmatprep.subr.mxu0 0.0
    %868 = vmatpush1.msra.mxu0 0.0
    %869 = vmatprep.subr.mxu0 0.0
    %870 = vmatpush1.msra.mxu0 0.0
    %871 = vmatprep.subr.mxu0 0.0
    %872 = vmatpush1.msra.mxu0 0.0
    %873 = vmatprep.subr.mxu0 0.0
    %874 = vmatpush1.msra.mxu0 0.0
    %875 = vmatprep.subr.mxu0 0.0
    %876 = vmatpush1.msra.mxu0 0.0
    %877 = vmatprep.subr.mxu0 0.0
    %878 = vmatpush1.msra.mxu0 0.0
    %879 = vmatprep.subr.mxu0 0.0
    %880 = vmatpush1.msra.mxu0 0.0
    %881 = vmatprep.subr.mxu0 0.0
    %882 = vmatpush1.msra.mxu0 0.0
    %883 = vmatprep.subr.mxu0 0.0
    %884 = vmatpush1.msra.mxu0 0.0
    %885 = vmatprep.subr.mxu0 0.0
    %886 = vmatpush1.msra.mxu0 0.0
    %887 = vmatprep.subr.mxu0 0.0
    %888 = vmatpush1.msra.mxu0 0.0
    %889 = vmatprep.subr.mxu0 0.0
    %890 = vmatpush1.msra.mxu0 0.0
    %891 = vmatprep.subr.mxu0 0.0
    %892 = vmatpush1.msra.mxu0 0.0
    %893 = vmatprep.subr.mxu0 0.0
    %894 = vmatpush1.msra.mxu0 0.0
    %895 = vmatprep.subr.mxu0 0.0
    %896 = vmatpush1.msra.mxu0 0.0
    %897 = vmatprep.subr.mxu0 0.0
    %898 = vmatpush1.msra.mxu0 0.0
    %899 = vmatprep.subr.mxu0 0.0
    %900 = vmatpush1.msra.mxu0 0.0
    %901 = vmatprep.subr.mxu0 0.0
    %902 = vmatpush1.msra.mxu0 0.0
    %903 = vmatprep.subr.mxu0 0.0
    %904 = vmatpush1.msra.mxu0 0.0
    %905 = vmatprep.subr.mxu0 0.0
    %906 = vmatpush1.msra.mxu0 0.0
    %907 = vmatprep.subr.mxu0 0.0
    %908 = vmatpush1.msra.mxu0 0.0
    %909 = vmatprep.subr.mxu0 0.0
    %910 = vmatpush1.msra.mxu0 0.0
    %911 = vmatprep.subr.mxu0 0.0
    %912 = vmatpush1.msra.mxu0 0.0
    %913 = vmatprep.subr.mxu0 0.0
    %914 = vmatpush1.msra.mxu0 0.0
    %915 = vmatprep.subr.mxu0 0.0
    %916 = vmatpush1.msra.mxu0 0.0
    %917 = vmatprep.subr.mxu0 0.0
    %918 = vmatpush1.msra.mxu0 0.0
    %919 = vmatprep.mubr.f32.mxu0 0.0
    %920 = vmatmul.mubr.f32.gmra.mrb[0].mxu0 %v468
    %v921 = vpop.f32.mrb[0].mxu0
    %v922 = vadd.f32 0.0, %v921
    %v923 = vpop.f32.mrb[0].mxu0
    %924 = vmatprep.mubr.f32.mxu0 0.0
    %925 = vmatmul.mubr.f32.gmra.mrb[0].mxu0 %v471
    %v926 = vpop.f32.mrb[0].mxu0
    %v927 = vadd.f32 0.0, %v926
    %v928 = vpop.f32.mrb[0].mxu0
    %929 = vdwg.mxu0
    %v930 = vadd.f32 %v850, %v922
    %v931 = vadd.f32 %v851, %v927
    %v932 = vxor.u32 %v930, 2147483648
    %v933 = vxor.u32 %v931, 2147483648
    %v934 = vmul.f32 %v932, 1.442695
    %v935 = vpow.pop %v934
    %v936 = vmul.f32 %v933, 1.442695
    %v937 = vpow.pop %v936
    %v938 = vadd.f32 %v935, 1.0
    %v939 = vadd.f32 %v937, 1.0
    %v940 = vrcp.pop %v938
    %v941 = vmul.f32 1.0, %v940
    %v942 = vrcp.pop %v939
    %v943 = vmul.f32 1.0, %v942
    %v944 = vld [vmem:[%s136] sm:$0xff]
    %v945 = vld [vmem:[%s136 + $0x8] sm:$0x3]
    %v946 = vmul.f32 %v941, %v848
    %v947 = vmul.f32 %v943, %v849
    %v949 = vsel %vm473, %v947, 0
    %951 = vmatprep.subr.mxu0 0.0
    %952 = vmatpush1.msra.mxu0 %v946
    %953 = vmatprep.subr.mxu0 0.0
    %954 = vmatpush1.msra.mxu0 %v949
    %955 = vmatprep.subr.mxu0 0.0
    %956 = vmatpush1.msra.mxu0 0.0
    %957 = vmatprep.subr.mxu0 0.0
    %958 = vmatpush1.msra.mxu0 0.0
    %959 = vmatprep.subr.mxu0 0.0
    %960 = vmatpush1.msra.mxu0 0.0
    %961 = vmatprep.subr.mxu0 0.0
    %962 = vmatpush1.msra.mxu0 0.0
    %963 = vmatprep.subr.mxu0 0.0
    %964 = vmatpush1.msra.mxu0 0.0
    %965 = vmatprep.subr.mxu0 0.0
    %966 = vmatpush1.msra.mxu0 0.0
    %967 = vmatprep.subr.mxu0 0.0
    %968 = vmatpush1.msra.mxu0 0.0
    %969 = vmatprep.subr.mxu0 0.0
    %970 = vmatpush1.msra.mxu0 0.0
    %971 = vmatprep.subr.mxu0 0.0
    %972 = vmatpush1.msra.mxu0 0.0
    %973 = vmatprep.subr.mxu0 0.0
    %974 = vmatpush1.msra.mxu0 0.0
    %975 = vmatprep.subr.mxu0 0.0
    %976 = vmatpush1.msra.mxu0 0.0
    %977 = vmatprep.subr.mxu0 0.0
    %978 = vmatpush1.msra.mxu0 0.0
    %979 = vmatprep.subr.mxu0 0.0
    %980 = vmatpush1.msra.mxu0 0.0
    %981 = vmatprep.subr.mxu0 0.0
    %982 = vmatpush1.msra.mxu0 0.0
    %983 = vmatprep.subr.mxu0 0.0
    %984 = vmatpush1.msra.mxu0 0.0
    %985 = vmatprep.subr.mxu0 0.0
    %986 = vmatpush1.msra.mxu0 0.0
    %987 = vmatprep.subr.mxu0 0.0
    %988 = vmatpush1.msra.mxu0 0.0
    %989 = vmatprep.subr.mxu0 0.0
    %990 = vmatpush1.msra.mxu0 0.0
    %991 = vmatprep.subr.mxu0 0.0
    %992 = vmatpush1.msra.mxu0 0.0
    %993 = vmatprep.subr.mxu0 0.0
    %994 = vmatpush1.msra.mxu0 0.0
    %995 = vmatprep.subr.mxu0 0.0
    %996 = vmatpush1.msra.mxu0 0.0
    %997 = vmatprep.subr.mxu0 0.0
    %998 = vmatpush1.msra.mxu0 0.0
    %999 = vmatprep.subr.mxu0 0.0
    %1000 = vmatpush1.msra.mxu0 0.0
    %1001 = vmatprep.subr.mxu0 0.0
    %1002 = vmatpush1.msra.mxu0 0.0
    %1003 = vmatprep.subr.mxu0 0.0
    %1004 = vmatpush1.msra.mxu0 0.0
    %1005 = vmatprep.subr.mxu0 0.0
    %1006 = vmatpush1.msra.mxu0 0.0
    %1007 = vmatprep.subr.mxu0 0.0
    %1008 = vmatpush1.msra.mxu0 0.0
    %1009 = vmatprep.subr.mxu0 0.0
    %1010 = vmatpush1.msra.mxu0 0.0
    %1011 = vmatprep.subr.mxu0 0.0
    %1012 = vmatpush1.msra.mxu0 0.0
    %1013 = vmatprep.subr.mxu0 0.0
    %1014 = vmatpush1.msra.mxu0 0.0
    %1015 = vmatprep.mubr.f32.mxu0 0.0
    %1016 = vmatmul.mubr.f32.gmra.mrb[0].mxu0 %v571
    %v1017 = vpop.f32.mrb[0].mxu0
    %v1018 = vadd.f32 0.0, %v1017
    %v1019 = vpop.f32.mrb[0].mxu0
    %1020 = vmatprep.mubr.f32.mxu0 0.0
    %1021 = vmatmul.mubr.f32.gmra.mrb[0].mxu0 %v574
    %v1022 = vpop.f32.mrb[0].mxu0
    %v1023 = vadd.f32 0.0, %v1022
    %v1024 = vpop.f32.mrb[0].mxu0
    %1025 = vdwg.mxu0
    %v1026 = vadd.f32 %v944, %v1018
    %v1027 = vadd.f32 %v945, %v1023
    %v1028 = vtanh.pop %v1026
    %v1029 = vtanh.pop %v1027
    %v1030 = vsub.f32 %v1028, %v848
    %v1031 = vsub.f32 %v1029, %v849
    %v1032 = vmul.f32 %v941, %v1030
    %v1033 = vmul.f32 %v943, %v1031
    %v1034 = vadd.f32 %v848, %v1032
    %v1035 = vadd.f32 %v849, %v1033
    %v1036 = vld [vmem:[%s148] sm:$0xff]
    %v1037 = vld [vmem:[%s148 + $0x8] sm:$0x3]
    %v1039 = vsel %vm473, %v1035, 0
    %1041 = vmatprep.subr.mxu0 0.0
    %1042 = vmatpush1.msra.mxu0 %v1034
    %1043 = vmatprep.subr.mxu0 0.0
    %1044 = vmatpush1.msra.mxu0 %v1039
    %1045 = vmatprep.subr.mxu0 0.0
    %1046 = vmatpush1.msra.mxu0 0.0
    %1047 = vmatprep.subr.mxu0 0.0
    %1048 = vmatpush1.msra.mxu0 0.0
    %1049 = vmatprep.subr.mxu0 0.0
    %1050 = vmatpush1.msra.mxu0 0.0
    %1051 = vmatprep.subr.mxu0 0.0
    %1052 = vmatpush1.msra.mxu0 0.0
    %1053 = vmatprep.subr.mxu0 0.0
    %1054 = vmatpush1.msra.mxu0 0.0
    %1055 = vmatprep.subr.mxu0 0.0
    %1056 = vmatpush1.msra.mxu0 0.0
    %1057 = vmatprep.subr.mxu0 0.0
    %1058 = vmatpush1.msra.mxu0 0.0
    %1059 = vmatprep.subr.mxu0 0.0
    %1060 = vmatpush1.msra.mxu0 0.0
    %1061 = vmatprep.subr.mxu0 0.0
    %1062 = vmatpush1.msra.mxu0 0.0
    %1063 = vmatprep.subr.mxu0 0.0
    %1064 = vmatpush1.msra.mxu0 0.0
    %1065 = vmatprep.subr.mxu0 0.0
    %1066 = vmatpush1.msra.mxu0 0.0
    %1067 = vmatprep.subr.mxu0 0.0
    %1068 = vmatpush1.msra.mxu0 0.0
    %1069 = vmatprep.subr.mxu0 0.0
    %1070 = vmatpush1.msra.mxu0 0.0
    %1071 = vmatprep.subr.mxu0 0.0
    %1072 = vmatpush1.msra.mxu0 0.0
    %1073 = vmatprep.subr.mxu0 0.0
    %1074 = vmatpush1.msra.mxu0 0.0
    %1075 = vmatprep.subr.mxu0 0.0
    %1076 = vmatpush1.msra.mxu0 0.0
    %1077 = vmatprep.subr.mxu0 0.0
    %1078 = vmatpush1.msra.mxu0 0.0
    %1079 = vmatprep.subr.mxu0 0.0
    %1080 = vmatpush1.msra.mxu0 0.0
    %1081 = vmatprep.subr.mxu0 0.0
    %1082 = vmatpush1.msra.mxu0 0.0
    %1083 = vmatprep.subr.mxu0 0.0
    %1084 = vmatpush1.msra.mxu0 0.0
    %1085 = vmatprep.subr.mxu0 0.0
    %1086 = vmatpush1.msra.mxu0 0.0
    %1087 = vmatprep.subr.mxu0 0.0
    %1088 = vmatpush1.msra.mxu0 0.0
    %1089 = vmatprep.subr.mxu0 0.0
    %1090 = vmatpush1.msra.mxu0 0.0
    %1091 = vmatprep.subr.mxu0 0.0
    %1092 = vmatpush1.msra.mxu0 0.0
    %1093 = vmatprep.subr.mxu0 0.0
    %1094 = vmatpush1.msra.mxu0 0.0
    %1095 = vmatprep.subr.mxu0 0.0
    %1096 = vmatpush1.msra.mxu0 0.0
    %1097 = vmatprep.subr.mxu0 0.0
    %1098 = vmatpush1.msra.mxu0 0.0
    %1099 = vmatprep.subr.mxu0 0.0
    %1100 = vmatpush1.msra.mxu0 0.0
    %1101 = vmatprep.subr.mxu0 0.0
    %1102 = vmatpush1.msra.mxu0 0.0
    %1103 = vmatprep.subr.mxu0 0.0
    %1104 = vmatpush1.msra.mxu0 0.0
    %1105 = vmatprep.mubr.f32.mxu0 0.0
    %1106 = vmatmul.mubr.f32.gmra.mrb[0].mxu0 %v468
    %v1107 = vpop.f32.mrb[0].mxu0
    %v1108 = vadd.f32 0.0, %v1107
    %v1109 = vpop.f32.mrb[0].mxu0
    %1110 = vmatprep.mubr.f32.mxu0 0.0
    %1111 = vmatmul.mubr.f32.gmra.mrb[0].mxu0 %v471
    %v1112 = vpop.f32.mrb[0].mxu0
    %v1113 = vadd.f32 0.0, %v1112
    %v1114 = vpop.f32.mrb[0].mxu0
    %1115 = vdwg.mxu0
    %v1116 = vadd.f32 %v1036, %v1108
    %v1117 = vadd.f32 %v1037, %v1113
    %v1118 = vxor.u32 %v1116, 2147483648
    %v1119 = vxor.u32 %v1117, 2147483648
    %v1120 = vmul.f32 %v1118, 1.442695
    %v1121 = vpow.pop %v1120
    %v1122 = vmul.f32 %v1119, 1.442695
    %v1123 = vpow.pop %v1122
    %v1124 = vadd.f32 %v1121, 1.0
    %v1125 = vadd.f32 %v1123, 1.0
    %v1126 = vrcp.pop %v1124
    %v1127 = vmul.f32 1.0, %v1126
    %v1128 = vrcp.pop %v1125
    %v1129 = vmul.f32 1.0, %v1128
    %v1130 = vld [vmem:[%s155] sm:$0xff]
    %v1131 = vld [vmem:[%s155 + $0x8] sm:$0x3]
    %v1132 = vmul.f32 %v1127, %v1034
    %v1133 = vmul.f32 %v1129, %v1035
    %v1135 = vsel %vm473, %v1133, 0
    %1137 = vmatprep.subr.mxu0 0.0
    %1138 = vmatpush1.msra.mxu0 %v1132
    %1139 = vmatprep.subr.mxu0 0.0
    %1140 = vmatpush1.msra.mxu0 %v1135
    %1141 = vmatprep.subr.mxu0 0.0
    %1142 = vmatpush1.msra.mxu0 0.0
    %1143 = vmatprep.subr.mxu0 0.0
    %1144 = vmatpush1.msra.mxu0 0.0
    %1145 = vmatprep.subr.mxu0 0.0
    %1146 = vmatpush1.msra.mxu0 0.0
    %1147 = vmatprep.subr.mxu0 0.0
    %1148 = vmatpush1.msra.mxu0 0.0
    %1149 = vmatprep.subr.mxu0 0.0
    %1150 = vmatpush1.msra.mxu0 0.0
    %1151 = vmatprep.subr.mxu0 0.0
    %1152 = vmatpush1.msra.mxu0 0.0
    %1153 = vmatprep.subr.mxu0 0.0
    %1154 = vmatpush1.msra.mxu0 0.0
    %1155 = vmatprep.subr.mxu0 0.0
    %1156 = vmatpush1.msra.mxu0 0.0
    %1157 = vmatprep.subr.mxu0 0.0
    %1158 = vmatpush1.msra.mxu0 0.0
    %1159 = vmatprep.subr.mxu0 0.0
    %1160 = vmatpush1.msra.mxu0 0.0
    %1161 = vmatprep.subr.mxu0 0.0
    %1162 = vmatpush1.msra.mxu0 0.0
    %1163 = vmatprep.subr.mxu0 0.0
    %1164 = vmatpush1.msra.mxu0 0.0
    %1165 = vmatprep.subr.mxu0 0.0
    %1166 = vmatpush1.msra.mxu0 0.0
    %1167 = vmatprep.subr.mxu0 0.0
    %1168 = vmatpush1.msra.mxu0 0.0
    %1169 = vmatprep.subr.mxu0 0.0
    %1170 = vmatpush1.msra.mxu0 0.0
    %1171 = vmatprep.subr.mxu0 0.0
    %1172 = vmatpush1.msra.mxu0 0.0
    %1173 = vmatprep.subr.mxu0 0.0
    %1174 = vmatpush1.msra.mxu0 0.0
    %1175 = vmatprep.subr.mxu0 0.0
    %1176 = vmatpush1.msra.mxu0 0.0
    %1177 = vmatprep.subr.mxu0 0.0
    %1178 = vmatpush1.msra.mxu0 0.0
    %1179 = vmatprep.subr.mxu0 0.0
    %1180 = vmatpush1.msra.mxu0 0.0
    %1181 = vmatprep.subr.mxu0 0.0
    %1182 = vmatpush1.msra.mxu0 0.0
    %1183 = vmatprep.subr.mxu0 0.0
    %1184 = vmatpush1.msra.mxu0 0.0
    %1185 = vmatprep.subr.mxu0 0.0
    %1186 = vmatpush1.msra.mxu0 0.0
    %1187 = vmatprep.subr.mxu0 0.0
    %1188 = vmatpush1.msra.mxu0 0.0
    %1189 = vmatprep.subr.mxu0 0.0
    %1190 = vmatpush1.msra.mxu0 0.0
    %1191 = vmatprep.subr.mxu0 0.0
    %1192 = vmatpush1.msra.mxu0 0.0
    %1193 = vmatprep.subr.mxu0 0.0
    %1194 = vmatpush1.msra.mxu0 0.0
    %1195 = vmatprep.subr.mxu0 0.0
    %1196 = vmatpush1.msra.mxu0 0.0
    %1197 = vmatprep.subr.mxu0 0.0
    %1198 = vmatpush1.msra.mxu0 0.0
    %1199 = vmatprep.subr.mxu0 0.0
    %1200 = vmatpush1.msra.mxu0 0.0
    %1201 = vmatprep.mubr.f32.mxu0 0.0
    %1202 = vmatmul.mubr.f32.gmra.mrb[0].mxu0 %v571
    %v1203 = vpop.f32.mrb[0].mxu0
    %v1204 = vadd.f32 0.0, %v1203
    %v1205 = vpop.f32.mrb[0].mxu0
    %1206 = vmatprep.mubr.f32.mxu0 0.0
    %1207 = vmatmul.mubr.f32.gmra.mrb[0].mxu0 %v574
    %v1208 = vpop.f32.mrb[0].mxu0
    %v1209 = vadd.f32 0.0, %v1208
    %v1210 = vpop.f32.mrb[0].mxu0
    %1211 = vdwg.mxu0
    %v1212 = vadd.f32 %v1130, %v1204
    %v1213 = vadd.f32 %v1131, %v1209
    %v1214 = vtanh.pop %v1212
    %v1215 = vtanh.pop %v1213
    %v1216 = vsub.f32 %v1214, %v1034
    %v1217 = vsub.f32 %v1215, %v1035
    %v1218 = vmul.f32 %v1127, %v1216
    %v1219 = vmul.f32 %v1129, %v1217
    %v1220 = vadd.f32 %v1034, %v1218
    %v1221 = vadd.f32 %v1035, %v1219
    %v1222 = vld [vmem:[%s167] sm:$0xff]
    %v1223 = vld [vmem:[%s167 + $0x8] sm:$0x3]
    %v1225 = vsel %vm473, %v1221, 0
    %1227 = vmatprep.subr.mxu0 0.0
    %1228 = vmatpush1.msra.mxu0 %v1220
    %1229 = vmatprep.subr.mxu0 0.0
    %1230 = vmatpush1.msra.mxu0 %v1225
    %1231 = vmatprep.subr.mxu0 0.0
    %1232 = vmatpush1.msra.mxu0 0.0
    %1233 = vmatprep.subr.mxu0 0.0
    %1234 = vmatpush1.msra.mxu0 0.0
    %1235 = vmatprep.subr.mxu0 0.0
    %1236 = vmatpush1.msra.mxu0 0.0
    %1237 = vmatprep.subr.mxu0 0.0
    %1238 = vmatpush1.msra.mxu0 0.0
    %1239 = vmatprep.subr.mxu0 0.0
    %1240 = vmatpush1.msra.mxu0 0.0
    %1241 = vmatprep.subr.mxu0 0.0
    %1242 = vmatpush1.msra.mxu0 0.0
    %1243 = vmatprep.subr.mxu0 0.0
    %1244 = vmatpush1.msra.mxu0 0.0
    %1245 = vmatprep.subr.mxu0 0.0
    %1246 = vmatpush1.msra.mxu0 0.0
    %1247 = vmatprep.subr.mxu0 0.0
    %1248 = vmatpush1.msra.mxu0 0.0
    %1249 = vmatprep.subr.mxu0 0.0
    %1250 = vmatpush1.msra.mxu0 0.0
    %1251 = vmatprep.subr.mxu0 0.0
    %1252 = vmatpush1.msra.mxu0 0.0
    %1253 = vmatprep.subr.mxu0 0.0
    %1254 = vmatpush1.msra.mxu0 0.0
    %1255 = vmatprep.subr.mxu0 0.0
    %1256 = vmatpush1.msra.mxu0 0.0
    %1257 = vmatprep.subr.mxu0 0.0
    %1258 = vmatpush1.msra.mxu0 0.0
    %1259 = vmatprep.subr.mxu0 0.0
    %1260 = vmatpush1.msra.mxu0 0.0
    %1261 = vmatprep.subr.mxu0 0.0
    %1262 = vmatpush1.msra.mxu0 0.0
    %1263 = vmatprep.subr.mxu0 0.0
    %1264 = vmatpush1.msra.mxu0 0.0
    %1265 = vmatprep.subr.mxu0 0.0
    %1266 = vmatpush1.msra.mxu0 0.0
    %1267 = vmatprep.subr.mxu0 0.0
    %1268 = vmatpush1.msra.mxu0 0.0
    %1269 = vmatprep.subr.mxu0 0.0
    %1270 = vmatpush1.msra.mxu0 0.0
    %1271 = vmatprep.subr.mxu0 0.0
    %1272 = vmatpush1.msra.mxu0 0.0
    %1273 = vmatprep.subr.mxu0 0.0
    %1274 = vmatpush1.msra.mxu0 0.0
    %1275 = vmatprep.subr.mxu0 0.0
    %1276 = vmatpush1.msra.mxu0 0.0
    %1277 = vmatprep.subr.mxu0 0.0
    %1278 = vmatpush1.msra.mxu0 0.0
    %1279 = vmatprep.subr.mxu0 0.0
    %1280 = vmatpush1.msra.mxu0 0.0
    %1281 = vmatprep.subr.mxu0 0.0
    %1282 = vmatpush1.msra.mxu0 0.0
    %1283 = vmatprep.subr.mxu0 0.0
    %1284 = vmatpush1.msra.mxu0 0.0
    %1285 = vmatprep.subr.mxu0 0.0
    %1286 = vmatpush1.msra.mxu0 0.0
    %1287 = vmatprep.subr.mxu0 0.0
    %1288 = vmatpush1.msra.mxu0 0.0
    %1289 = vmatprep.subr.mxu0 0.0
    %1290 = vmatpush1.msra.mxu0 0.0
    %1291 = vmatprep.mubr.f32.mxu0 0.0
    %1292 = vmatmul.mubr.f32.gmra.mrb[0].mxu0 %v468
    %v1293 = vpop.f32.mrb[0].mxu0
    %v1294 = vadd.f32 0.0, %v1293
    %v1295 = vpop.f32.mrb[0].mxu0
    %1296 = vmatprep.mubr.f32.mxu0 0.0
    %1297 = vmatmul.mubr.f32.gmra.mrb[0].mxu0 %v471
    %v1298 = vpop.f32.mrb[0].mxu0
    %v1299 = vadd.f32 0.0, %v1298
    %v1300 = vpop.f32.mrb[0].mxu0
    %1301 = vdwg.mxu0
    %v1302 = vadd.f32 %v1222, %v1294
    %v1303 = vadd.f32 %v1223, %v1299
    %v1304 = vxor.u32 %v1302, 2147483648
    %v1305 = vxor.u32 %v1303, 2147483648
    %v1306 = vmul.f32 %v1304, 1.442695
    %v1307 = vpow.pop %v1306
    %v1308 = vmul.f32 %v1305, 1.442695
    %v1309 = vpow.pop %v1308
    %v1310 = vadd.f32 %v1307, 1.0
    %v1311 = vadd.f32 %v1309, 1.0
    %v1312 = vrcp.pop %v1310
    %v1313 = vmul.f32 1.0, %v1312
    %v1314 = vrcp.pop %v1311
    %v1315 = vmul.f32 1.0, %v1314
    %v1316 = vld [vmem:[%s174] sm:$0xff]
    %v1317 = vld [vmem:[%s174 + $0x8] sm:$0x3]
    %v1318 = vmul.f32 %v1313, %v1220
    %v1319 = vmul.f32 %v1315, %v1221
    %v1321 = vsel %vm473, %v1319, 0
    %1323 = vmatprep.subr.mxu0 0.0
    %1324 = vmatpush1.msra.mxu0 %v1318
    %1325 = vmatprep.subr.mxu0 0.0
    %1326 = vmatpush1.msra.mxu0 %v1321
    %1327 = vmatprep.subr.mxu0 0.0
    %1328 = vmatpush1.msra.mxu0 0.0
    %1329 = vmatprep.subr.mxu0 0.0
    %1330 = vmatpush1.msra.mxu0 0.0
    %1331 = vmatprep.subr.mxu0 0.0
    %1332 = vmatpush1.msra.mxu0 0.0
    %1333 = vmatprep.subr.mxu0 0.0
    %1334 = vmatpush1.msra.mxu0 0.0
    %1335 = vmatprep.subr.mxu0 0.0
    %1336 = vmatpush1.msra.mxu0 0.0
    %1337 = vmatprep.subr.mxu0 0.0
    %1338 = vmatpush1.msra.mxu0 0.0
    %1339 = vmatprep.subr.mxu0 0.0
    %1340 = vmatpush1.msra.mxu0 0.0
    %1341 = vmatprep.subr.mxu0 0.0
    %1342 = vmatpush1.msra.mxu0 0.0
    %1343 = vmatprep.subr.mxu0 0.0
    %1344 = vmatpush1.msra.mxu0 0.0
    %1345 = vmatprep.subr.mxu0 0.0
    %1346 = vmatpush1.msra.mxu0 0.0
    %1347 = vmatprep.subr.mxu0 0.0
    %1348 = vmatpush1.msra.mxu0 0.0
    %1349 = vmatprep.subr.mxu0 0.0
    %1350 = vmatpush1.msra.mxu0 0.0
    %1351 = vmatprep.subr.mxu0 0.0
    %1352 = vmatpush1.msra.mxu0 0.0
    %1353 = vmatprep.subr.mxu0 0.0
    %1354 = vmatpush1.msra.mxu0 0.0
    %1355 = vmatprep.subr.mxu0 0.0
    %1356 = vmatpush1.msra.mxu0 0.0
    %1357 = vmatprep.subr.mxu0 0.0
    %1358 = vmatpush1.msra.mxu0 0.0
    %1359 = vmatprep.subr.mxu0 0.0
    %1360 = vmatpush1.msra.mxu0 0.0
    %1361 = vmatprep.subr.mxu0 0.0
    %1362 = vmatpush1.msra.mxu0 0.0
    %1363 = vmatprep.subr.mxu0 0.0
    %1364 = vmatpush1.msra.mxu0 0.0
    %1365 = vmatprep.subr.mxu0 0.0
    %1366 = vmatpush1.msra.mxu0 0.0
    %1367 = vmatprep.subr.mxu0 0.0
    %1368 = vmatpush1.msra.mxu0 0.0
    %1369 = vmatprep.subr.mxu0 0.0
    %1370 = vmatpush1.msra.mxu0 0.0
    %1371 = vmatprep.subr.mxu0 0.0
    %1372 = vmatpush1.msra.mxu0 0.0
    %1373 = vmatprep.subr.mxu0 0.0
    %1374 = vmatpush1.msra.mxu0 0.0
    %1375 = vmatprep.subr.mxu0 0.0
    %1376 = vmatpush1.msra.mxu0 0.0
    %1377 = vmatprep.subr.mxu0 0.0
    %1378 = vmatpush1.msra.mxu0 0.0
    %1379 = vmatprep.subr.mxu0 0.0
    %1380 = vmatpush1.msra.mxu0 0.0
    %1381 = vmatprep.subr.mxu0 0.0
    %1382 = vmatpush1.msra.mxu0 0.0
    %1383 = vmatprep.subr.mxu0 0.0
    %1384 = vmatpush1.msra.mxu0 0.0
    %1385 = vmatprep.subr.mxu0 0.0
    %1386 = vmatpush1.msra.mxu0 0.0
    %1387 = vmatprep.mubr.f32.mxu0 0.0
    %1388 = vmatmul.mubr.f32.gmra.mrb[0].mxu0 %v571
    %v1389 = vpop.f32.mrb[0].mxu0
    %v1390 = vadd.f32 0.0, %v1389
    %v1391 = vpop.f32.mrb[0].mxu0
    %1392 = vmatprep.mubr.f32.mxu0 0.0
    %1393 = vmatmul.mubr.f32.gmra.mrb[0].mxu0 %v574
    %v1394 = vpop.f32.mrb[0].mxu0
    %v1395 = vadd.f32 0.0, %v1394
    %v1396 = vpop.f32.mrb[0].mxu0
    %1397 = vdwg.mxu0
    %v1398 = vadd.f32 %v1316, %v1390
    %v1399 = vadd.f32 %v1317, %v1395
    %v1400 = vtanh.pop %v1398
    %v1401 = vtanh.pop %v1399
    %v1402 = vsub.f32 %v1400, %v1220
    %v1403 = vsub.f32 %v1401, %v1221
    %v1404 = vmul.f32 %v1313, %v1402
    %v1405 = vmul.f32 %v1315, %v1403
    %v1406 = vadd.f32 %v1220, %v1404
    %v1407 = vadd.f32 %v1221, %v1405
    %v1408 = vld [vmem:[%s186] sm:$0xff]
    %v1409 = vld [vmem:[%s186 + $0x8] sm:$0x3]
    %v1411 = vsel %vm473, %v1407, 0
    %1413 = vmatprep.subr.mxu0 0.0
    %1414 = vmatpush1.msra.mxu0 %v1406
    %1415 = vmatprep.subr.mxu0 0.0
    %1416 = vmatpush1.msra.mxu0 %v1411
    %1417 = vmatprep.subr.mxu0 0.0
    %1418 = vmatpush1.msra.mxu0 0.0
    %1419 = vmatprep.subr.mxu0 0.0
    %1420 = vmatpush1.msra.mxu0 0.0
    %1421 = vmatprep.subr.mxu0 0.0
    %1422 = vmatpush1.msra.mxu0 0.0
    %1423 = vmatprep.subr.mxu0 0.0
    %1424 = vmatpush1.msra.mxu0 0.0
    %1425 = vmatprep.subr.mxu0 0.0
    %1426 = vmatpush1.msra.mxu0 0.0
    %1427 = vmatprep.subr.mxu0 0.0
    %1428 = vmatpush1.msra.mxu0 0.0
    %1429 = vmatprep.subr.mxu0 0.0
    %1430 = vmatpush1.msra.mxu0 0.0
    %1431 = vmatprep.subr.mxu0 0.0
    %1432 = vmatpush1.msra.mxu0 0.0
    %1433 = vmatprep.subr.mxu0 0.0
    %1434 = vmatpush1.msra.mxu0 0.0
    %1435 = vmatprep.subr.mxu0 0.0
    %1436 = vmatpush1.msra.mxu0 0.0
    %1437 = vmatprep.subr.mxu0 0.0
    %1438 = vmatpush1.msra.mxu0 0.0
    %1439 = vmatprep.subr.mxu0 0.0
    %1440 = vmatpush1.msra.mxu0 0.0
    %1441 = vmatprep.subr.mxu0 0.0
    %1442 = vmatpush1.msra.mxu0 0.0
    %1443 = vmatprep.subr.mxu0 0.0
    %1444 = vmatpush1.msra.mxu0 0.0
    %1445 = vmatprep.subr.mxu0 0.0
    %1446 = vmatpush1.msra.mxu0 0.0
    %1447 = vmatprep.subr.mxu0 0.0
    %1448 = vmatpush1.msra.mxu0 0.0
    %1449 = vmatprep.subr.mxu0 0.0
    %1450 = vmatpush1.msra.mxu0 0.0
    %1451 = vmatprep.subr.mxu0 0.0
    %1452 = vmatpush1.msra.mxu0 0.0
    %1453 = vmatprep.subr.mxu0 0.0
    %1454 = vmatpush1.msra.mxu0 0.0
    %1455 = vmatprep.subr.mxu0 0.0
    %1456 = vmatpush1.msra.mxu0 0.0
    %1457 = vmatprep.subr.mxu0 0.0
    %1458 = vmatpush1.msra.mxu0 0.0
    %1459 = vmatprep.subr.mxu0 0.0
    %1460 = vmatpush1.msra.mxu0 0.0
    %1461 = vmatprep.subr.mxu0 0.0
    %1462 = vmatpush1.msra.mxu0 0.0
    %1463 = vmatprep.subr.mxu0 0.0
    %1464 = vmatpush1.msra.mxu0 0.0
    %1465 = vmatprep.subr.mxu0 0.0
    %1466 = vmatpush1.msra.mxu0 0.0
    %1467 = vmatprep.subr.mxu0 0.0
    %1468 = vmatpush1.msra.mxu0 0.0
    %1469 = vmatprep.subr.mxu0 0.0
    %1470 = vmatpush1.msra.mxu0 0.0
    %1471 = vmatprep.subr.mxu0 0.0
    %1472 = vmatpush1.msra.mxu0 0.0
    %1473 = vmatprep.subr.mxu0 0.0
    %1474 = vmatpush1.msra.mxu0 0.0
    %1475 = vmatprep.subr.mxu0 0.0
    %1476 = vmatpush1.msra.mxu0 0.0
    %1477 = vmatprep.mubr.f32.mxu0 0.0
    %1478 = vmatmul.mubr.f32.gmra.mrb[0].mxu0 %v468
    %v1479 = vpop.f32.mrb[0].mxu0
    %v1480 = vadd.f32 0.0, %v1479
    %v1481 = vpop.f32.mrb[0].mxu0
    %1482 = vmatprep.mubr.f32.mxu0 0.0
    %1483 = vmatmul.mubr.f32.gmra.mrb[0].mxu0 %v471
    %v1484 = vpop.f32.mrb[0].mxu0
    %v1485 = vadd.f32 0.0, %v1484
    %v1486 = vpop.f32.mrb[0].mxu0
    %1487 = vdwg.mxu0
    %v1488 = vadd.f32 %v1408, %v1480
    %v1489 = vadd.f32 %v1409, %v1485
    %v1490 = vxor.u32 %v1488, 2147483648
    %v1491 = vxor.u32 %v1489, 2147483648
    %v1492 = vmul.f32 %v1490, 1.442695
    %v1493 = vpow.pop %v1492
    %v1494 = vmul.f32 %v1491, 1.442695
    %v1495 = vpow.pop %v1494
    %v1496 = vadd.f32 %v1493, 1.0
    %v1497 = vadd.f32 %v1495, 1.0
    %v1498 = vrcp.pop %v1496
    %v1499 = vmul.f32 1.0, %v1498
    %v1500 = vrcp.pop %v1497
    %v1501 = vmul.f32 1.0, %v1500
    %v1502 = vld [vmem:[%s193] sm:$0xff]
    %v1503 = vld [vmem:[%s193 + $0x8] sm:$0x3]
    %v1504 = vmul.f32 %v1499, %v1406
    %v1505 = vmul.f32 %v1501, %v1407
    %v1507 = vsel %vm473, %v1505, 0
    %1509 = vmatprep.subr.mxu0 0.0
    %1510 = vmatpush1.msra.mxu0 %v1504
    %1511 = vmatprep.subr.mxu0 0.0
    %1512 = vmatpush1.msra.mxu0 %v1507
    %1513 = vmatprep.subr.mxu0 0.0
    %1514 = vmatpush1.msra.mxu0 0.0
    %1515 = vmatprep.subr.mxu0 0.0
    %1516 = vmatpush1.msra.mxu0 0.0
    %1517 = vmatprep.subr.mxu0 0.0
    %1518 = vmatpush1.msra.mxu0 0.0
    %1519 = vmatprep.subr.mxu0 0.0
    %1520 = vmatpush1.msra.mxu0 0.0
    %1521 = vmatprep.subr.mxu0 0.0
    %1522 = vmatpush1.msra.mxu0 0.0
    %1523 = vmatprep.subr.mxu0 0.0
    %1524 = vmatpush1.msra.mxu0 0.0
    %1525 = vmatprep.subr.mxu0 0.0
    %1526 = vmatpush1.msra.mxu0 0.0
    %1527 = vmatprep.subr.mxu0 0.0
    %1528 = vmatpush1.msra.mxu0 0.0
    %1529 = vmatprep.subr.mxu0 0.0
    %1530 = vmatpush1.msra.mxu0 0.0
    %1531 = vmatprep.subr.mxu0 0.0
    %1532 = vmatpush1.msra.mxu0 0.0
    %1533 = vmatprep.subr.mxu0 0.0
    %1534 = vmatpush1.msra.mxu0 0.0
    %1535 = vmatprep.subr.mxu0 0.0
    %1536 = vmatpush1.msra.mxu0 0.0
    %1537 = vmatprep.subr.mxu0 0.0
    %1538 = vmatpush1.msra.mxu0 0.0
    %1539 = vmatprep.subr.mxu0 0.0
    %1540 = vmatpush1.msra.mxu0 0.0
    %1541 = vmatprep.subr.mxu0 0.0
    %1542 = vmatpush1.msra.mxu0 0.0
    %1543 = vmatprep.subr.mxu0 0.0
    %1544 = vmatpush1.msra.mxu0 0.0
    %1545 = vmatprep.subr.mxu0 0.0
    %1546 = vmatpush1.msra.mxu0 0.0
    %1547 = vmatprep.subr.mxu0 0.0
    %1548 = vmatpush1.msra.mxu0 0.0
    %1549 = vmatprep.subr.mxu0 0.0
    %1550 = vmatpush1.msra.mxu0 0.0
    %1551 = vmatprep.subr.mxu0 0.0
    %1552 = vmatpush1.msra.mxu0 0.0
    %1553 = vmatprep.subr.mxu0 0.0
    %1554 = vmatpush1.msra.mxu0 0.0
    %1555 = vmatprep.subr.mxu0 0.0
    %1556 = vmatpush1.msra.mxu0 0.0
    %1557 = vmatprep.subr.mxu0 0.0
    %1558 = vmatpush1.msra.mxu0 0.0
    %1559 = vmatprep.subr.mxu0 0.0
    %1560 = vmatpush1.msra.mxu0 0.0
    %1561 = vmatprep.subr.mxu0 0.0
    %1562 = vmatpush1.msra.mxu0 0.0
    %1563 = vmatprep.subr.mxu0 0.0
    %1564 = vmatpush1.msra.mxu0 0.0
    %1565 = vmatprep.subr.mxu0 0.0
    %1566 = vmatpush1.msra.mxu0 0.0
    %1567 = vmatprep.subr.mxu0 0.0
    %1568 = vmatpush1.msra.mxu0 0.0
    %1569 = vmatprep.subr.mxu0 0.0
    %1570 = vmatpush1.msra.mxu0 0.0
    %1571 = vmatprep.subr.mxu0 0.0
    %1572 = vmatpush1.msra.mxu0 0.0
    %1573 = vmatprep.mubr.f32.mxu0 0.0
    %1574 = vmatmul.mubr.f32.gmra.mrb[0].mxu0 %v571
    %v1575 = vpop.f32.mrb[0].mxu0
    %v1576 = vadd.f32 0.0, %v1575
    %v1577 = vpop.f32.mrb[0].mxu0
    %1578 = vmatprep.mubr.f32.mxu0 0.0
    %1579 = vmatmul.mubr.f32.gmra.mrb[0].mxu0 %v574
    %v1580 = vpop.f32.mrb[0].mxu0
    %v1581 = vadd.f32 0.0, %v1580
    %v1582 = vpop.f32.mrb[0].mxu0
    %1583 = vdwg.mxu0
    %v1584 = vadd.f32 %v1502, %v1576
    %v1585 = vadd.f32 %v1503, %v1581
    %v1586 = vtanh.pop %v1584
    %v1587 = vtanh.pop %v1585
    %v1588 = vsub.f32 %v1586, %v1406
    %v1589 = vsub.f32 %v1587, %v1407
    %v1590 = vmul.f32 %v1499, %v1588
    %v1591 = vmul.f32 %v1501, %v1589
    %v1592 = vadd.f32 %v1406, %v1590
    %v1593 = vadd.f32 %v1407, %v1591
    %v1594 = vld [vmem:[%s205] sm:$0xff]
    %v1595 = vld [vmem:[%s205 + $0x8] sm:$0x3]
    %v1597 = vsel %vm473, %v1593, 0
    %1599 = vmatprep.subr.mxu0 0.0
    %1600 = vmatpush1.msra.mxu0 %v1592
    %1601 = vmatprep.subr.mxu0 0.0
    %1602 = vmatpush1.msra.mxu0 %v1597
    %1603 = vmatprep.subr.mxu0 0.0
    %1604 = vmatpush1.msra.mxu0 0.0
    %1605 = vmatprep.subr.mxu0 0.0
    %1606 = vmatpush1.msra.mxu0 0.0
    %1607 = vmatprep.subr.mxu0 0.0
    %1608 = vmatpush1.msra.mxu0 0.0
    %1609 = vmatprep.subr.mxu0 0.0
    %1610 = vmatpush1.msra.mxu0 0.0
    %1611 = vmatprep.subr.mxu0 0.0
    %1612 = vmatpush1.msra.mxu0 0.0
    %1613 = vmatprep.subr.mxu0 0.0
    %1614 = vmatpush1.msra.mxu0 0.0
    %1615 = vmatprep.subr.mxu0 0.0
    %1616 = vmatpush1.msra.mxu0 0.0
    %1617 = vmatprep.subr.mxu0 0.0
    %1618 = vmatpush1.msra.mxu0 0.0
    %1619 = vmatprep.subr.mxu0 0.0
    %1620 = vmatpush1.msra.mxu0 0.0
    %1621 = vmatprep.subr.mxu0 0.0
    %1622 = vmatpush1.msra.mxu0 0.0
    %1623 = vmatprep.subr.mxu0 0.0
    %1624 = vmatpush1.msra.mxu0 0.0
    %1625 = vmatprep.subr.mxu0 0.0
    %1626 = vmatpush1.msra.mxu0 0.0
    %1627 = vmatprep.subr.mxu0 0.0
    %1628 = vmatpush1.msra.mxu0 0.0
    %1629 = vmatprep.subr.mxu0 0.0
    %1630 = vmatpush1.msra.mxu0 0.0
    %1631 = vmatprep.subr.mxu0 0.0
    %1632 = vmatpush1.msra.mxu0 0.0
    %1633 = vmatprep.subr.mxu0 0.0
    %1634 = vmatpush1.msra.mxu0 0.0
    %1635 = vmatprep.subr.mxu0 0.0
    %1636 = vmatpush1.msra.mxu0 0.0
    %1637 = vmatprep.subr.mxu0 0.0
    %1638 = vmatpush1.msra.mxu0 0.0
    %1639 = vmatprep.subr.mxu0 0.0
    %1640 = vmatpush1.msra.mxu0 0.0
    %1641 = vmatprep.subr.mxu0 0.0
    %1642 = vmatpush1.msra.mxu0 0.0
    %1643 = vmatprep.subr.mxu0 0.0
    %1644 = vmatpush1.msra.mxu0 0.0
    %1645 = vmatprep.subr.mxu0 0.0
    %1646 = vmatpush1.msra.mxu0 0.0
    %1647 = vmatprep.subr.mxu0 0.0
    %1648 = vmatpush1.msra.mxu0 0.0
    %1649 = vmatprep.subr.mxu0 0.0
    %1650 = vmatpush1.msra.mxu0 0.0
    %1651 = vmatprep.subr.mxu0 0.0
    %1652 = vmatpush1.msra.mxu0 0.0
    %1653 = vmatprep.subr.mxu0 0.0
    %1654 = vmatpush1.msra.mxu0 0.0
    %1655 = vmatprep.subr.mxu0 0.0
    %1656 = vmatpush1.msra.mxu0 0.0
    %1657 = vmatprep.subr.mxu0 0.0
    %1658 = vmatpush1.msra.mxu0 0.0
    %1659 = vmatprep.subr.mxu0 0.0
    %1660 = vmatpush1.msra.mxu0 0.0
    %1661 = vmatprep.subr.mxu0 0.0
    %1662 = vmatpush1.msra.mxu0 0.0
    %1663 = vmatprep.mubr.f32.mxu0 0.0
    %1664 = vmatmul.mubr.f32.gmra.mrb[0].mxu0 %v468
    %v1665 = vpop.f32.mrb[0].mxu0
    %v1666 = vadd.f32 0.0, %v1665
    %v1667 = vpop.f32.mrb[0].mxu0
    %1668 = vmatprep.mubr.f32.mxu0 0.0
    %1669 = vmatmul.mubr.f32.gmra.mrb[0].mxu0 %v471
    %v1670 = vpop.f32.mrb[0].mxu0
    %v1671 = vadd.f32 0.0, %v1670
    %v1672 = vpop.f32.mrb[0].mxu0
    %1673 = vdwg.mxu0
    %v1674 = vadd.f32 %v1594, %v1666
    %v1675 = vadd.f32 %v1595, %v1671
    %v1676 = vxor.u32 %v1674, 2147483648
    %v1677 = vxor.u32 %v1675, 2147483648
    %v1678 = vmul.f32 %v1676, 1.442695
    %v1679 = vpow.pop %v1678
    %v1680 = vmul.f32 %v1677, 1.442695
    %v1681 = vpow.pop %v1680
    %v1682 = vadd.f32 %v1679, 1.0
    %v1683 = vadd.f32 %v1681, 1.0
    %v1684 = vrcp.pop %v1682
    %v1685 = vmul.f32 1.0, %v1684
    %v1686 = vrcp.pop %v1683
    %v1687 = vmul.f32 1.0, %v1686
    %v1688 = vld [vmem:[%s212] sm:$0xff]
    %v1689 = vld [vmem:[%s212 + $0x8] sm:$0x3]
    %v1690 = vmul.f32 %v1685, %v1592
    %v1691 = vmul.f32 %v1687, %v1593
    %v1693 = vsel %vm473, %v1691, 0
    %1695 = vmatprep.subr.mxu0 0.0
    %1696 = vmatpush1.msra.mxu0 %v1690
    %1697 = vmatprep.subr.mxu0 0.0
    %1698 = vmatpush1.msra.mxu0 %v1693
    %1699 = vmatprep.subr.mxu0 0.0
    %1700 = vmatpush1.msra.mxu0 0.0
    %1701 = vmatprep.subr.mxu0 0.0
    %1702 = vmatpush1.msra.mxu0 0.0
    %1703 = vmatprep.subr.mxu0 0.0
    %1704 = vmatpush1.msra.mxu0 0.0
    %1705 = vmatprep.subr.mxu0 0.0
    %1706 = vmatpush1.msra.mxu0 0.0
    %1707 = vmatprep.subr.mxu0 0.0
    %1708 = vmatpush1.msra.mxu0 0.0
    %1709 = vmatprep.subr.mxu0 0.0
    %1710 = vmatpush1.msra.mxu0 0.0
    %1711 = vmatprep.subr.mxu0 0.0
    %1712 = vmatpush1.msra.mxu0 0.0
    %1713 = vmatprep.subr.mxu0 0.0
    %1714 = vmatpush1.msra.mxu0 0.0
    %1715 = vmatprep.subr.mxu0 0.0
    %1716 = vmatpush1.msra.mxu0 0.0
    %1717 = vmatprep.subr.mxu0 0.0
    %1718 = vmatpush1.msra.mxu0 0.0
    %1719 = vmatprep.subr.mxu0 0.0
    %1720 = vmatpush1.msra.mxu0 0.0
    %1721 = vmatprep.subr.mxu0 0.0
    %1722 = vmatpush1.msra.mxu0 0.0
    %1723 = vmatprep.subr.mxu0 0.0
    %1724 = vmatpush1.msra.mxu0 0.0
    %1725 = vmatprep.subr.mxu0 0.0
    %1726 = vmatpush1.msra.mxu0 0.0
    %1727 = vmatprep.subr.mxu0 0.0
    %1728 = vmatpush1.msra.mxu0 0.0
    %1729 = vmatprep.subr.mxu0 0.0
    %1730 = vmatpush1.msra.mxu0 0.0
    %1731 = vmatprep.subr.mxu0 0.0
    %1732 = vmatpush1.msra.mxu0 0.0
    %1733 = vmatprep.subr.mxu0 0.0
    %1734 = vmatpush1.msra.mxu0 0.0
    %1735 = vmatprep.subr.mxu0 0.0
    %1736 = vmatpush1.msra.mxu0 0.0
    %1737 = vmatprep.subr.mxu0 0.0
    %1738 = vmatpush1.msra.mxu0 0.0
    %1739 = vmatprep.subr.mxu0 0.0
    %1740 = vmatpush1.msra.mxu0 0.0
    %1741 = vmatprep.subr.mxu0 0.0
    %1742 = vmatpush1.msra.mxu0 0.0
    %1743 = vmatprep.subr.mxu0 0.0
    %1744 = vmatpush1.msra.mxu0 0.0
    %1745 = vmatprep.subr.mxu0 0.0
    %1746 = vmatpush1.msra.mxu0 0.0
    %1747 = vmatprep.subr.mxu0 0.0
    %1748 = vmatpush1.msra.mxu0 0.0
    %1749 = vmatprep.subr.mxu0 0.0
    %1750 = vmatpush1.msra.mxu0 0.0
    %1751 = vmatprep.subr.mxu0 0.0
    %1752 = vmatpush1.msra.mxu0 0.0
    %1753 = vmatprep.subr.mxu0 0.0
    %1754 = vmatpush1.msra.mxu0 0.0
    %1755 = vmatprep.subr.mxu0 0.0
    %1756 = vmatpush1.msra.mxu0 0.0
    %1757 = vmatprep.subr.mxu0 0.0
    %1758 = vmatpush1.msra.mxu0 0.0
    %1759 = vmatprep.mubr.f32.mxu0 0.0
    %1760 = vmatmul.mubr.f32.gmra.mrb[0].mxu0 %v571
    %v1761 = vpop.f32.mrb[0].mxu0
    %v1762 = vadd.f32 0.0, %v1761
    %v1763 = vpop.f32.mrb[0].mxu0
    %1764 = vmatprep.mubr.f32.mxu0 0.0
    %1765 = vmatmul.mubr.f32.gmra.mrb[0].mxu0 %v574
    %v1766 = vpop.f32.mrb[0].mxu0
    %v1767 = vadd.f32 0.0, %v1766
    %v1768 = vpop.f32.mrb[0].mxu0
    %1769 = vdwg.mxu0
    %v1770 = vadd.f32 %v1688, %v1762
    %v1771 = vadd.f32 %v1689, %v1767
    %v1772 = vtanh.pop %v1770
    %v1773 = vtanh.pop %v1771
    %v1774 = vsub.f32 %v1772, %v1592
    %v1775 = vsub.f32 %v1773, %v1593
    %v1776 = vmul.f32 %v1685, %v1774
    %v1777 = vmul.f32 %v1687, %v1775
    %v1778 = vadd.f32 %v1592, %v1776
    %v1779 = vadd.f32 %v1593, %v1777
    %v1780 = vld [vmem:[%s224] sm:$0xff]
    %v1781 = vld [vmem:[%s224 + $0x8] sm:$0x3]
    %v1783 = vsel %vm473, %v1779, 0
    %1785 = vmatprep.subr.mxu0 0.0
    %1786 = vmatpush1.msra.mxu0 %v1778
    %1787 = vmatprep.subr.mxu0 0.0
    %1788 = vmatpush1.msra.mxu0 %v1783
    %1789 = vmatprep.subr.mxu0 0.0
    %1790 = vmatpush1.msra.mxu0 0.0
    %1791 = vmatprep.subr.mxu0 0.0
    %1792 = vmatpush1.msra.mxu0 0.0
    %1793 = vmatprep.subr.mxu0 0.0
    %1794 = vmatpush1.msra.mxu0 0.0
    %1795 = vmatprep.subr.mxu0 0.0
    %1796 = vmatpush1.msra.mxu0 0.0
    %1797 = vmatprep.subr.mxu0 0.0
    %1798 = vmatpush1.msra.mxu0 0.0
    %1799 = vmatprep.subr.mxu0 0.0
    %1800 = vmatpush1.msra.mxu0 0.0
    %1801 = vmatprep.subr.mxu0 0.0
    %1802 = vmatpush1.msra.mxu0 0.0
    %1803 = vmatprep.subr.mxu0 0.0
    %1804 = vmatpush1.msra.mxu0 0.0
    %1805 = vmatprep.subr.mxu0 0.0
    %1806 = vmatpush1.msra.mxu0 0.0
    %1807 = vmatprep.subr.mxu0 0.0
    %1808 = vmatpush1.msra.mxu0 0.0
    %1809 = vmatprep.subr.mxu0 0.0
    %1810 = vmatpush1.msra.mxu0 0.0
    %1811 = vmatprep.subr.mxu0 0.0
    %1812 = vmatpush1.msra.mxu0 0.0
    %1813 = vmatprep.subr.mxu0 0.0
    %1814 = vmatpush1.msra.mxu0 0.0
    %1815 = vmatprep.subr.mxu0 0.0
    %1816 = vmatpush1.msra.mxu0 0.0
    %1817 = vmatprep.subr.mxu0 0.0
    %1818 = vmatpush1.msra.mxu0 0.0
    %1819 = vmatprep.subr.mxu0 0.0
    %1820 = vmatpush1.msra.mxu0 0.0
    %1821 = vmatprep.subr.mxu0 0.0
    %1822 = vmatpush1.msra.mxu0 0.0
    %1823 = vmatprep.subr.mxu0 0.0
    %1824 = vmatpush1.msra.mxu0 0.0
    %1825 = vmatprep.subr.mxu0 0.0
    %1826 = vmatpush1.msra.mxu0 0.0
    %1827 = vmatprep.subr.mxu0 0.0
    %1828 = vmatpush1.msra.mxu0 0.0
    %1829 = vmatprep.subr.mxu0 0.0
    %1830 = vmatpush1.msra.mxu0 0.0
    %1831 = vmatprep.subr.mxu0 0.0
    %1832 = vmatpush1.msra.mxu0 0.0
    %1833 = vmatprep.subr.mxu0 0.0
    %1834 = vmatpush1.msra.mxu0 0.0
    %1835 = vmatprep.subr.mxu0 0.0
    %1836 = vmatpush1.msra.mxu0 0.0
    %1837 = vmatprep.subr.mxu0 0.0
    %1838 = vmatpush1.msra.mxu0 0.0
    %1839 = vmatprep.subr.mxu0 0.0
    %1840 = vmatpush1.msra.mxu0 0.0
    %1841 = vmatprep.subr.mxu0 0.0
    %1842 = vmatpush1.msra.mxu0 0.0
    %1843 = vmatprep.subr.mxu0 0.0
    %1844 = vmatpush1.msra.mxu0 0.0
    %1845 = vmatprep.subr.mxu0 0.0
    %1846 = vmatpush1.msra.mxu0 0.0
    %1847 = vmatprep.subr.mxu0 0.0
    %1848 = vmatpush1.msra.mxu0 0.0
    %1849 = vmatprep.mubr.f32.mxu0 0.0
    %1850 = vmatmul.mubr.f32.gmra.mrb[0].mxu0 %v468
    %v1851 = vpop.f32.mrb[0].mxu0
    %v1852 = vadd.f32 0.0, %v1851
    %v1853 = vpop.f32.mrb[0].mxu0
    %1854 = vmatprep.mubr.f32.mxu0 0.0
    %1855 = vmatmul.mubr.f32.gmra.mrb[0].mxu0 %v471
    %v1856 = vpop.f32.mrb[0].mxu0
    %v1857 = vadd.f32 0.0, %v1856
    %v1858 = vpop.f32.mrb[0].mxu0
    %1859 = vdwg.mxu0
    %v1860 = vadd.f32 %v1780, %v1852
    %v1861 = vadd.f32 %v1781, %v1857
    %v1862 = vxor.u32 %v1860, 2147483648
    %v1863 = vxor.u32 %v1861, 2147483648
    %v1864 = vmul.f32 %v1862, 1.442695
    %v1865 = vpow.pop %v1864
    %v1866 = vmul.f32 %v1863, 1.442695
    %v1867 = vpow.pop %v1866
    %v1868 = vadd.f32 %v1865, 1.0
    %v1869 = vadd.f32 %v1867, 1.0
    %v1870 = vrcp.pop %v1868
    %v1871 = vmul.f32 1.0, %v1870
    %v1872 = vrcp.pop %v1869
    %v1873 = vmul.f32 1.0, %v1872
    %v1874 = vld [vmem:[%s231] sm:$0xff]
    %v1875 = vld [vmem:[%s231 + $0x8] sm:$0x3]
    %v1876 = vmul.f32 %v1871, %v1778
    %v1877 = vmul.f32 %v1873, %v1779
    %v1879 = vsel %vm473, %v1877, 0
    %1881 = vmatprep.subr.mxu0 0.0
    %1882 = vmatpush1.msra.mxu0 %v1876
    %1883 = vmatprep.subr.mxu0 0.0
    %1884 = vmatpush1.msra.mxu0 %v1879
    %1885 = vmatprep.subr.mxu0 0.0
    %1886 = vmatpush1.msra.mxu0 0.0
    %1887 = vmatprep.subr.mxu0 0.0
    %1888 = vmatpush1.msra.mxu0 0.0
    %1889 = vmatprep.subr.mxu0 0.0
    %1890 = vmatpush1.msra.mxu0 0.0
    %1891 = vmatprep.subr.mxu0 0.0
    %1892 = vmatpush1.msra.mxu0 0.0
    %1893 = vmatprep.subr.mxu0 0.0
    %1894 = vmatpush1.msra.mxu0 0.0
    %1895 = vmatprep.subr.mxu0 0.0
    %1896 = vmatpush1.msra.mxu0 0.0
    %1897 = vmatprep.subr.mxu0 0.0
    %1898 = vmatpush1.msra.mxu0 0.0
    %1899 = vmatprep.subr.mxu0 0.0
    %1900 = vmatpush1.msra.mxu0 0.0
    %1901 = vmatprep.subr.mxu0 0.0
    %1902 = vmatpush1.msra.mxu0 0.0
    %1903 = vmatprep.subr.mxu0 0.0
    %1904 = vmatpush1.msra.mxu0 0.0
    %1905 = vmatprep.subr.mxu0 0.0
    %1906 = vmatpush1.msra.mxu0 0.0
    %1907 = vmatprep.subr.mxu0 0.0
    %1908 = vmatpush1.msra.mxu0 0.0
    %1909 = vmatprep.subr.mxu0 0.0
    %1910 = vmatpush1.msra.mxu0 0.0
    %1911 = vmatprep.subr.mxu0 0.0
    %1912 = vmatpush1.msra.mxu0 0.0
    %1913 = vmatprep.subr.mxu0 0.0
    %1914 = vmatpush1.msra.mxu0 0.0
    %1915 = vmatprep.subr.mxu0 0.0
    %1916 = vmatpush1.msra.mxu0 0.0
    %1917 = vmatprep.subr.mxu0 0.0
    %1918 = vmatpush1.msra.mxu0 0.0
    %1919 = vmatprep.subr.mxu0 0.0
    %1920 = vmatpush1.msra.mxu0 0.0
    %1921 = vmatprep.subr.mxu0 0.0
    %1922 = vmatpush1.msra.mxu0 0.0
    %1923 = vmatprep.subr.mxu0 0.0
    %1924 = vmatpush1.msra.mxu0 0.0
    %1925 = vmatprep.subr.mxu0 0.0
    %1926 = vmatpush1.msra.mxu0 0.0
    %1927 = vmatprep.subr.mxu0 0.0
    %1928 = vmatpush1.msra.mxu0 0.0
    %1929 = vmatprep.subr.mxu0 0.0
    %1930 = vmatpush1.msra.mxu0 0.0
    %1931 = vmatprep.subr.mxu0 0.0
    %1932 = vmatpush1.msra.mxu0 0.0
    %1933 = vmatprep.subr.mxu0 0.0
    %1934 = vmatpush1.msra.mxu0 0.0
    %1935 = vmatprep.subr.mxu0 0.0
    %1936 = vmatpush1.msra.mxu0 0.0
    %1937 = vmatprep.subr.mxu0 0.0
    %1938 = vmatpush1.msra.mxu0 0.0
    %1939 = vmatprep.subr.mxu0 0.0
    %1940 = vmatpush1.msra.mxu0 0.0
    %1941 = vmatprep.subr.mxu0 0.0
    %1942 = vmatpush1.msra.mxu0 0.0
    %1943 = vmatprep.subr.mxu0 0.0
    %1944 = vmatpush1.msra.mxu0 0.0
    %1945 = vmatprep.mubr.f32.mxu0 0.0
    %1946 = vmatmul.mubr.f32.gmra.mrb[0].mxu0 %v571
    %v1947 = vpop.f32.mrb[0].mxu0
    %v1948 = vadd.f32 0.0, %v1947
    %v1949 = vpop.f32.mrb[0].mxu0
    %1950 = vmatprep.mubr.f32.mxu0 0.0
    %1951 = vmatmul.mubr.f32.gmra.mrb[0].mxu0 %v574
    %v1952 = vpop.f32.mrb[0].mxu0
    %v1953 = vadd.f32 0.0, %v1952
    %v1954 = vpop.f32.mrb[0].mxu0
    %1955 = vdwg.mxu0
    %v1956 = vadd.f32 %v1874, %v1948
    %v1957 = vadd.f32 %v1875, %v1953
    %v1958 = vtanh.pop %v1956
    %v1959 = vtanh.pop %v1957
    %v1960 = vsub.f32 %v1958, %v1778
    %v1961 = vsub.f32 %v1959, %v1779
    %v1962 = vmul.f32 %v1871, %v1960
    %v1963 = vmul.f32 %v1873, %v1961
    %v1964 = vadd.f32 %v1778, %v1962
    %v1965 = vadd.f32 %v1779, %v1963
    %v1966 = vld [vmem:[%s243] sm:$0xff]
    %v1967 = vld [vmem:[%s243 + $0x8] sm:$0x3]
    %v1969 = vsel %vm473, %v1965, 0
    %1971 = vmatprep.subr.mxu0 0.0
    %1972 = vmatpush1.msra.mxu0 %v1964
    %1973 = vmatprep.subr.mxu0 0.0
    %1974 = vmatpush1.msra.mxu0 %v1969
    %1975 = vmatprep.subr.mxu0 0.0
    %1976 = vmatpush1.msra.mxu0 0.0
    %1977 = vmatprep.subr.mxu0 0.0
    %1978 = vmatpush1.msra.mxu0 0.0
    %1979 = vmatprep.subr.mxu0 0.0
    %1980 = vmatpush1.msra.mxu0 0.0
    %1981 = vmatprep.subr.mxu0 0.0
    %1982 = vmatpush1.msra.mxu0 0.0
    %1983 = vmatprep.subr.mxu0 0.0
    %1984 = vmatpush1.msra.mxu0 0.0
    %1985 = vmatprep.subr.mxu0 0.0
    %1986 = vmatpush1.msra.mxu0 0.0
    %1987 = vmatprep.subr.mxu0 0.0
    %1988 = vmatpush1.msra.mxu0 0.0
    %1989 = vmatprep.subr.mxu0 0.0
    %1990 = vmatpush1.msra.mxu0 0.0
    %1991 = vmatprep.subr.mxu0 0.0
    %1992 = vmatpush1.msra.mxu0 0.0
    %1993 = vmatprep.subr.mxu0 0.0
    %1994 = vmatpush1.msra.mxu0 0.0
    %1995 = vmatprep.subr.mxu0 0.0
    %1996 = vmatpush1.msra.mxu0 0.0
    %1997 = vmatprep.subr.mxu0 0.0
    %1998 = vmatpush1.msra.mxu0 0.0
    %1999 = vmatprep.subr.mxu0 0.0
    %2000 = vmatpush1.msra.mxu0 0.0
    %2001 = vmatprep.subr.mxu0 0.0
    %2002 = vmatpush1.msra.mxu0 0.0
    %2003 = vmatprep.subr.mxu0 0.0
    %2004 = vmatpush1.msra.mxu0 0.0
    %2005 = vmatprep.subr.mxu0 0.0
    %2006 = vmatpush1.msra.mxu0 0.0
    %2007 = vmatprep.subr.mxu0 0.0
    %2008 = vmatpush1.msra.mxu0 0.0
    %2009 = vmatprep.subr.mxu0 0.0
    %2010 = vmatpush1.msra.mxu0 0.0
    %2011 = vmatprep.subr.mxu0 0.0
    %2012 = vmatpush1.msra.mxu0 0.0
    %2013 = vmatprep.subr.mxu0 0.0
    %2014 = vmatpush1.msra.mxu0 0.0
    %2015 = vmatprep.subr.mxu0 0.0
    %2016 = vmatpush1.msra.mxu0 0.0
    %2017 = vmatprep.subr.mxu0 0.0
    %2018 = vmatpush1.msra.mxu0 0.0
    %2019 = vmatprep.subr.mxu0 0.0
    %2020 = vmatpush1.msra.mxu0 0.0
    %2021 = vmatprep.subr.mxu0 0.0
    %2022 = vmatpush1.msra.mxu0 0.0
    %2023 = vmatprep.subr.mxu0 0.0
    %2024 = vmatpush1.msra.mxu0 0.0
    %2025 = vmatprep.subr.mxu0 0.0
    %2026 = vmatpush1.msra.mxu0 0.0
    %2027 = vmatprep.subr.mxu0 0.0
    %2028 = vmatpush1.msra.mxu0 0.0
    %2029 = vmatprep.subr.mxu0 0.0
    %2030 = vmatpush1.msra.mxu0 0.0
    %2031 = vmatprep.subr.mxu0 0.0
    %2032 = vmatpush1.msra.mxu0 0.0
    %2033 = vmatprep.subr.mxu0 0.0
    %2034 = vmatpush1.msra.mxu0 0.0
    %2035 = vmatprep.mubr.f32.mxu0 0.0
    %2036 = vmatmul.mubr.f32.gmra.mrb[0].mxu0 %v468
    %v2037 = vpop.f32.mrb[0].mxu0
    %v2038 = vadd.f32 0.0, %v2037
    %v2039 = vpop.f32.mrb[0].mxu0
    %2040 = vmatprep.mubr.f32.mxu0 0.0
    %2041 = vmatmul.mubr.f32.gmra.mrb[0].mxu0 %v471
    %v2042 = vpop.f32.mrb[0].mxu0
    %v2043 = vadd.f32 0.0, %v2042
    %v2044 = vpop.f32.mrb[0].mxu0
    %2045 = vdwg.mxu0
    %v2046 = vadd.f32 %v1966, %v2038
    %v2047 = vadd.f32 %v1967, %v2043
    %v2048 = vxor.u32 %v2046, 2147483648
    %v2049 = vxor.u32 %v2047, 2147483648
    %v2050 = vmul.f32 %v2048, 1.442695
    %v2051 = vpow.pop %v2050
    %v2052 = vmul.f32 %v2049, 1.442695
    %v2053 = vpow.pop %v2052
    %v2054 = vadd.f32 %v2051, 1.0
    %v2055 = vadd.f32 %v2053, 1.0
    %v2056 = vrcp.pop %v2054
    %v2057 = vmul.f32 1.0, %v2056
    %v2058 = vrcp.pop %v2055
    %v2059 = vmul.f32 1.0, %v2058
    %v2060 = vld [vmem:[%s250] sm:$0xff]
    %v2061 = vld [vmem:[%s250 + $0x8] sm:$0x3]
    %v2062 = vmul.f32 %v2057, %v1964
    %v2063 = vmul.f32 %v2059, %v1965
    %v2065 = vsel %vm473, %v2063, 0
    %2067 = vmatprep.subr.mxu0 0.0
    %2068 = vmatpush1.msra.mxu0 %v2062
    %2069 = vmatprep.subr.mxu0 0.0
    %2070 = vmatpush1.msra.mxu0 %v2065
    %2071 = vmatprep.subr.mxu0 0.0
    %2072 = vmatpush1.msra.mxu0 0.0
    %2073 = vmatprep.subr.mxu0 0.0
    %2074 = vmatpush1.msra.mxu0 0.0
    %2075 = vmatprep.subr.mxu0 0.0
    %2076 = vmatpush1.msra.mxu0 0.0
    %2077 = vmatprep.subr.mxu0 0.0
    %2078 = vmatpush1.msra.mxu0 0.0
    %2079 = vmatprep.subr.mxu0 0.0
    %2080 = vmatpush1.msra.mxu0 0.0
    %2081 = vmatprep.subr.mxu0 0.0
    %2082 = vmatpush1.msra.mxu0 0.0
    %2083 = vmatprep.subr.mxu0 0.0
    %2084 = vmatpush1.msra.mxu0 0.0
    %2085 = vmatprep.subr.mxu0 0.0
    %2086 = vmatpush1.msra.mxu0 0.0
    %2087 = vmatprep.subr.mxu0 0.0
    %2088 = vmatpush1.msra.mxu0 0.0
    %2089 = vmatprep.subr.mxu0 0.0
    %2090 = vmatpush1.msra.mxu0 0.0
    %2091 = vmatprep.subr.mxu0 0.0
    %2092 = vmatpush1.msra.mxu0 0.0
    %2093 = vmatprep.subr.mxu0 0.0
    %2094 = vmatpush1.msra.mxu0 0.0
    %2095 = vmatprep.subr.mxu0 0.0
    %2096 = vmatpush1.msra.mxu0 0.0
    %2097 = vmatprep.subr.mxu0 0.0
    %2098 = vmatpush1.msra.mxu0 0.0
    %2099 = vmatprep.subr.mxu0 0.0
    %2100 = vmatpush1.msra.mxu0 0.0
    %2101 = vmatprep.subr.mxu0 0.0
    %2102 = vmatpush1.msra.mxu0 0.0
    %2103 = vmatprep.subr.mxu0 0.0
    %2104 = vmatpush1.msra.mxu0 0.0
    %2105 = vmatprep.subr.mxu0 0.0
    %2106 = vmatpush1.msra.mxu0 0.0
    %2107 = vmatprep.subr.mxu0 0.0
    %2108 = vmatpush1.msra.mxu0 0.0
    %2109 = vmatprep.subr.mxu0 0.0
    %2110 = vmatpush1.msra.mxu0 0.0
    %2111 = vmatprep.subr.mxu0 0.0
    %2112 = vmatpush1.msra.mxu0 0.0
    %2113 = vmatprep.subr.mxu0 0.0
    %2114 = vmatpush1.msra.mxu0 0.0
    %2115 = vmatprep.subr.mxu0 0.0
    %2116 = vmatpush1.msra.mxu0 0.0
    %2117 = vmatprep.subr.mxu0 0.0
    %2118 = vmatpush1.msra.mxu0 0.0
    %2119 = vmatprep.subr.mxu0 0.0
    %2120 = vmatpush1.msra.mxu0 0.0
    %2121 = vmatprep.subr.mxu0 0.0
    %2122 = vmatpush1.msra.mxu0 0.0
    %2123 = vmatprep.subr.mxu0 0.0
    %2124 = vmatpush1.msra.mxu0 0.0
    %2125 = vmatprep.subr.mxu0 0.0
    %2126 = vmatpush1.msra.mxu0 0.0
    %2127 = vmatprep.subr.mxu0 0.0
    %2128 = vmatpush1.msra.mxu0 0.0
    %2129 = vmatprep.subr.mxu0 0.0
    %2130 = vmatpush1.msra.mxu0 0.0
    %2131 = vmatprep.mubr.f32.mxu0 0.0
    %2132 = vmatmul.mubr.f32.gmra.mrb[0].mxu0 %v571
    %v2133 = vpop.f32.mrb[0].mxu0
    %v2134 = vadd.f32 0.0, %v2133
    %v2135 = vpop.f32.mrb[0].mxu0
    %2136 = vmatprep.mubr.f32.mxu0 0.0
    %2137 = vmatmul.mubr.f32.gmra.mrb[0].mxu0 %v574
    %v2138 = vpop.f32.mrb[0].mxu0
    %v2139 = vadd.f32 0.0, %v2138
    %v2140 = vpop.f32.mrb[0].mxu0
    %2141 = vdwg.mxu0
    %v2142 = vadd.f32 %v2060, %v2134
    %v2143 = vadd.f32 %v2061, %v2139
    %v2144 = vtanh.pop %v2142
    %v2145 = vtanh.pop %v2143
    %v2146 = vsub.f32 %v2144, %v1964
    %v2147 = vsub.f32 %v2145, %v1965
    %v2148 = vmul.f32 %v2057, %v2146
    %v2149 = vmul.f32 %v2059, %v2147
    %v2150 = vadd.f32 %v1964, %v2148
    %v2151 = vadd.f32 %v1965, %v2149
    %v2152 = vld [vmem:[%s262] sm:$0xff]
    %v2153 = vld [vmem:[%s262 + $0x8] sm:$0x3]
    %v2155 = vsel %vm473, %v2151, 0
    %2157 = vmatprep.subr.mxu0 0.0
    %2158 = vmatpush1.msra.mxu0 %v2150
    %2159 = vmatprep.subr.mxu0 0.0
    %2160 = vmatpush1.msra.mxu0 %v2155
    %2161 = vmatprep.subr.mxu0 0.0
    %2162 = vmatpush1.msra.mxu0 0.0
    %2163 = vmatprep.subr.mxu0 0.0
    %2164 = vmatpush1.msra.mxu0 0.0
    %2165 = vmatprep.subr.mxu0 0.0
    %2166 = vmatpush1.msra.mxu0 0.0
    %2167 = vmatprep.subr.mxu0 0.0
    %2168 = vmatpush1.msra.mxu0 0.0
    %2169 = vmatprep.subr.mxu0 0.0
    %2170 = vmatpush1.msra.mxu0 0.0
    %2171 = vmatprep.subr.mxu0 0.0
    %2172 = vmatpush1.msra.mxu0 0.0
    %2173 = vmatprep.subr.mxu0 0.0
    %2174 = vmatpush1.msra.mxu0 0.0
    %2175 = vmatprep.subr.mxu0 0.0
    %2176 = vmatpush1.msra.mxu0 0.0
    %2177 = vmatprep.subr.mxu0 0.0
    %2178 = vmatpush1.msra.mxu0 0.0
    %2179 = vmatprep.subr.mxu0 0.0
    %2180 = vmatpush1.msra.mxu0 0.0
    %2181 = vmatprep.subr.mxu0 0.0
    %2182 = vmatpush1.msra.mxu0 0.0
    %2183 = vmatprep.subr.mxu0 0.0
    %2184 = vmatpush1.msra.mxu0 0.0
    %2185 = vmatprep.subr.mxu0 0.0
    %2186 = vmatpush1.msra.mxu0 0.0
    %2187 = vmatprep.subr.mxu0 0.0
    %2188 = vmatpush1.msra.mxu0 0.0
    %2189 = vmatprep.subr.mxu0 0.0
    %2190 = vmatpush1.msra.mxu0 0.0
    %2191 = vmatprep.subr.mxu0 0.0
    %2192 = vmatpush1.msra.mxu0 0.0
    %2193 = vmatprep.subr.mxu0 0.0
    %2194 = vmatpush1.msra.mxu0 0.0
    %2195 = vmatprep.subr.mxu0 0.0
    %2196 = vmatpush1.msra.mxu0 0.0
    %2197 = vmatprep.subr.mxu0 0.0
    %2198 = vmatpush1.msra.mxu0 0.0
    %2199 = vmatprep.subr.mxu0 0.0
    %2200 = vmatpush1.msra.mxu0 0.0
    %2201 = vmatprep.subr.mxu0 0.0
    %2202 = vmatpush1.msra.mxu0 0.0
    %2203 = vmatprep.subr.mxu0 0.0
    %2204 = vmatpush1.msra.mxu0 0.0
    %2205 = vmatprep.subr.mxu0 0.0
    %2206 = vmatpush1.msra.mxu0 0.0
    %2207 = vmatprep.subr.mxu0 0.0
    %2208 = vmatpush1.msra.mxu0 0.0
    %2209 = vmatprep.subr.mxu0 0.0
    %2210 = vmatpush1.msra.mxu0 0.0
    %2211 = vmatprep.subr.mxu0 0.0
    %2212 = vmatpush1.msra.mxu0 0.0
    %2213 = vmatprep.subr.mxu0 0.0
    %2214 = vmatpush1.msra.mxu0 0.0
    %2215 = vmatprep.subr.mxu0 0.0
    %2216 = vmatpush1.msra.mxu0 0.0
    %2217 = vmatprep.subr.mxu0 0.0
    %2218 = vmatpush1.msra.mxu0 0.0
    %2219 = vmatprep.subr.mxu0 0.0
    %2220 = vmatpush1.msra.mxu0 0.0
    %2221 = vmatprep.mubr.f32.mxu0 0.0
    %2222 = vmatmul.mubr.f32.gmra.mrb[0].mxu0 %v468
    %v2223 = vpop.f32.mrb[0].mxu0
    %v2224 = vadd.f32 0.0, %v2223
    %v2225 = vpop.f32.mrb[0].mxu0
    %2226 = vmatprep.mubr.f32.mxu0 0.0
    %2227 = vmatmul.mubr.f32.gmra.mrb[0].mxu0 %v471
    %v2228 = vpop.f32.mrb[0].mxu0
    %v2229 = vadd.f32 0.0, %v2228
    %v2230 = vpop.f32.mrb[0].mxu0
    %2231 = vdwg.mxu0
    %v2232 = vadd.f32 %v2152, %v2224
    %v2233 = vadd.f32 %v2153, %v2229
    %v2234 = vxor.u32 %v2232, 2147483648
    %v2235 = vxor.u32 %v2233, 2147483648
    %v2236 = vmul.f32 %v2234, 1.442695
    %v2237 = vpow.pop %v2236
    %v2238 = vmul.f32 %v2235, 1.442695
    %v2239 = vpow.pop %v2238
    %v2240 = vadd.f32 %v2237, 1.0
    %v2241 = vadd.f32 %v2239, 1.0
    %v2242 = vrcp.pop %v2240
    %v2243 = vmul.f32 1.0, %v2242
    %v2244 = vrcp.pop %v2241
    %v2245 = vmul.f32 1.0, %v2244
    %v2246 = vld [vmem:[%s269] sm:$0xff]
    %v2247 = vld [vmem:[%s269 + $0x8] sm:$0x3]
    %v2248 = vmul.f32 %v2243, %v2150
    %v2249 = vmul.f32 %v2245, %v2151
    %v2251 = vsel %vm473, %v2249, 0
    %2253 = vmatprep.subr.mxu0 0.0
    %2254 = vmatpush1.msra.mxu0 %v2248
    %2255 = vmatprep.subr.mxu0 0.0
    %2256 = vmatpush1.msra.mxu0 %v2251
    %2257 = vmatprep.subr.mxu0 0.0
    %2258 = vmatpush1.msra.mxu0 0.0
    %2259 = vmatprep.subr.mxu0 0.0
    %2260 = vmatpush1.msra.mxu0 0.0
    %2261 = vmatprep.subr.mxu0 0.0
    %2262 = vmatpush1.msra.mxu0 0.0
    %2263 = vmatprep.subr.mxu0 0.0
    %2264 = vmatpush1.msra.mxu0 0.0
    %2265 = vmatprep.subr.mxu0 0.0
    %2266 = vmatpush1.msra.mxu0 0.0
    %2267 = vmatprep.subr.mxu0 0.0
    %2268 = vmatpush1.msra.mxu0 0.0
    %2269 = vmatprep.subr.mxu0 0.0
    %2270 = vmatpush1.msra.mxu0 0.0
    %2271 = vmatprep.subr.mxu0 0.0
    %2272 = vmatpush1.msra.mxu0 0.0
    %2273 = vmatprep.subr.mxu0 0.0
    %2274 = vmatpush1.msra.mxu0 0.0
    %2275 = vmatprep.subr.mxu0 0.0
    %2276 = vmatpush1.msra.mxu0 0.0
    %2277 = vmatprep.subr.mxu0 0.0
    %2278 = vmatpush1.msra.mxu0 0.0
    %2279 = vmatprep.subr.mxu0 0.0
    %2280 = vmatpush1.msra.mxu0 0.0
    %2281 = vmatprep.subr.mxu0 0.0
    %2282 = vmatpush1.msra.mxu0 0.0
    %2283 = vmatprep.subr.mxu0 0.0
    %2284 = vmatpush1.msra.mxu0 0.0
    %2285 = vmatprep.subr.mxu0 0.0
    %2286 = vmatpush1.msra.mxu0 0.0
    %2287 = vmatprep.subr.mxu0 0.0
    %2288 = vmatpush1.msra.mxu0 0.0
    %2289 = vmatprep.subr.mxu0 0.0
    %2290 = vmatpush1.msra.mxu0 0.0
    %2291 = vmatprep.subr.mxu0 0.0
    %2292 = vmatpush1.msra.mxu0 0.0
    %2293 = vmatprep.subr.mxu0 0.0
    %2294 = vmatpush1.msra.mxu0 0.0
    %2295 = vmatprep.subr.mxu0 0.0
    %2296 = vmatpush1.msra.mxu0 0.0
    %2297 = vmatprep.subr.mxu0 0.0
    %2298 = vmatpush1.msra.mxu0 0.0
    %2299 = vmatprep.subr.mxu0 0.0
    %2300 = vmatpush1.msra.mxu0 0.0
    %2301 = vmatprep.subr.mxu0 0.0
    %2302 = vmatpush1.msra.mxu0 0.0
    %2303 = vmatprep.subr.mxu0 0.0
    %2304 = vmatpush1.msra.mxu0 0.0
    %2305 = vmatprep.subr.mxu0 0.0
    %2306 = vmatpush1.msra.mxu0 0.0
    %2307 = vmatprep.subr.mxu0 0.0
    %2308 = vmatpush1.msra.mxu0 0.0
    %2309 = vmatprep.subr.mxu0 0.0
    %2310 = vmatpush1.msra.mxu0 0.0
    %2311 = vmatprep.subr.mxu0 0.0
    %2312 = vmatpush1.msra.mxu0 0.0
    %2313 = vmatprep.subr.mxu0 0.0
    %2314 = vmatpush1.msra.mxu0 0.0
    %2315 = vmatprep.subr.mxu0 0.0
    %2316 = vmatpush1.msra.mxu0 0.0
    %2317 = vmatprep.mubr.f32.mxu0 0.0
    %2318 = vmatmul.mubr.f32.gmra.mrb[0].mxu0 %v571
    %v2319 = vpop.f32.mrb[0].mxu0
    %v2320 = vadd.f32 0.0, %v2319
    %v2321 = vpop.f32.mrb[0].mxu0
    %2322 = vmatprep.mubr.f32.mxu0 0.0
    %2323 = vmatmul.mubr.f32.gmra.mrb[0].mxu0 %v574
    %v2324 = vpop.f32.mrb[0].mxu0
    %v2325 = vadd.f32 0.0, %v2324
    %v2326 = vpop.f32.mrb[0].mxu0
    %2327 = vdwg.mxu0
    %v2328 = vadd.f32 %v2246, %v2320
    %v2329 = vadd.f32 %v2247, %v2325
    %v2330 = vtanh.pop %v2328
    %v2331 = vtanh.pop %v2329
    %v2332 = vsub.f32 %v2330, %v2150
    %v2333 = vsub.f32 %v2331, %v2151
    %v2334 = vmul.f32 %v2243, %v2332
    %v2335 = vmul.f32 %v2245, %v2333
    %v2336 = vadd.f32 %v2150, %v2334
    %v2337 = vadd.f32 %v2151, %v2335
    %v2338 = vld [vmem:[%s281] sm:$0xff]
    %v2339 = vld [vmem:[%s281 + $0x8] sm:$0x3]
    %v2341 = vsel %vm473, %v2337, 0
    %2343 = vmatprep.subr.mxu0 0.0
    %2344 = vmatpush1.msra.mxu0 %v2336
    %2345 = vmatprep.subr.mxu0 0.0
    %2346 = vmatpush1.msra.mxu0 %v2341
    %2347 = vmatprep.subr.mxu0 0.0
    %2348 = vmatpush1.msra.mxu0 0.0
    %2349 = vmatprep.subr.mxu0 0.0
    %2350 = vmatpush1.msra.mxu0 0.0
    %2351 = vmatprep.subr.mxu0 0.0
    %2352 = vmatpush1.msra.mxu0 0.0
    %2353 = vmatprep.subr.mxu0 0.0
    %2354 = vmatpush1.msra.mxu0 0.0
    %2355 = vmatprep.subr.mxu0 0.0
    %2356 = vmatpush1.msra.mxu0 0.0
    %2357 = vmatprep.subr.mxu0 0.0
    %2358 = vmatpush1.msra.mxu0 0.0
    %2359 = vmatprep.subr.mxu0 0.0
    %2360 = vmatpush1.msra.mxu0 0.0
    %2361 = vmatprep.subr.mxu0 0.0
    %2362 = vmatpush1.msra.mxu0 0.0
    %2363 = vmatprep.subr.mxu0 0.0
    %2364 = vmatpush1.msra.mxu0 0.0
    %2365 = vmatprep.subr.mxu0 0.0
    %2366 = vmatpush1.msra.mxu0 0.0
    %2367 = vmatprep.subr.mxu0 0.0
    %2368 = vmatpush1.msra.mxu0 0.0
    %2369 = vmatprep.subr.mxu0 0.0
    %2370 = vmatpush1.msra.mxu0 0.0
    %2371 = vmatprep.subr.mxu0 0.0
    %2372 = vmatpush1.msra.mxu0 0.0
    %2373 = vmatprep.subr.mxu0 0.0
    %2374 = vmatpush1.msra.mxu0 0.0
    %2375 = vmatprep.subr.mxu0 0.0
    %2376 = vmatpush1.msra.mxu0 0.0
    %2377 = vmatprep.subr.mxu0 0.0
    %2378 = vmatpush1.msra.mxu0 0.0
    %2379 = vmatprep.subr.mxu0 0.0
    %2380 = vmatpush1.msra.mxu0 0.0
    %2381 = vmatprep.subr.mxu0 0.0
    %2382 = vmatpush1.msra.mxu0 0.0
    %2383 = vmatprep.subr.mxu0 0.0
    %2384 = vmatpush1.msra.mxu0 0.0
    %2385 = vmatprep.subr.mxu0 0.0
    %2386 = vmatpush1.msra.mxu0 0.0
    %2387 = vmatprep.subr.mxu0 0.0
    %2388 = vmatpush1.msra.mxu0 0.0
    %2389 = vmatprep.subr.mxu0 0.0
    %2390 = vmatpush1.msra.mxu0 0.0
    %2391 = vmatprep.subr.mxu0 0.0
    %2392 = vmatpush1.msra.mxu0 0.0
    %2393 = vmatprep.subr.mxu0 0.0
    %2394 = vmatpush1.msra.mxu0 0.0
    %2395 = vmatprep.subr.mxu0 0.0
    %2396 = vmatpush1.msra.mxu0 0.0
    %2397 = vmatprep.subr.mxu0 0.0
    %2398 = vmatpush1.msra.mxu0 0.0
    %2399 = vmatprep.subr.mxu0 0.0
    %2400 = vmatpush1.msra.mxu0 0.0
    %2401 = vmatprep.subr.mxu0 0.0
    %2402 = vmatpush1.msra.mxu0 0.0
    %2403 = vmatprep.subr.mxu0 0.0
    %2404 = vmatpush1.msra.mxu0 0.0
    %2405 = vmatprep.subr.mxu0 0.0
    %2406 = vmatpush1.msra.mxu0 0.0
    %2407 = vmatprep.mubr.f32.mxu0 0.0
    %2408 = vmatmul.mubr.f32.gmra.mrb[0].mxu0 %v468
    %v2409 = vpop.f32.mrb[0].mxu0
    %v2410 = vadd.f32 0.0, %v2409
    %v2411 = vpop.f32.mrb[0].mxu0
    %2412 = vmatprep.mubr.f32.mxu0 0.0
    %2413 = vmatmul.mubr.f32.gmra.mrb[0].mxu0 %v471
    %v2414 = vpop.f32.mrb[0].mxu0
    %v2415 = vadd.f32 0.0, %v2414
    %v2416 = vpop.f32.mrb[0].mxu0
    %2417 = vdwg.mxu0
    %v2418 = vadd.f32 %v2338, %v2410
    %v2419 = vadd.f32 %v2339, %v2415
    %v2420 = vxor.u32 %v2418, 2147483648
    %v2421 = vxor.u32 %v2419, 2147483648
    %v2422 = vmul.f32 %v2420, 1.442695
    %v2423 = vpow.pop %v2422
    %v2424 = vmul.f32 %v2421, 1.442695
    %v2425 = vpow.pop %v2424
    %v2426 = vadd.f32 %v2423, 1.0
    %v2427 = vadd.f32 %v2425, 1.0
    %v2428 = vrcp.pop %v2426
    %v2429 = vmul.f32 1.0, %v2428
    %v2430 = vrcp.pop %v2427
    %v2431 = vmul.f32 1.0, %v2430
    %v2432 = vld [vmem:[%s288] sm:$0xff]
    %v2433 = vld [vmem:[%s288 + $0x8] sm:$0x3]
    %v2434 = vmul.f32 %v2429, %v2336
    %v2435 = vmul.f32 %v2431, %v2337
    %v2437 = vsel %vm473, %v2435, 0
    %2439 = vmatprep.subr.mxu0 0.0
    %2440 = vmatpush1.msra.mxu0 %v2434
    %2441 = vmatprep.subr.mxu0 0.0
    %2442 = vmatpush1.msra.mxu0 %v2437
    %2443 = vmatprep.subr.mxu0 0.0
    %2444 = vmatpush1.msra.mxu0 0.0
    %2445 = vmatprep.subr.mxu0 0.0
    %2446 = vmatpush1.msra.mxu0 0.0
    %2447 = vmatprep.subr.mxu0 0.0
    %2448 = vmatpush1.msra.mxu0 0.0
    %2449 = vmatprep.subr.mxu0 0.0
    %2450 = vmatpush1.msra.mxu0 0.0
    %2451 = vmatprep.subr.mxu0 0.0
    %2452 = vmatpush1.msra.mxu0 0.0
    %2453 = vmatprep.subr.mxu0 0.0
    %2454 = vmatpush1.msra.mxu0 0.0
    %2455 = vmatprep.subr.mxu0 0.0
    %2456 = vmatpush1.msra.mxu0 0.0
    %2457 = vmatprep.subr.mxu0 0.0
    %2458 = vmatpush1.msra.mxu0 0.0
    %2459 = vmatprep.subr.mxu0 0.0
    %2460 = vmatpush1.msra.mxu0 0.0
    %2461 = vmatprep.subr.mxu0 0.0
    %2462 = vmatpush1.msra.mxu0 0.0
    %2463 = vmatprep.subr.mxu0 0.0
    %2464 = vmatpush1.msra.mxu0 0.0
    %2465 = vmatprep.subr.mxu0 0.0
    %2466 = vmatpush1.msra.mxu0 0.0
    %2467 = vmatprep.subr.mxu0 0.0
    %2468 = vmatpush1.msra.mxu0 0.0
    %2469 = vmatprep.subr.mxu0 0.0
    %2470 = vmatpush1.msra.mxu0 0.0
    %2471 = vmatprep.subr.mxu0 0.0
    %2472 = vmatpush1.msra.mxu0 0.0
    %2473 = vmatprep.subr.mxu0 0.0
    %2474 = vmatpush1.msra.mxu0 0.0
    %2475 = vmatprep.subr.mxu0 0.0
    %2476 = vmatpush1.msra.mxu0 0.0
    %2477 = vmatprep.subr.mxu0 0.0
    %2478 = vmatpush1.msra.mxu0 0.0
    %2479 = vmatprep.subr.mxu0 0.0
    %2480 = vmatpush1.msra.mxu0 0.0
    %2481 = vmatprep.subr.mxu0 0.0
    %2482 = vmatpush1.msra.mxu0 0.0
    %2483 = vmatprep.subr.mxu0 0.0
    %2484 = vmatpush1.msra.mxu0 0.0
    %2485 = vmatprep.subr.mxu0 0.0
    %2486 = vmatpush1.msra.mxu0 0.0
    %2487 = vmatprep.subr.mxu0 0.0
    %2488 = vmatpush1.msra.mxu0 0.0
    %2489 = vmatprep.subr.mxu0 0.0
    %2490 = vmatpush1.msra.mxu0 0.0
    %2491 = vmatprep.subr.mxu0 0.0
    %2492 = vmatpush1.msra.mxu0 0.0
    %2493 = vmatprep.subr.mxu0 0.0
    %2494 = vmatpush1.msra.mxu0 0.0
    %2495 = vmatprep.subr.mxu0 0.0
    %2496 = vmatpush1.msra.mxu0 0.0
    %2497 = vmatprep.subr.mxu0 0.0
    %2498 = vmatpush1.msra.mxu0 0.0
    %2499 = vmatprep.subr.mxu0 0.0
    %2500 = vmatpush1.msra.mxu0 0.0
    %2501 = vmatprep.subr.mxu0 0.0
    %2502 = vmatpush1.msra.mxu0 0.0
    %2503 = vmatprep.mubr.f32.mxu0 0.0
    %2504 = vmatmul.mubr.f32.gmra.mrb[0].mxu0 %v571
    %v2505 = vpop.f32.mrb[0].mxu0
    %v2506 = vadd.f32 0.0, %v2505
    %v2507 = vpop.f32.mrb[0].mxu0
    %2508 = vmatprep.mubr.f32.mxu0 0.0
    %2509 = vmatmul.mubr.f32.gmra.mrb[0].mxu0 %v574
    %v2510 = vpop.f32.mrb[0].mxu0
    %v2511 = vadd.f32 0.0, %v2510
    %v2512 = vpop.f32.mrb[0].mxu0
    %2513 = vdwg.mxu0
    %v2514 = vadd.f32 %v2432, %v2506
    %v2515 = vadd.f32 %v2433, %v2511
    %v2516 = vtanh.pop %v2514
    %v2517 = vtanh.pop %v2515
    %v2518 = vsub.f32 %v2516, %v2336
    %v2519 = vsub.f32 %v2517, %v2337
    %v2520 = vmul.f32 %v2429, %v2518
    %v2521 = vmul.f32 %v2431, %v2519
    %v2522 = vadd.f32 %v2336, %v2520
    %v2523 = vadd.f32 %v2337, %v2521
    %v2524 = vld [vmem:[%s300] sm:$0xff]
    %v2525 = vld [vmem:[%s300 + $0x8] sm:$0x3]
    %v2527 = vsel %vm473, %v2523, 0
    %2529 = vmatprep.subr.mxu0 0.0
    %2530 = vmatpush1.msra.mxu0 %v2522
    %2531 = vmatprep.subr.mxu0 0.0
    %2532 = vmatpush1.msra.mxu0 %v2527
    %2533 = vmatprep.subr.mxu0 0.0
    %2534 = vmatpush1.msra.mxu0 0.0
    %2535 = vmatprep.subr.mxu0 0.0
    %2536 = vmatpush1.msra.mxu0 0.0
    %2537 = vmatprep.subr.mxu0 0.0
    %2538 = vmatpush1.msra.mxu0 0.0
    %2539 = vmatprep.subr.mxu0 0.0
    %2540 = vmatpush1.msra.mxu0 0.0
    %2541 = vmatprep.subr.mxu0 0.0
    %2542 = vmatpush1.msra.mxu0 0.0
    %2543 = vmatprep.subr.mxu0 0.0
    %2544 = vmatpush1.msra.mxu0 0.0
    %2545 = vmatprep.subr.mxu0 0.0
    %2546 = vmatpush1.msra.mxu0 0.0
    %2547 = vmatprep.subr.mxu0 0.0
    %2548 = vmatpush1.msra.mxu0 0.0
    %2549 = vmatprep.subr.mxu0 0.0
    %2550 = vmatpush1.msra.mxu0 0.0
    %2551 = vmatprep.subr.mxu0 0.0
    %2552 = vmatpush1.msra.mxu0 0.0
    %2553 = vmatprep.subr.mxu0 0.0
    %2554 = vmatpush1.msra.mxu0 0.0
    %2555 = vmatprep.subr.mxu0 0.0
    %2556 = vmatpush1.msra.mxu0 0.0
    %2557 = vmatprep.subr.mxu0 0.0
    %2558 = vmatpush1.msra.mxu0 0.0
    %2559 = vmatprep.subr.mxu0 0.0
    %2560 = vmatpush1.msra.mxu0 0.0
    %2561 = vmatprep.subr.mxu0 0.0
    %2562 = vmatpush1.msra.mxu0 0.0
    %2563 = vmatprep.subr.mxu0 0.0
    %2564 = vmatpush1.msra.mxu0 0.0
    %2565 = vmatprep.subr.mxu0 0.0
    %2566 = vmatpush1.msra.mxu0 0.0
    %2567 = vmatprep.subr.mxu0 0.0
    %2568 = vmatpush1.msra.mxu0 0.0
    %2569 = vmatprep.subr.mxu0 0.0
    %2570 = vmatpush1.msra.mxu0 0.0
    %2571 = vmatprep.subr.mxu0 0.0
    %2572 = vmatpush1.msra.mxu0 0.0
    %2573 = vmatprep.subr.mxu0 0.0
    %2574 = vmatpush1.msra.mxu0 0.0
    %2575 = vmatprep.subr.mxu0 0.0
    %2576 = vmatpush1.msra.mxu0 0.0
    %2577 = vmatprep.subr.mxu0 0.0
    %2578 = vmatpush1.msra.mxu0 0.0
    %2579 = vmatprep.subr.mxu0 0.0
    %2580 = vmatpush1.msra.mxu0 0.0
    %2581 = vmatprep.subr.mxu0 0.0
    %2582 = vmatpush1.msra.mxu0 0.0
    %2583 = vmatprep.subr.mxu0 0.0
    %2584 = vmatpush1.msra.mxu0 0.0
    %2585 = vmatprep.subr.mxu0 0.0
    %2586 = vmatpush1.msra.mxu0 0.0
    %2587 = vmatprep.subr.mxu0 0.0
    %2588 = vmatpush1.msra.mxu0 0.0
    %2589 = vmatprep.subr.mxu0 0.0
    %2590 = vmatpush1.msra.mxu0 0.0
    %2591 = vmatprep.subr.mxu0 0.0
    %2592 = vmatpush1.msra.mxu0 0.0
    %2593 = vmatprep.mubr.f32.mxu0 0.0
    %2594 = vmatmul.mubr.f32.gmra.mrb[0].mxu0 %v468
    %v2595 = vpop.f32.mrb[0].mxu0
    %v2596 = vadd.f32 0.0, %v2595
    %v2597 = vpop.f32.mrb[0].mxu0
    %2598 = vmatprep.mubr.f32.mxu0 0.0
    %2599 = vmatmul.mubr.f32.gmra.mrb[0].mxu0 %v471
    %v2600 = vpop.f32.mrb[0].mxu0
    %v2601 = vadd.f32 0.0, %v2600
    %v2602 = vpop.f32.mrb[0].mxu0
    %2603 = vdwg.mxu0
    %v2604 = vadd.f32 %v2524, %v2596
    %v2605 = vadd.f32 %v2525, %v2601
    %v2606 = vxor.u32 %v2604, 2147483648
    %v2607 = vxor.u32 %v2605, 2147483648
    %v2608 = vmul.f32 %v2606, 1.442695
    %v2609 = vpow.pop %v2608
    %v2610 = vmul.f32 %v2607, 1.442695
    %v2611 = vpow.pop %v2610
    %v2612 = vadd.f32 %v2609, 1.0
    %v2613 = vadd.f32 %v2611, 1.0
    %v2614 = vrcp.pop %v2612
    %v2615 = vmul.f32 1.0, %v2614
    %v2616 = vrcp.pop %v2613
    %v2617 = vmul.f32 1.0, %v2616
    %v2618 = vld [vmem:[%s307] sm:$0xff]
    %v2619 = vld [vmem:[%s307 + $0x8] sm:$0x3]
    %v2620 = vmul.f32 %v2615, %v2522
    %v2621 = vmul.f32 %v2617, %v2523
    %v2623 = vsel %vm473, %v2621, 0
    %2625 = vmatprep.subr.mxu0 0.0
    %2626 = vmatpush1.msra.mxu0 %v2620
    %2627 = vmatprep.subr.mxu0 0.0
    %2628 = vmatpush1.msra.mxu0 %v2623
    %2629 = vmatprep.subr.mxu0 0.0
    %2630 = vmatpush1.msra.mxu0 0.0
    %2631 = vmatprep.subr.mxu0 0.0
    %2632 = vmatpush1.msra.mxu0 0.0
    %2633 = vmatprep.subr.mxu0 0.0
    %2634 = vmatpush1.msra.mxu0 0.0
    %2635 = vmatprep.subr.mxu0 0.0
    %2636 = vmatpush1.msra.mxu0 0.0
    %2637 = vmatprep.subr.mxu0 0.0
    %2638 = vmatpush1.msra.mxu0 0.0
    %2639 = vmatprep.subr.mxu0 0.0
    %2640 = vmatpush1.msra.mxu0 0.0
    %2641 = vmatprep.subr.mxu0 0.0
    %2642 = vmatpush1.msra.mxu0 0.0
    %2643 = vmatprep.subr.mxu0 0.0
    %2644 = vmatpush1.msra.mxu0 0.0
    %2645 = vmatprep.subr.mxu0 0.0
    %2646 = vmatpush1.msra.mxu0 0.0
    %2647 = vmatprep.subr.mxu0 0.0
    %2648 = vmatpush1.msra.mxu0 0.0
    %2649 = vmatprep.subr.mxu0 0.0
    %2650 = vmatpush1.msra.mxu0 0.0
    %2651 = vmatprep.subr.mxu0 0.0
    %2652 = vmatpush1.msra.mxu0 0.0
    %2653 = vmatprep.subr.mxu0 0.0
    %2654 = vmatpush1.msra.mxu0 0.0
    %2655 = vmatprep.subr.mxu0 0.0
    %2656 = vmatpush1.msra.mxu0 0.0
    %2657 = vmatprep.subr.mxu0 0.0
    %2658 = vmatpush1.msra.mxu0 0.0
    %2659 = vmatprep.subr.mxu0 0.0
    %2660 = vmatpush1.msra.mxu0 0.0
    %2661 = vmatprep.subr.mxu0 0.0
    %2662 = vmatpush1.msra.mxu0 0.0
    %2663 = vmatprep.subr.mxu0 0.0
    %2664 = vmatpush1.msra.mxu0 0.0
    %2665 = vmatprep.subr.mxu0 0.0
    %2666 = vmatpush1.msra.mxu0 0.0
    %2667 = vmatprep.subr.mxu0 0.0
    %2668 = vmatpush1.msra.mxu0 0.0
    %2669 = vmatprep.subr.mxu0 0.0
    %2670 = vmatpush1.msra.mxu0 0.0
    %2671 = vmatprep.subr.mxu0 0.0
    %2672 = vmatpush1.msra.mxu0 0.0
    %2673 = vmatprep.subr.mxu0 0.0
    %2674 = vmatpush1.msra.mxu0 0.0
    %2675 = vmatprep.subr.mxu0 0.0
    %2676 = vmatpush1.msra.mxu0 0.0
    %2677 = vmatprep.subr.mxu0 0.0
    %2678 = vmatpush1.msra.mxu0 0.0
    %2679 = vmatprep.subr.mxu0 0.0
    %2680 = vmatpush1.msra.mxu0 0.0
    %2681 = vmatprep.subr.mxu0 0.0
    %2682 = vmatpush1.msra.mxu0 0.0
    %2683 = vmatprep.subr.mxu0 0.0
    %2684 = vmatpush1.msra.mxu0 0.0
    %2685 = vmatprep.subr.mxu0 0.0
    %2686 = vmatpush1.msra.mxu0 0.0
    %2687 = vmatprep.subr.mxu0 0.0
    %2688 = vmatpush1.msra.mxu0 0.0
    %2689 = vmatprep.mubr.f32.mxu0 0.0
    %2690 = vmatmul.mubr.f32.gmra.mrb[0].mxu0 %v571
    %v2691 = vpop.f32.mrb[0].mxu0
    %v2692 = vadd.f32 0.0, %v2691
    %v2693 = vpop.f32.mrb[0].mxu0
    %2694 = vmatprep.mubr.f32.mxu0 0.0
    %2695 = vmatmul.mubr.f32.gmra.mrb[0].mxu0 %v574
    %v2696 = vpop.f32.mrb[0].mxu0
    %v2697 = vadd.f32 0.0, %v2696
    %v2698 = vpop.f32.mrb[0].mxu0
    %2699 = vdwg.mxu0
    %v2700 = vadd.f32 %v2618, %v2692
    %v2701 = vadd.f32 %v2619, %v2697
    %v2702 = vtanh.pop %v2700
    %v2703 = vtanh.pop %v2701
    %v2704 = vsub.f32 %v2702, %v2522
    %v2705 = vsub.f32 %v2703, %v2523
    %v2706 = vmul.f32 %v2615, %v2704
    %v2707 = vmul.f32 %v2617, %v2705
    %v2708 = vadd.f32 %v2522, %v2706
    %v2709 = vadd.f32 %v2523, %v2707
    %v2710 = vld [vmem:[%s319] sm:$0xff]
    %v2711 = vld [vmem:[%s319 + $0x8] sm:$0x3]
    %v2713 = vsel %vm473, %v2709, 0
    %2715 = vmatprep.subr.mxu0 0.0
    %2716 = vmatpush1.msra.mxu0 %v2708
    %2717 = vmatprep.subr.mxu0 0.0
    %2718 = vmatpush1.msra.mxu0 %v2713
    %2719 = vmatprep.subr.mxu0 0.0
    %2720 = vmatpush1.msra.mxu0 0.0
    %2721 = vmatprep.subr.mxu0 0.0
    %2722 = vmatpush1.msra.mxu0 0.0
    %2723 = vmatprep.subr.mxu0 0.0
    %2724 = vmatpush1.msra.mxu0 0.0
    %2725 = vmatprep.subr.mxu0 0.0
    %2726 = vmatpush1.msra.mxu0 0.0
    %2727 = vmatprep.subr.mxu0 0.0
    %2728 = vmatpush1.msra.mxu0 0.0
    %2729 = vmatprep.subr.mxu0 0.0
    %2730 = vmatpush1.msra.mxu0 0.0
    %2731 = vmatprep.subr.mxu0 0.0
    %2732 = vmatpush1.msra.mxu0 0.0
    %2733 = vmatprep.subr.mxu0 0.0
    %2734 = vmatpush1.msra.mxu0 0.0
    %2735 = vmatprep.subr.mxu0 0.0
    %2736 = vmatpush1.msra.mxu0 0.0
    %2737 = vmatprep.subr.mxu0 0.0
    %2738 = vmatpush1.msra.mxu0 0.0
    %2739 = vmatprep.subr.mxu0 0.0
    %2740 = vmatpush1.msra.mxu0 0.0
    %2741 = vmatprep.subr.mxu0 0.0
    %2742 = vmatpush1.msra.mxu0 0.0
    %2743 = vmatprep.subr.mxu0 0.0
    %2744 = vmatpush1.msra.mxu0 0.0
    %2745 = vmatprep.subr.mxu0 0.0
    %2746 = vmatpush1.msra.mxu0 0.0
    %2747 = vmatprep.subr.mxu0 0.0
    %2748 = vmatpush1.msra.mxu0 0.0
    %2749 = vmatprep.subr.mxu0 0.0
    %2750 = vmatpush1.msra.mxu0 0.0
    %2751 = vmatprep.subr.mxu0 0.0
    %2752 = vmatpush1.msra.mxu0 0.0
    %2753 = vmatprep.subr.mxu0 0.0
    %2754 = vmatpush1.msra.mxu0 0.0
    %2755 = vmatprep.subr.mxu0 0.0
    %2756 = vmatpush1.msra.mxu0 0.0
    %2757 = vmatprep.subr.mxu0 0.0
    %2758 = vmatpush1.msra.mxu0 0.0
    %2759 = vmatprep.subr.mxu0 0.0
    %2760 = vmatpush1.msra.mxu0 0.0
    %2761 = vmatprep.subr.mxu0 0.0
    %2762 = vmatpush1.msra.mxu0 0.0
    %2763 = vmatprep.subr.mxu0 0.0
    %2764 = vmatpush1.msra.mxu0 0.0
    %2765 = vmatprep.subr.mxu0 0.0
    %2766 = vmatpush1.msra.mxu0 0.0
    %2767 = vmatprep.subr.mxu0 0.0
    %2768 = vmatpush1.msra.mxu0 0.0
    %2769 = vmatprep.subr.mxu0 0.0
    %2770 = vmatpush1.msra.mxu0 0.0
    %2771 = vmatprep.subr.mxu0 0.0
    %2772 = vmatpush1.msra.mxu0 0.0
    %2773 = vmatprep.subr.mxu0 0.0
    %2774 = vmatpush1.msra.mxu0 0.0
    %2775 = vmatprep.subr.mxu0 0.0
    %2776 = vmatpush1.msra.mxu0 0.0
    %2777 = vmatprep.subr.mxu0 0.0
    %2778 = vmatpush1.msra.mxu0 0.0
    %2779 = vmatprep.mubr.f32.mxu0 0.0
    %2780 = vmatmul.mubr.f32.gmra.mrb[0].mxu0 %v468
    %v2781 = vpop.f32.mrb[0].mxu0
    %v2782 = vadd.f32 0.0, %v2781
    %v2783 = vpop.f32.mrb[0].mxu0
    %2784 = vmatprep.mubr.f32.mxu0 0.0
    %2785 = vmatmul.mubr.f32.gmra.mrb[0].mxu0 %v471
    %v2786 = vpop.f32.mrb[0].mxu0
    %v2787 = vadd.f32 0.0, %v2786
    %v2788 = vpop.f32.mrb[0].mxu0
    %2789 = vdwg.mxu0
    %v2790 = vadd.f32 %v2710, %v2782
    %v2791 = vadd.f32 %v2711, %v2787
    %v2792 = vxor.u32 %v2790, 2147483648
    %v2793 = vxor.u32 %v2791, 2147483648
    %v2794 = vmul.f32 %v2792, 1.442695
    %v2795 = vpow.pop %v2794
    %v2796 = vmul.f32 %v2793, 1.442695
    %v2797 = vpow.pop %v2796
    %v2798 = vadd.f32 %v2795, 1.0
    %v2799 = vadd.f32 %v2797, 1.0
    %v2800 = vrcp.pop %v2798
    %v2801 = vmul.f32 1.0, %v2800
    %v2802 = vrcp.pop %v2799
    %v2803 = vmul.f32 1.0, %v2802
    %v2804 = vld [vmem:[%s326] sm:$0xff]
    %v2805 = vld [vmem:[%s326 + $0x8] sm:$0x3]
    %v2806 = vmul.f32 %v2801, %v2708
    %v2807 = vmul.f32 %v2803, %v2709
    %v2809 = vsel %vm473, %v2807, 0
    %2811 = vmatprep.subr.mxu0 0.0
    %2812 = vmatpush1.msra.mxu0 %v2806
    %2813 = vmatprep.subr.mxu0 0.0
    %2814 = vmatpush1.msra.mxu0 %v2809
    %2815 = vmatprep.subr.mxu0 0.0
    %2816 = vmatpush1.msra.mxu0 0.0
    %2817 = vmatprep.subr.mxu0 0.0
    %2818 = vmatpush1.msra.mxu0 0.0
    %2819 = vmatprep.subr.mxu0 0.0
    %2820 = vmatpush1.msra.mxu0 0.0
    %2821 = vmatprep.subr.mxu0 0.0
    %2822 = vmatpush1.msra.mxu0 0.0
    %2823 = vmatprep.subr.mxu0 0.0
    %2824 = vmatpush1.msra.mxu0 0.0
    %2825 = vmatprep.subr.mxu0 0.0
    %2826 = vmatpush1.msra.mxu0 0.0
    %2827 = vmatprep.subr.mxu0 0.0
    %2828 = vmatpush1.msra.mxu0 0.0
    %2829 = vmatprep.subr.mxu0 0.0
    %2830 = vmatpush1.msra.mxu0 0.0
    %2831 = vmatprep.subr.mxu0 0.0
    %2832 = vmatpush1.msra.mxu0 0.0
    %2833 = vmatprep.subr.mxu0 0.0
    %2834 = vmatpush1.msra.mxu0 0.0
    %2835 = vmatprep.subr.mxu0 0.0
    %2836 = vmatpush1.msra.mxu0 0.0
    %2837 = vmatprep.subr.mxu0 0.0
    %2838 = vmatpush1.msra.mxu0 0.0
    %2839 = vmatprep.subr.mxu0 0.0
    %2840 = vmatpush1.msra.mxu0 0.0
    %2841 = vmatprep.subr.mxu0 0.0
    %2842 = vmatpush1.msra.mxu0 0.0
    %2843 = vmatprep.subr.mxu0 0.0
    %2844 = vmatpush1.msra.mxu0 0.0
    %2845 = vmatprep.subr.mxu0 0.0
    %2846 = vmatpush1.msra.mxu0 0.0
    %2847 = vmatprep.subr.mxu0 0.0
    %2848 = vmatpush1.msra.mxu0 0.0
    %2849 = vmatprep.subr.mxu0 0.0
    %2850 = vmatpush1.msra.mxu0 0.0
    %2851 = vmatprep.subr.mxu0 0.0
    %2852 = vmatpush1.msra.mxu0 0.0
    %2853 = vmatprep.subr.mxu0 0.0
    %2854 = vmatpush1.msra.mxu0 0.0
    %2855 = vmatprep.subr.mxu0 0.0
    %2856 = vmatpush1.msra.mxu0 0.0
    %2857 = vmatprep.subr.mxu0 0.0
    %2858 = vmatpush1.msra.mxu0 0.0
    %2859 = vmatprep.subr.mxu0 0.0
    %2860 = vmatpush1.msra.mxu0 0.0
    %2861 = vmatprep.subr.mxu0 0.0
    %2862 = vmatpush1.msra.mxu0 0.0
    %2863 = vmatprep.subr.mxu0 0.0
    %2864 = vmatpush1.msra.mxu0 0.0
    %2865 = vmatprep.subr.mxu0 0.0
    %2866 = vmatpush1.msra.mxu0 0.0
    %2867 = vmatprep.subr.mxu0 0.0
    %2868 = vmatpush1.msra.mxu0 0.0
    %2869 = vmatprep.subr.mxu0 0.0
    %2870 = vmatpush1.msra.mxu0 0.0
    %2871 = vmatprep.subr.mxu0 0.0
    %2872 = vmatpush1.msra.mxu0 0.0
    %2873 = vmatprep.subr.mxu0 0.0
    %2874 = vmatpush1.msra.mxu0 0.0
    %2875 = vmatprep.mubr.f32.mxu0 0.0
    %2876 = vmatmul.mubr.f32.gmra.mrb[0].mxu0 %v571
    %v2877 = vpop.f32.mrb[0].mxu0
    %v2878 = vadd.f32 0.0, %v2877
    %v2879 = vpop.f32.mrb[0].mxu0
    %2880 = vmatprep.mubr.f32.mxu0 0.0
    %2881 = vmatmul.mubr.f32.gmra.mrb[0].mxu0 %v574
    %v2882 = vpop.f32.mrb[0].mxu0
    %v2883 = vadd.f32 0.0, %v2882
    %v2884 = vpop.f32.mrb[0].mxu0
    %2885 = vdwg.mxu0
    %v2886 = vadd.f32 %v2804, %v2878
    %v2887 = vadd.f32 %v2805, %v2883
    %v2888 = vtanh.pop %v2886
    %v2889 = vtanh.pop %v2887
    %v2890 = vsub.f32 %v2888, %v2708
    %v2891 = vsub.f32 %v2889, %v2709
    %v2892 = vmul.f32 %v2801, %v2890
    %v2893 = vmul.f32 %v2803, %v2891
    %v2894 = vadd.f32 %v2708, %v2892
    %v2895 = vadd.f32 %v2709, %v2893
    %v2896 = vld [vmem:[%s338] sm:$0xff]
    %v2897 = vld [vmem:[%s338 + $0x8] sm:$0x3]
    %v2899 = vsel %vm473, %v2895, 0
    %2901 = vmatprep.subr.mxu0 0.0
    %2902 = vmatpush1.msra.mxu0 %v2894
    %2903 = vmatprep.subr.mxu0 0.0
    %2904 = vmatpush1.msra.mxu0 %v2899
    %2905 = vmatprep.subr.mxu0 0.0
    %2906 = vmatpush1.msra.mxu0 0.0
    %2907 = vmatprep.subr.mxu0 0.0
    %2908 = vmatpush1.msra.mxu0 0.0
    %2909 = vmatprep.subr.mxu0 0.0
    %2910 = vmatpush1.msra.mxu0 0.0
    %2911 = vmatprep.subr.mxu0 0.0
    %2912 = vmatpush1.msra.mxu0 0.0
    %2913 = vmatprep.subr.mxu0 0.0
    %2914 = vmatpush1.msra.mxu0 0.0
    %2915 = vmatprep.subr.mxu0 0.0
    %2916 = vmatpush1.msra.mxu0 0.0
    %2917 = vmatprep.subr.mxu0 0.0
    %2918 = vmatpush1.msra.mxu0 0.0
    %2919 = vmatprep.subr.mxu0 0.0
    %2920 = vmatpush1.msra.mxu0 0.0
    %2921 = vmatprep.subr.mxu0 0.0
    %2922 = vmatpush1.msra.mxu0 0.0
    %2923 = vmatprep.subr.mxu0 0.0
    %2924 = vmatpush1.msra.mxu0 0.0
    %2925 = vmatprep.subr.mxu0 0.0
    %2926 = vmatpush1.msra.mxu0 0.0
    %2927 = vmatprep.subr.mxu0 0.0
    %2928 = vmatpush1.msra.mxu0 0.0
    %2929 = vmatprep.subr.mxu0 0.0
    %2930 = vmatpush1.msra.mxu0 0.0
    %2931 = vmatprep.subr.mxu0 0.0
    %2932 = vmatpush1.msra.mxu0 0.0
    %2933 = vmatprep.subr.mxu0 0.0
    %2934 = vmatpush1.msra.mxu0 0.0
    %2935 = vmatprep.subr.mxu0 0.0
    %2936 = vmatpush1.msra.mxu0 0.0
    %2937 = vmatprep.subr.mxu0 0.0
    %2938 = vmatpush1.msra.mxu0 0.0
    %2939 = vmatprep.subr.mxu0 0.0
    %2940 = vmatpush1.msra.mxu0 0.0
    %2941 = vmatprep.subr.mxu0 0.0
    %2942 = vmatpush1.msra.mxu0 0.0
    %2943 = vmatprep.subr.mxu0 0.0
    %2944 = vmatpush1.msra.mxu0 0.0
    %2945 = vmatprep.subr.mxu0 0.0
    %2946 = vmatpush1.msra.mxu0 0.0
    %2947 = vmatprep.subr.mxu0 0.0
    %2948 = vmatpush1.msra.mxu0 0.0
    %2949 = vmatprep.subr.mxu0 0.0
    %2950 = vmatpush1.msra.mxu0 0.0
    %2951 = vmatprep.subr.mxu0 0.0
    %2952 = vmatpush1.msra.mxu0 0.0
    %2953 = vmatprep.subr.mxu0 0.0
    %2954 = vmatpush1.msra.mxu0 0.0
    %2955 = vmatprep.subr.mxu0 0.0
    %2956 = vmatpush1.msra.mxu0 0.0
    %2957 = vmatprep.subr.mxu0 0.0
    %2958 = vmatpush1.msra.mxu0 0.0
    %2959 = vmatprep.subr.mxu0 0.0
    %2960 = vmatpush1.msra.mxu0 0.0
    %2961 = vmatprep.subr.mxu0 0.0
    %2962 = vmatpush1.msra.mxu0 0.0
    %2963 = vmatprep.subr.mxu0 0.0
    %2964 = vmatpush1.msra.mxu0 0.0
    %2965 = vmatprep.mubr.f32.mxu0 0.0
    %2966 = vmatmul.mubr.f32.gmra.mrb[0].mxu0 %v468
    %v2967 = vpop.f32.mrb[0].mxu0
    %v2968 = vadd.f32 0.0, %v2967
    %v2969 = vpop.f32.mrb[0].mxu0
    %2970 = vmatprep.mubr.f32.mxu0 0.0
    %2971 = vmatmul.mubr.f32.gmra.mrb[0].mxu0 %v471
    %v2972 = vpop.f32.mrb[0].mxu0
    %v2973 = vadd.f32 0.0, %v2972
    %v2974 = vpop.f32.mrb[0].mxu0
    %2975 = vdwg.mxu0
    %v2976 = vadd.f32 %v2896, %v2968
    %v2977 = vadd.f32 %v2897, %v2973
    %v2978 = vxor.u32 %v2976, 2147483648
    %v2979 = vxor.u32 %v2977, 2147483648
    %v2980 = vmul.f32 %v2978, 1.442695
    %v2981 = vpow.pop %v2980
    %v2982 = vmul.f32 %v2979, 1.442695
    %v2983 = vpow.pop %v2982
    %v2984 = vadd.f32 %v2981, 1.0
    %v2985 = vadd.f32 %v2983, 1.0
    %v2986 = vrcp.pop %v2984
    %v2987 = vmul.f32 1.0, %v2986
    %v2988 = vrcp.pop %v2985
    %v2989 = vmul.f32 1.0, %v2988
    %v2990 = vld [vmem:[%s345] sm:$0xff]
    %v2991 = vld [vmem:[%s345 + $0x8] sm:$0x3]
    %v2992 = vmul.f32 %v2987, %v2894
    %v2993 = vmul.f32 %v2989, %v2895
    %v2995 = vsel %vm473, %v2993, 0
    %2997 = vmatprep.subr.mxu0 0.0
    %2998 = vmatpush1.msra.mxu0 %v2992
    %2999 = vmatprep.subr.mxu0 0.0
    %3000 = vmatpush1.msra.mxu0 %v2995
    %3001 = vmatprep.subr.mxu0 0.0
    %3002 = vmatpush1.msra.mxu0 0.0
    %3003 = vmatprep.subr.mxu0 0.0
    %3004 = vmatpush1.msra.mxu0 0.0
    %3005 = vmatprep.subr.mxu0 0.0
    %3006 = vmatpush1.msra.mxu0 0.0
    %3007 = vmatprep.subr.mxu0 0.0
    %3008 = vmatpush1.msra.mxu0 0.0
    %3009 = vmatprep.subr.mxu0 0.0
    %3010 = vmatpush1.msra.mxu0 0.0
    %3011 = vmatprep.subr.mxu0 0.0
    %3012 = vmatpush1.msra.mxu0 0.0
    %3013 = vmatprep.subr.mxu0 0.0
    %3014 = vmatpush1.msra.mxu0 0.0
    %3015 = vmatprep.subr.mxu0 0.0
    %3016 = vmatpush1.msra.mxu0 0.0
    %3017 = vmatprep.subr.mxu0 0.0
    %3018 = vmatpush1.msra.mxu0 0.0
    %3019 = vmatprep.subr.mxu0 0.0
    %3020 = vmatpush1.msra.mxu0 0.0
    %3021 = vmatprep.subr.mxu0 0.0
    %3022 = vmatpush1.msra.mxu0 0.0
    %3023 = vmatprep.subr.mxu0 0.0
    %3024 = vmatpush1.msra.mxu0 0.0
    %3025 = vmatprep.subr.mxu0 0.0
    %3026 = vmatpush1.msra.mxu0 0.0
    %3027 = vmatprep.subr.mxu0 0.0
    %3028 = vmatpush1.msra.mxu0 0.0
    %3029 = vmatprep.subr.mxu0 0.0
    %3030 = vmatpush1.msra.mxu0 0.0
    %3031 = vmatprep.subr.mxu0 0.0
    %3032 = vmatpush1.msra.mxu0 0.0
    %3033 = vmatprep.subr.mxu0 0.0
    %3034 = vmatpush1.msra.mxu0 0.0
    %3035 = vmatprep.subr.mxu0 0.0
    %3036 = vmatpush1.msra.mxu0 0.0
    %3037 = vmatprep.subr.mxu0 0.0
    %3038 = vmatpush1.msra.mxu0 0.0
    %3039 = vmatprep.subr.mxu0 0.0
    %3040 = vmatpush1.msra.mxu0 0.0
    %3041 = vmatprep.subr.mxu0 0.0
    %3042 = vmatpush1.msra.mxu0 0.0
    %3043 = vmatprep.subr.mxu0 0.0
    %3044 = vmatpush1.msra.mxu0 0.0
    %3045 = vmatprep.subr.mxu0 0.0
    %3046 = vmatpush1.msra.mxu0 0.0
    %3047 = vmatprep.subr.mxu0 0.0
    %3048 = vmatpush1.msra.mxu0 0.0
    %3049 = vmatprep.subr.mxu0 0.0
    %3050 = vmatpush1.msra.mxu0 0.0
    %3051 = vmatprep.subr.mxu0 0.0
    %3052 = vmatpush1.msra.mxu0 0.0
    %3053 = vmatprep.subr.mxu0 0.0
    %3054 = vmatpush1.msra.mxu0 0.0
    %3055 = vmatprep.subr.mxu0 0.0
    %3056 = vmatpush1.msra.mxu0 0.0
    %3057 = vmatprep.subr.mxu0 0.0
    %3058 = vmatpush1.msra.mxu0 0.0
    %3059 = vmatprep.subr.mxu0 0.0
    %3060 = vmatpush1.msra.mxu0 0.0
    %3061 = vmatprep.mubr.f32.mxu0 0.0
    %3062 = vmatmul.mubr.f32.gmra.mrb[0].mxu0 %v571
    %v3063 = vpop.f32.mrb[0].mxu0
    %v3064 = vadd.f32 0.0, %v3063
    %v3065 = vpop.f32.mrb[0].mxu0
    %3066 = vmatprep.mubr.f32.mxu0 0.0
    %3067 = vmatmul.mubr.f32.gmra.mrb[0].mxu0 %v574
    %v3068 = vpop.f32.mrb[0].mxu0
    %v3069 = vadd.f32 0.0, %v3068
    %v3070 = vpop.f32.mrb[0].mxu0
    %3071 = vdwg.mxu0
    %v3072 = vadd.f32 %v2990, %v3064
    %v3073 = vadd.f32 %v2991, %v3069
    %v3074 = vtanh.pop %v3072
    %v3075 = vtanh.pop %v3073
    %v3076 = vsub.f32 %v3074, %v2894
    %v3077 = vsub.f32 %v3075, %v2895
    %v3078 = vmul.f32 %v2987, %v3076
    %v3079 = vmul.f32 %v2989, %v3077
    %v3080 = vadd.f32 %v2894, %v3078
    %v3081 = vadd.f32 %v2895, %v3079
    %v3082 = vld [vmem:[%s357] sm:$0xff]
    %v3083 = vld [vmem:[%s357 + $0x8] sm:$0x3]
    %v3085 = vsel %vm473, %v3081, 0
    %3087 = vmatprep.subr.mxu0 0.0
    %3088 = vmatpush1.msra.mxu0 %v3080
    %3089 = vmatprep.subr.mxu0 0.0
    %3090 = vmatpush1.msra.mxu0 %v3085
    %3091 = vmatprep.subr.mxu0 0.0
    %3092 = vmatpush1.msra.mxu0 0.0
    %3093 = vmatprep.subr.mxu0 0.0
    %3094 = vmatpush1.msra.mxu0 0.0
    %3095 = vmatprep.subr.mxu0 0.0
    %3096 = vmatpush1.msra.mxu0 0.0
    %3097 = vmatprep.subr.mxu0 0.0
    %3098 = vmatpush1.msra.mxu0 0.0
    %3099 = vmatprep.subr.mxu0 0.0
    %3100 = vmatpush1.msra.mxu0 0.0
    %3101 = vmatprep.subr.mxu0 0.0
    %3102 = vmatpush1.msra.mxu0 0.0
    %3103 = vmatprep.subr.mxu0 0.0
    %3104 = vmatpush1.msra.mxu0 0.0
    %3105 = vmatprep.subr.mxu0 0.0
    %3106 = vmatpush1.msra.mxu0 0.0
    %3107 = vmatprep.subr.mxu0 0.0
    %3108 = vmatpush1.msra.mxu0 0.0
    %3109 = vmatprep.subr.mxu0 0.0
    %3110 = vmatpush1.msra.mxu0 0.0
    %3111 = vmatprep.subr.mxu0 0.0
    %3112 = vmatpush1.msra.mxu0 0.0
    %3113 = vmatprep.subr.mxu0 0.0
    %3114 = vmatpush1.msra.mxu0 0.0
    %3115 = vmatprep.subr.mxu0 0.0
    %3116 = vmatpush1.msra.mxu0 0.0
    %3117 = vmatprep.subr.mxu0 0.0
    %3118 = vmatpush1.msra.mxu0 0.0
    %3119 = vmatprep.subr.mxu0 0.0
    %3120 = vmatpush1.msra.mxu0 0.0
    %3121 = vmatprep.subr.mxu0 0.0
    %3122 = vmatpush1.msra.mxu0 0.0
    %3123 = vmatprep.subr.mxu0 0.0
    %3124 = vmatpush1.msra.mxu0 0.0
    %3125 = vmatprep.subr.mxu0 0.0
    %3126 = vmatpush1.msra.mxu0 0.0
    %3127 = vmatprep.subr.mxu0 0.0
    %3128 = vmatpush1.msra.mxu0 0.0
    %3129 = vmatprep.subr.mxu0 0.0
    %3130 = vmatpush1.msra.mxu0 0.0
    %3131 = vmatprep.subr.mxu0 0.0
    %3132 = vmatpush1.msra.mxu0 0.0
    %3133 = vmatprep.subr.mxu0 0.0
    %3134 = vmatpush1.msra.mxu0 0.0
    %3135 = vmatprep.subr.mxu0 0.0
    %3136 = vmatpush1.msra.mxu0 0.0
    %3137 = vmatprep.subr.mxu0 0.0
    %3138 = vmatpush1.msra.mxu0 0.0
    %3139 = vmatprep.subr.mxu0 0.0
    %3140 = vmatpush1.msra.mxu0 0.0
    %3141 = vmatprep.subr.mxu0 0.0
    %3142 = vmatpush1.msra.mxu0 0.0
    %3143 = vmatprep.subr.mxu0 0.0
    %3144 = vmatpush1.msra.mxu0 0.0
    %3145 = vmatprep.subr.mxu0 0.0
    %3146 = vmatpush1.msra.mxu0 0.0
    %3147 = vmatprep.subr.mxu0 0.0
    %3148 = vmatpush1.msra.mxu0 0.0
    %3149 = vmatprep.subr.mxu0 0.0
    %3150 = vmatpush1.msra.mxu0 0.0
    %3151 = vmatprep.mubr.f32.mxu0 0.0
    %3152 = vmatmul.mubr.f32.gmra.mrb[0].mxu0 %v468
    %v3153 = vpop.f32.mrb[0].mxu0
    %v3154 = vadd.f32 0.0, %v3153
    %v3155 = vpop.f32.mrb[0].mxu0
    %3156 = vmatprep.mubr.f32.mxu0 0.0
    %3157 = vmatmul.mubr.f32.gmra.mrb[0].mxu0 %v471
    %v3158 = vpop.f32.mrb[0].mxu0
    %v3159 = vadd.f32 0.0, %v3158
    %v3160 = vpop.f32.mrb[0].mxu0
    %3161 = vdwg.mxu0
    %v3162 = vadd.f32 %v3082, %v3154
    %v3163 = vadd.f32 %v3083, %v3159
    %v3164 = vxor.u32 %v3162, 2147483648
    %v3165 = vxor.u32 %v3163, 2147483648
    %v3166 = vmul.f32 %v3164, 1.442695
    %v3167 = vpow.pop %v3166
    %v3168 = vmul.f32 %v3165, 1.442695
    %v3169 = vpow.pop %v3168
    %v3170 = vadd.f32 %v3167, 1.0
    %v3171 = vadd.f32 %v3169, 1.0
    %v3172 = vrcp.pop %v3170
    %v3173 = vmul.f32 1.0, %v3172
    %v3174 = vrcp.pop %v3171
    %v3175 = vmul.f32 1.0, %v3174
    %v3176 = vld [vmem:[%s364] sm:$0xff]
    %v3177 = vld [vmem:[%s364 + $0x8] sm:$0x3]
    %v3178 = vmul.f32 %v3173, %v3080
    %v3179 = vmul.f32 %v3175, %v3081
    %v3181 = vsel %vm473, %v3179, 0
    %3183 = vmatprep.subr.mxu0 0.0
    %3184 = vmatpush1.msra.mxu0 %v3178
    %3185 = vmatprep.subr.mxu0 0.0
    %3186 = vmatpush1.msra.mxu0 %v3181
    %3187 = vmatprep.subr.mxu0 0.0
    %3188 = vmatpush1.msra.mxu0 0.0
    %3189 = vmatprep.subr.mxu0 0.0
    %3190 = vmatpush1.msra.mxu0 0.0
    %3191 = vmatprep.subr.mxu0 0.0
    %3192 = vmatpush1.msra.mxu0 0.0
    %3193 = vmatprep.subr.mxu0 0.0
    %3194 = vmatpush1.msra.mxu0 0.0
    %3195 = vmatprep.subr.mxu0 0.0
    %3196 = vmatpush1.msra.mxu0 0.0
    %3197 = vmatprep.subr.mxu0 0.0
    %3198 = vmatpush1.msra.mxu0 0.0
    %3199 = vmatprep.subr.mxu0 0.0
    %3200 = vmatpush1.msra.mxu0 0.0
    %3201 = vmatprep.subr.mxu0 0.0
    %3202 = vmatpush1.msra.mxu0 0.0
    %3203 = vmatprep.subr.mxu0 0.0
    %3204 = vmatpush1.msra.mxu0 0.0
    %3205 = vmatprep.subr.mxu0 0.0
    %3206 = vmatpush1.msra.mxu0 0.0
    %3207 = vmatprep.subr.mxu0 0.0
    %3208 = vmatpush1.msra.mxu0 0.0
    %3209 = vmatprep.subr.mxu0 0.0
    %3210 = vmatpush1.msra.mxu0 0.0
    %3211 = vmatprep.subr.mxu0 0.0
    %3212 = vmatpush1.msra.mxu0 0.0
    %3213 = vmatprep.subr.mxu0 0.0
    %3214 = vmatpush1.msra.mxu0 0.0
    %3215 = vmatprep.subr.mxu0 0.0
    %3216 = vmatpush1.msra.mxu0 0.0
    %3217 = vmatprep.subr.mxu0 0.0
    %3218 = vmatpush1.msra.mxu0 0.0
    %3219 = vmatprep.subr.mxu0 0.0
    %3220 = vmatpush1.msra.mxu0 0.0
    %3221 = vmatprep.subr.mxu0 0.0
    %3222 = vmatpush1.msra.mxu0 0.0
    %3223 = vmatprep.subr.mxu0 0.0
    %3224 = vmatpush1.msra.mxu0 0.0
    %3225 = vmatprep.subr.mxu0 0.0
    %3226 = vmatpush1.msra.mxu0 0.0
    %3227 = vmatprep.subr.mxu0 0.0
    %3228 = vmatpush1.msra.mxu0 0.0
    %3229 = vmatprep.subr.mxu0 0.0
    %3230 = vmatpush1.msra.mxu0 0.0
    %3231 = vmatprep.subr.mxu0 0.0
    %3232 = vmatpush1.msra.mxu0 0.0
    %3233 = vmatprep.subr.mxu0 0.0
    %3234 = vmatpush1.msra.mxu0 0.0
    %3235 = vmatprep.subr.mxu0 0.0
    %3236 = vmatpush1.msra.mxu0 0.0
    %3237 = vmatprep.subr.mxu0 0.0
    %3238 = vmatpush1.msra.mxu0 0.0
    %3239 = vmatprep.subr.mxu0 0.0
    %3240 = vmatpush1.msra.mxu0 0.0
    %3241 = vmatprep.subr.mxu0 0.0
    %3242 = vmatpush1.msra.mxu0 0.0
    %3243 = vmatprep.subr.mxu0 0.0
    %3244 = vmatpush1.msra.mxu0 0.0
    %3245 = vmatprep.subr.mxu0 0.0
    %3246 = vmatpush1.msra.mxu0 0.0
    %3247 = vmatprep.mubr.f32.mxu0 0.0
    %3248 = vmatmul.mubr.f32.gmra.mrb[0].mxu0 %v571
    %v3249 = vpop.f32.mrb[0].mxu0
    %v3250 = vadd.f32 0.0, %v3249
    %v3251 = vpop.f32.mrb[0].mxu0
    %3252 = vmatprep.mubr.f32.mxu0 0.0
    %3253 = vmatmul.mubr.f32.gmra.mrb[0].mxu0 %v574
    %v3254 = vpop.f32.mrb[0].mxu0
    %v3255 = vadd.f32 0.0, %v3254
    %v3256 = vpop.f32.mrb[0].mxu0
    %3257 = vdwg.mxu0
    %v3258 = vadd.f32 %v3176, %v3250
    %v3259 = vadd.f32 %v3177, %v3255
    %v3260 = vtanh.pop %v3258
    %v3261 = vtanh.pop %v3259
    %v3262 = vsub.f32 %v3260, %v3080
    %v3263 = vsub.f32 %v3261, %v3081
    %v3264 = vmul.f32 %v3173, %v3262
    %v3265 = vmul.f32 %v3175, %v3263
    %v3266 = vadd.f32 %v3080, %v3264
    %v3267 = vadd.f32 %v3081, %v3265
    %v3268 = vld [vmem:[%s376] sm:$0xff]
    %v3269 = vld [vmem:[%s376 + $0x8] sm:$0x3]
    %v3271 = vsel %vm473, %v3267, 0
    %3273 = vmatprep.subr.mxu0 0.0
    %3274 = vmatpush1.msra.mxu0 %v3266
    %3275 = vmatprep.subr.mxu0 0.0
    %3276 = vmatpush1.msra.mxu0 %v3271
    %3277 = vmatprep.subr.mxu0 0.0
    %3278 = vmatpush1.msra.mxu0 0.0
    %3279 = vmatprep.subr.mxu0 0.0
    %3280 = vmatpush1.msra.mxu0 0.0
    %3281 = vmatprep.subr.mxu0 0.0
    %3282 = vmatpush1.msra.mxu0 0.0
    %3283 = vmatprep.subr.mxu0 0.0
    %3284 = vmatpush1.msra.mxu0 0.0
    %3285 = vmatprep.subr.mxu0 0.0
    %3286 = vmatpush1.msra.mxu0 0.0
    %3287 = vmatprep.subr.mxu0 0.0
    %3288 = vmatpush1.msra.mxu0 0.0
    %3289 = vmatprep.subr.mxu0 0.0
    %3290 = vmatpush1.msra.mxu0 0.0
    %3291 = vmatprep.subr.mxu0 0.0
    %3292 = vmatpush1.msra.mxu0 0.0
    %3293 = vmatprep.subr.mxu0 0.0
    %3294 = vmatpush1.msra.mxu0 0.0
    %3295 = vmatprep.subr.mxu0 0.0
    %3296 = vmatpush1.msra.mxu0 0.0
    %3297 = vmatprep.subr.mxu0 0.0
    %3298 = vmatpush1.msra.mxu0 0.0
    %3299 = vmatprep.subr.mxu0 0.0
    %3300 = vmatpush1.msra.mxu0 0.0
    %3301 = vmatprep.subr.mxu0 0.0
    %3302 = vmatpush1.msra.mxu0 0.0
    %3303 = vmatprep.subr.mxu0 0.0
    %3304 = vmatpush1.msra.mxu0 0.0
    %3305 = vmatprep.subr.mxu0 0.0
    %3306 = vmatpush1.msra.mxu0 0.0
    %3307 = vmatprep.subr.mxu0 0.0
    %3308 = vmatpush1.msra.mxu0 0.0
    %3309 = vmatprep.subr.mxu0 0.0
    %3310 = vmatpush1.msra.mxu0 0.0
    %3311 = vmatprep.subr.mxu0 0.0
    %3312 = vmatpush1.msra.mxu0 0.0
    %3313 = vmatprep.subr.mxu0 0.0
    %3314 = vmatpush1.msra.mxu0 0.0
    %3315 = vmatprep.subr.mxu0 0.0
    %3316 = vmatpush1.msra.mxu0 0.0
    %3317 = vmatprep.subr.mxu0 0.0
    %3318 = vmatpush1.msra.mxu0 0.0
    %3319 = vmatprep.subr.mxu0 0.0
    %3320 = vmatpush1.msra.mxu0 0.0
    %3321 = vmatprep.subr.mxu0 0.0
    %3322 = vmatpush1.msra.mxu0 0.0
    %3323 = vmatprep.subr.mxu0 0.0
    %3324 = vmatpush1.msra.mxu0 0.0
    %3325 = vmatprep.subr.mxu0 0.0
    %3326 = vmatpush1.msra.mxu0 0.0
    %3327 = vmatprep.subr.mxu0 0.0
    %3328 = vmatpush1.msra.mxu0 0.0
    %3329 = vmatprep.subr.mxu0 0.0
    %3330 = vmatpush1.msra.mxu0 0.0
    %3331 = vmatprep.subr.mxu0 0.0
    %3332 = vmatpush1.msra.mxu0 0.0
    %3333 = vmatprep.subr.mxu0 0.0
    %3334 = vmatpush1.msra.mxu0 0.0
    %3335 = vmatprep.subr.mxu0 0.0
    %3336 = vmatpush1.msra.mxu0 0.0
    %3337 = vmatprep.mubr.f32.mxu0 0.0
    %3338 = vmatmul.mubr.f32.gmra.mrb[0].mxu0 %v468
    %v3339 = vpop.f32.mrb[0].mxu0
    %v3340 = vadd.f32 0.0, %v3339
    %v3341 = vpop.f32.mrb[0].mxu0
    %3342 = vmatprep.mubr.f32.mxu0 0.0
    %3343 = vmatmul.mubr.f32.gmra.mrb[0].mxu0 %v471
    %v3344 = vpop.f32.mrb[0].mxu0
    %v3345 = vadd.f32 0.0, %v3344
    %v3346 = vpop.f32.mrb[0].mxu0
    %3347 = vdwg.mxu0
    %v3348 = vadd.f32 %v3268, %v3340
    %v3349 = vadd.f32 %v3269, %v3345
    %v3350 = vxor.u32 %v3348, 2147483648
    %v3351 = vxor.u32 %v3349, 2147483648
    %v3352 = vmul.f32 %v3350, 1.442695
    %v3353 = vpow.pop %v3352
    %v3354 = vmul.f32 %v3351, 1.442695
    %v3355 = vpow.pop %v3354
    %v3356 = vadd.f32 %v3353, 1.0
    %v3357 = vadd.f32 %v3355, 1.0
    %v3358 = vrcp.pop %v3356
    %v3359 = vmul.f32 1.0, %v3358
    %v3360 = vrcp.pop %v3357
    %v3361 = vmul.f32 1.0, %v3360
    %v3362 = vld [vmem:[%s383] sm:$0xff]
    %v3363 = vld [vmem:[%s383 + $0x8] sm:$0x3]
    %v3364 = vmul.f32 %v3359, %v3266
    %v3365 = vmul.f32 %v3361, %v3267
    %v3367 = vsel %vm473, %v3365, 0
    %3369 = vmatprep.subr.mxu0 0.0
    %3370 = vmatpush1.msra.mxu0 %v3364
    %3371 = vmatprep.subr.mxu0 0.0
    %3372 = vmatpush1.msra.mxu0 %v3367
    %3373 = vmatprep.subr.mxu0 0.0
    %3374 = vmatpush1.msra.mxu0 0.0
    %3375 = vmatprep.subr.mxu0 0.0
    %3376 = vmatpush1.msra.mxu0 0.0
    %3377 = vmatprep.subr.mxu0 0.0
    %3378 = vmatpush1.msra.mxu0 0.0
    %3379 = vmatprep.subr.mxu0 0.0
    %3380 = vmatpush1.msra.mxu0 0.0
    %3381 = vmatprep.subr.mxu0 0.0
    %3382 = vmatpush1.msra.mxu0 0.0
    %3383 = vmatprep.subr.mxu0 0.0
    %3384 = vmatpush1.msra.mxu0 0.0
    %3385 = vmatprep.subr.mxu0 0.0
    %3386 = vmatpush1.msra.mxu0 0.0
    %3387 = vmatprep.subr.mxu0 0.0
    %3388 = vmatpush1.msra.mxu0 0.0
    %3389 = vmatprep.subr.mxu0 0.0
    %3390 = vmatpush1.msra.mxu0 0.0
    %3391 = vmatprep.subr.mxu0 0.0
    %3392 = vmatpush1.msra.mxu0 0.0
    %3393 = vmatprep.subr.mxu0 0.0
    %3394 = vmatpush1.msra.mxu0 0.0
    %3395 = vmatprep.subr.mxu0 0.0
    %3396 = vmatpush1.msra.mxu0 0.0
    %3397 = vmatprep.subr.mxu0 0.0
    %3398 = vmatpush1.msra.mxu0 0.0
    %3399 = vmatprep.subr.mxu0 0.0
    %3400 = vmatpush1.msra.mxu0 0.0
    %3401 = vmatprep.subr.mxu0 0.0
    %3402 = vmatpush1.msra.mxu0 0.0
    %3403 = vmatprep.subr.mxu0 0.0
    %3404 = vmatpush1.msra.mxu0 0.0
    %3405 = vmatprep.subr.mxu0 0.0
    %3406 = vmatpush1.msra.mxu0 0.0
    %3407 = vmatprep.subr.mxu0 0.0
    %3408 = vmatpush1.msra.mxu0 0.0
    %3409 = vmatprep.subr.mxu0 0.0
    %3410 = vmatpush1.msra.mxu0 0.0
    %3411 = vmatprep.subr.mxu0 0.0
    %3412 = vmatpush1.msra.mxu0 0.0
    %3413 = vmatprep.subr.mxu0 0.0
    %3414 = vmatpush1.msra.mxu0 0.0
    %3415 = vmatprep.subr.mxu0 0.0
    %3416 = vmatpush1.msra.mxu0 0.0
    %3417 = vmatprep.subr.mxu0 0.0
    %3418 = vmatpush1.msra.mxu0 0.0
    %3419 = vmatprep.subr.mxu0 0.0
    %3420 = vmatpush1.msra.mxu0 0.0
    %3421 = vmatprep.subr.mxu0 0.0
    %3422 = vmatpush1.msra.mxu0 0.0
    %3423 = vmatprep.subr.mxu0 0.0
    %3424 = vmatpush1.msra.mxu0 0.0
    %3425 = vmatprep.subr.mxu0 0.0
    %3426 = vmatpush1.msra.mxu0 0.0
    %3427 = vmatprep.subr.mxu0 0.0
    %3428 = vmatpush1.msra.mxu0 0.0
    %3429 = vmatprep.subr.mxu0 0.0
    %3430 = vmatpush1.msra.mxu0 0.0
    %3431 = vmatprep.subr.mxu0 0.0
    %3432 = vmatpush1.msra.mxu0 0.0
    %3433 = vmatprep.mubr.f32.mxu0 0.0
    %3434 = vmatmul.mubr.f32.gmra.mrb[0].mxu0 %v571
    %v3435 = vpop.f32.mrb[0].mxu0
    %v3436 = vadd.f32 0.0, %v3435
    %v3437 = vpop.f32.mrb[0].mxu0
    %3438 = vmatprep.mubr.f32.mxu0 0.0
    %3439 = vmatmul.mubr.f32.gmra.mrb[0].mxu0 %v574
    %v3440 = vpop.f32.mrb[0].mxu0
    %v3441 = vadd.f32 0.0, %v3440
    %v3442 = vpop.f32.mrb[0].mxu0
    %3443 = vdwg.mxu0
    %v3444 = vadd.f32 %v3362, %v3436
    %v3445 = vadd.f32 %v3363, %v3441
    %v3446 = vtanh.pop %v3444
    %v3447 = vtanh.pop %v3445
    %v3448 = vsub.f32 %v3446, %v3266
    %v3449 = vsub.f32 %v3447, %v3267
    %v3450 = vmul.f32 %v3359, %v3448
    %v3451 = vmul.f32 %v3361, %v3449
    %v3452 = vadd.f32 %v3266, %v3450
    %v3453 = vadd.f32 %v3267, %v3451
    %v3454 = vld [vmem:[%s395] sm:$0xff]
    %v3455 = vld [vmem:[%s395 + $0x8] sm:$0x3]
    %v3457 = vsel %vm473, %v3453, 0
    %3459 = vmatprep.subr.mxu0 0.0
    %3460 = vmatpush1.msra.mxu0 %v3452
    %3461 = vmatprep.subr.mxu0 0.0
    %3462 = vmatpush1.msra.mxu0 %v3457
    %3463 = vmatprep.subr.mxu0 0.0
    %3464 = vmatpush1.msra.mxu0 0.0
    %3465 = vmatprep.subr.mxu0 0.0
    %3466 = vmatpush1.msra.mxu0 0.0
    %3467 = vmatprep.subr.mxu0 0.0
    %3468 = vmatpush1.msra.mxu0 0.0
    %3469 = vmatprep.subr.mxu0 0.0
    %3470 = vmatpush1.msra.mxu0 0.0
    %3471 = vmatprep.subr.mxu0 0.0
    %3472 = vmatpush1.msra.mxu0 0.0
    %3473 = vmatprep.subr.mxu0 0.0
    %3474 = vmatpush1.msra.mxu0 0.0
    %3475 = vmatprep.subr.mxu0 0.0
    %3476 = vmatpush1.msra.mxu0 0.0
    %3477 = vmatprep.subr.mxu0 0.0
    %3478 = vmatpush1.msra.mxu0 0.0
    %3479 = vmatprep.subr.mxu0 0.0
    %3480 = vmatpush1.msra.mxu0 0.0
    %3481 = vmatprep.subr.mxu0 0.0
    %3482 = vmatpush1.msra.mxu0 0.0
    %3483 = vmatprep.subr.mxu0 0.0
    %3484 = vmatpush1.msra.mxu0 0.0
    %3485 = vmatprep.subr.mxu0 0.0
    %3486 = vmatpush1.msra.mxu0 0.0
    %3487 = vmatprep.subr.mxu0 0.0
    %3488 = vmatpush1.msra.mxu0 0.0
    %3489 = vmatprep.subr.mxu0 0.0
    %3490 = vmatpush1.msra.mxu0 0.0
    %3491 = vmatprep.subr.mxu0 0.0
    %3492 = vmatpush1.msra.mxu0 0.0
    %3493 = vmatprep.subr.mxu0 0.0
    %3494 = vmatpush1.msra.mxu0 0.0
    %3495 = vmatprep.subr.mxu0 0.0
    %3496 = vmatpush1.msra.mxu0 0.0
    %3497 = vmatprep.subr.mxu0 0.0
    %3498 = vmatpush1.msra.mxu0 0.0
    %3499 = vmatprep.subr.mxu0 0.0
    %3500 = vmatpush1.msra.mxu0 0.0
    %3501 = vmatprep.subr.mxu0 0.0
    %3502 = vmatpush1.msra.mxu0 0.0
    %3503 = vmatprep.subr.mxu0 0.0
    %3504 = vmatpush1.msra.mxu0 0.0
    %3505 = vmatprep.subr.mxu0 0.0
    %3506 = vmatpush1.msra.mxu0 0.0
    %3507 = vmatprep.subr.mxu0 0.0
    %3508 = vmatpush1.msra.mxu0 0.0
    %3509 = vmatprep.subr.mxu0 0.0
    %3510 = vmatpush1.msra.mxu0 0.0
    %3511 = vmatprep.subr.mxu0 0.0
    %3512 = vmatpush1.msra.mxu0 0.0
    %3513 = vmatprep.subr.mxu0 0.0
    %3514 = vmatpush1.msra.mxu0 0.0
    %3515 = vmatprep.subr.mxu0 0.0
    %3516 = vmatpush1.msra.mxu0 0.0
    %3517 = vmatprep.subr.mxu0 0.0
    %3518 = vmatpush1.msra.mxu0 0.0
    %3519 = vmatprep.subr.mxu0 0.0
    %3520 = vmatpush1.msra.mxu0 0.0
    %3521 = vmatprep.subr.mxu0 0.0
    %3522 = vmatpush1.msra.mxu0 0.0
    %3523 = vmatprep.mubr.f32.mxu0 0.0
    %3524 = vmatmul.mubr.f32.gmra.mrb[0].mxu0 %v468
    %v3525 = vpop.f32.mrb[0].mxu0
    %v3526 = vadd.f32 0.0, %v3525
    %v3527 = vpop.f32.mrb[0].mxu0
    %3528 = vmatprep.mubr.f32.mxu0 0.0
    %3529 = vmatmul.mubr.f32.gmra.mrb[0].mxu0 %v471
    %v3530 = vpop.f32.mrb[0].mxu0
    %v3531 = vadd.f32 0.0, %v3530
    %v3532 = vpop.f32.mrb[0].mxu0
    %3533 = vdwg.mxu0
    %v3534 = vadd.f32 %v3454, %v3526
    %v3535 = vadd.f32 %v3455, %v3531
    %v3536 = vxor.u32 %v3534, 2147483648
    %v3537 = vxor.u32 %v3535, 2147483648
    %v3538 = vmul.f32 %v3536, 1.442695
    %v3539 = vpow.pop %v3538
    %v3540 = vmul.f32 %v3537, 1.442695
    %v3541 = vpow.pop %v3540
    %v3542 = vadd.f32 %v3539, 1.0
    %v3543 = vadd.f32 %v3541, 1.0
    %v3544 = vrcp.pop %v3542
    %v3545 = vmul.f32 1.0, %v3544
    %v3546 = vrcp.pop %v3543
    %v3547 = vmul.f32 1.0, %v3546
    %v3548 = vld [vmem:[%s402] sm:$0xff]
    %v3549 = vld [vmem:[%s402 + $0x8] sm:$0x3]
    %v3550 = vmul.f32 %v3545, %v3452
    %v3551 = vmul.f32 %v3547, %v3453
    %v3553 = vsel %vm473, %v3551, 0
    %3555 = vmatprep.subr.mxu0 0.0
    %3556 = vmatpush1.msra.mxu0 %v3550
    %3557 = vmatprep.subr.mxu0 0.0
    %3558 = vmatpush1.msra.mxu0 %v3553
    %3559 = vmatprep.subr.mxu0 0.0
    %3560 = vmatpush1.msra.mxu0 0.0
    %3561 = vmatprep.subr.mxu0 0.0
    %3562 = vmatpush1.msra.mxu0 0.0
    %3563 = vmatprep.subr.mxu0 0.0
    %3564 = vmatpush1.msra.mxu0 0.0
    %3565 = vmatprep.subr.mxu0 0.0
    %3566 = vmatpush1.msra.mxu0 0.0
    %3567 = vmatprep.subr.mxu0 0.0
    %3568 = vmatpush1.msra.mxu0 0.0
    %3569 = vmatprep.subr.mxu0 0.0
    %3570 = vmatpush1.msra.mxu0 0.0
    %3571 = vmatprep.subr.mxu0 0.0
    %3572 = vmatpush1.msra.mxu0 0.0
    %3573 = vmatprep.subr.mxu0 0.0
    %3574 = vmatpush1.msra.mxu0 0.0
    %3575 = vmatprep.subr.mxu0 0.0
    %3576 = vmatpush1.msra.mxu0 0.0
    %3577 = vmatprep.subr.mxu0 0.0
    %3578 = vmatpush1.msra.mxu0 0.0
    %3579 = vmatprep.subr.mxu0 0.0
    %3580 = vmatpush1.msra.mxu0 0.0
    %3581 = vmatprep.subr.mxu0 0.0
    %3582 = vmatpush1.msra.mxu0 0.0
    %3583 = vmatprep.subr.mxu0 0.0
    %3584 = vmatpush1.msra.mxu0 0.0
    %3585 = vmatprep.subr.mxu0 0.0
    %3586 = vmatpush1.msra.mxu0 0.0
    %3587 = vmatprep.subr.mxu0 0.0
    %3588 = vmatpush1.msra.mxu0 0.0
    %3589 = vmatprep.subr.mxu0 0.0
    %3590 = vmatpush1.msra.mxu0 0.0
    %3591 = vmatprep.subr.mxu0 0.0
    %3592 = vmatpush1.msra.mxu0 0.0
    %3593 = vmatprep.subr.mxu0 0.0
    %3594 = vmatpush1.msra.mxu0 0.0
    %3595 = vmatprep.subr.mxu0 0.0
    %3596 = vmatpush1.msra.mxu0 0.0
    %3597 = vmatprep.subr.mxu0 0.0
    %3598 = vmatpush1.msra.mxu0 0.0
    %3599 = vmatprep.subr.mxu0 0.0
    %3600 = vmatpush1.msra.mxu0 0.0
    %3601 = vmatprep.subr.mxu0 0.0
    %3602 = vmatpush1.msra.mxu0 0.0
    %3603 = vmatprep.subr.mxu0 0.0
    %3604 = vmatpush1.msra.mxu0 0.0
    %3605 = vmatprep.subr.mxu0 0.0
    %3606 = vmatpush1.msra.mxu0 0.0
    %3607 = vmatprep.subr.mxu0 0.0
    %3608 = vmatpush1.msra.mxu0 0.0
    %3609 = vmatprep.subr.mxu0 0.0
    %3610 = vmatpush1.msra.mxu0 0.0
    %3611 = vmatprep.subr.mxu0 0.0
    %3612 = vmatpush1.msra.mxu0 0.0
    %3613 = vmatprep.subr.mxu0 0.0
    %3614 = vmatpush1.msra.mxu0 0.0
    %3615 = vmatprep.subr.mxu0 0.0
    %3616 = vmatpush1.msra.mxu0 0.0
    %3617 = vmatprep.subr.mxu0 0.0
    %3618 = vmatpush1.msra.mxu0 0.0
    %3619 = vmatprep.mubr.f32.mxu0 0.0
    %3620 = vmatmul.mubr.f32.gmra.mrb[0].mxu0 %v571
    %v3621 = vpop.f32.mrb[0].mxu0
    %v3622 = vadd.f32 0.0, %v3621
    %v3623 = vpop.f32.mrb[0].mxu0
    %3624 = vmatprep.mubr.f32.mxu0 0.0
    %3625 = vmatmul.mubr.f32.gmra.mrb[0].mxu0 %v574
    %v3626 = vpop.f32.mrb[0].mxu0
    %v3627 = vadd.f32 0.0, %v3626
    %v3628 = vpop.f32.mrb[0].mxu0
    %3629 = vdwg.mxu0
    %v3630 = vadd.f32 %v3548, %v3622
    %v3631 = vadd.f32 %v3549, %v3627
    %v3632 = vtanh.pop %v3630
    %v3633 = vtanh.pop %v3631
    %v3634 = vsub.f32 %v3632, %v3452
    %v3635 = vsub.f32 %v3633, %v3453
    %v3636 = vmul.f32 %v3545, %v3634
    %v3637 = vmul.f32 %v3547, %v3635
    %v3638 = vadd.f32 %v3452, %v3636
    %v3639 = vadd.f32 %v3453, %v3637
    %v3640 = vld [vmem:[%s414] sm:$0xff]
    %v3641 = vld [vmem:[%s414 + $0x8] sm:$0x3]
    %v3643 = vsel %vm473, %v3639, 0
    %3645 = vmatprep.subr.mxu0 0.0
    %3646 = vmatpush1.msra.mxu0 %v3638
    %3647 = vmatprep.subr.mxu0 0.0
    %3648 = vmatpush1.msra.mxu0 %v3643
    %3649 = vmatprep.subr.mxu0 0.0
    %3650 = vmatpush1.msra.mxu0 0.0
    %3651 = vmatprep.subr.mxu0 0.0
    %3652 = vmatpush1.msra.mxu0 0.0
    %3653 = vmatprep.subr.mxu0 0.0
    %3654 = vmatpush1.msra.mxu0 0.0
    %3655 = vmatprep.subr.mxu0 0.0
    %3656 = vmatpush1.msra.mxu0 0.0
    %3657 = vmatprep.subr.mxu0 0.0
    %3658 = vmatpush1.msra.mxu0 0.0
    %3659 = vmatprep.subr.mxu0 0.0
    %3660 = vmatpush1.msra.mxu0 0.0
    %3661 = vmatprep.subr.mxu0 0.0
    %3662 = vmatpush1.msra.mxu0 0.0
    %3663 = vmatprep.subr.mxu0 0.0
    %3664 = vmatpush1.msra.mxu0 0.0
    %3665 = vmatprep.subr.mxu0 0.0
    %3666 = vmatpush1.msra.mxu0 0.0
    %3667 = vmatprep.subr.mxu0 0.0
    %3668 = vmatpush1.msra.mxu0 0.0
    %3669 = vmatprep.subr.mxu0 0.0
    %3670 = vmatpush1.msra.mxu0 0.0
    %3671 = vmatprep.subr.mxu0 0.0
    %3672 = vmatpush1.msra.mxu0 0.0
    %3673 = vmatprep.subr.mxu0 0.0
    %3674 = vmatpush1.msra.mxu0 0.0
    %3675 = vmatprep.subr.mxu0 0.0
    %3676 = vmatpush1.msra.mxu0 0.0
    %3677 = vmatprep.subr.mxu0 0.0
    %3678 = vmatpush1.msra.mxu0 0.0
    %3679 = vmatprep.subr.mxu0 0.0
    %3680 = vmatpush1.msra.mxu0 0.0
    %3681 = vmatprep.subr.mxu0 0.0
    %3682 = vmatpush1.msra.mxu0 0.0
    %3683 = vmatprep.subr.mxu0 0.0
    %3684 = vmatpush1.msra.mxu0 0.0
    %3685 = vmatprep.subr.mxu0 0.0
    %3686 = vmatpush1.msra.mxu0 0.0
    %3687 = vmatprep.subr.mxu0 0.0
    %3688 = vmatpush1.msra.mxu0 0.0
    %3689 = vmatprep.subr.mxu0 0.0
    %3690 = vmatpush1.msra.mxu0 0.0
    %3691 = vmatprep.subr.mxu0 0.0
    %3692 = vmatpush1.msra.mxu0 0.0
    %3693 = vmatprep.subr.mxu0 0.0
    %3694 = vmatpush1.msra.mxu0 0.0
    %3695 = vmatprep.subr.mxu0 0.0
    %3696 = vmatpush1.msra.mxu0 0.0
    %3697 = vmatprep.subr.mxu0 0.0
    %3698 = vmatpush1.msra.mxu0 0.0
    %3699 = vmatprep.subr.mxu0 0.0
    %3700 = vmatpush1.msra.mxu0 0.0
    %3701 = vmatprep.subr.mxu0 0.0
    %3702 = vmatpush1.msra.mxu0 0.0
    %3703 = vmatprep.subr.mxu0 0.0
    %3704 = vmatpush1.msra.mxu0 0.0
    %3705 = vmatprep.subr.mxu0 0.0
    %3706 = vmatpush1.msra.mxu0 0.0
    %3707 = vmatprep.subr.mxu0 0.0
    %3708 = vmatpush1.msra.mxu0 0.0
    %3709 = vmatprep.mubr.f32.mxu0 0.0
    %3710 = vmatmul.mubr.f32.gmra.mrb[0].mxu0 %v468
    %v3711 = vpop.f32.mrb[0].mxu0
    %v3712 = vadd.f32 0.0, %v3711
    %v3713 = vpop.f32.mrb[0].mxu0
    %3714 = vmatprep.mubr.f32.mxu0 0.0
    %3715 = vmatmul.mubr.f32.gmra.mrb[0].mxu0 %v471
    %v3716 = vpop.f32.mrb[0].mxu0
    %v3717 = vadd.f32 0.0, %v3716
    %v3718 = vpop.f32.mrb[0].mxu0
    %3719 = vdwg.mxu0
    %v3720 = vadd.f32 %v3640, %v3712
    %v3721 = vadd.f32 %v3641, %v3717
    %v3722 = vxor.u32 %v3720, 2147483648
    %v3723 = vxor.u32 %v3721, 2147483648
    %v3724 = vmul.f32 %v3722, 1.442695
    %v3725 = vpow.pop %v3724
    %v3726 = vmul.f32 %v3723, 1.442695
    %v3727 = vpow.pop %v3726
    %v3728 = vadd.f32 %v3725, 1.0
    %v3729 = vadd.f32 %v3727, 1.0
    %v3730 = vrcp.pop %v3728
    %v3731 = vmul.f32 1.0, %v3730
    %v3732 = vrcp.pop %v3729
    %v3733 = vmul.f32 1.0, %v3732
    %v3734 = vld [vmem:[%s421] sm:$0xff]
    %v3735 = vld [vmem:[%s421 + $0x8] sm:$0x3]
    %v3736 = vmul.f32 %v3731, %v3638
    %v3737 = vmul.f32 %v3733, %v3639
    %v3739 = vsel %vm473, %v3737, 0
    %3741 = vmatprep.subr.mxu0 0.0
    %3742 = vmatpush1.msra.mxu0 %v3736
    %3743 = vmatprep.subr.mxu0 0.0
    %3744 = vmatpush1.msra.mxu0 %v3739
    %3745 = vmatprep.subr.mxu0 0.0
    %3746 = vmatpush1.msra.mxu0 0.0
    %3747 = vmatprep.subr.mxu0 0.0
    %3748 = vmatpush1.msra.mxu0 0.0
    %3749 = vmatprep.subr.mxu0 0.0
    %3750 = vmatpush1.msra.mxu0 0.0
    %3751 = vmatprep.subr.mxu0 0.0
    %3752 = vmatpush1.msra.mxu0 0.0
    %3753 = vmatprep.subr.mxu0 0.0
    %3754 = vmatpush1.msra.mxu0 0.0
    %3755 = vmatprep.subr.mxu0 0.0
    %3756 = vmatpush1.msra.mxu0 0.0
    %3757 = vmatprep.subr.mxu0 0.0
    %3758 = vmatpush1.msra.mxu0 0.0
    %3759 = vmatprep.subr.mxu0 0.0
    %3760 = vmatpush1.msra.mxu0 0.0
    %3761 = vmatprep.subr.mxu0 0.0
    %3762 = vmatpush1.msra.mxu0 0.0
    %3763 = vmatprep.subr.mxu0 0.0
    %3764 = vmatpush1.msra.mxu0 0.0
    %3765 = vmatprep.subr.mxu0 0.0
    %3766 = vmatpush1.msra.mxu0 0.0
    %3767 = vmatprep.subr.mxu0 0.0
    %3768 = vmatpush1.msra.mxu0 0.0
    %3769 = vmatprep.subr.mxu0 0.0
    %3770 = vmatpush1.msra.mxu0 0.0
    %3771 = vmatprep.subr.mxu0 0.0
    %3772 = vmatpush1.msra.mxu0 0.0
    %3773 = vmatprep.subr.mxu0 0.0
    %3774 = vmatpush1.msra.mxu0 0.0
    %3775 = vmatprep.subr.mxu0 0.0
    %3776 = vmatpush1.msra.mxu0 0.0
    %3777 = vmatprep.subr.mxu0 0.0
    %3778 = vmatpush1.msra.mxu0 0.0
    %3779 = vmatprep.subr.mxu0 0.0
    %3780 = vmatpush1.msra.mxu0 0.0
    %3781 = vmatprep.subr.mxu0 0.0
    %3782 = vmatpush1.msra.mxu0 0.0
    %3783 = vmatprep.subr.mxu0 0.0
    %3784 = vmatpush1.msra.mxu0 0.0
    %3785 = vmatprep.subr.mxu0 0.0
    %3786 = vmatpush1.msra.mxu0 0.0
    %3787 = vmatprep.subr.mxu0 0.0
    %3788 = vmatpush1.msra.mxu0 0.0
    %3789 = vmatprep.subr.mxu0 0.0
    %3790 = vmatpush1.msra.mxu0 0.0
    %3791 = vmatprep.subr.mxu0 0.0
    %3792 = vmatpush1.msra.mxu0 0.0
    %3793 = vmatprep.subr.mxu0 0.0
    %3794 = vmatpush1.msra.mxu0 0.0
    %3795 = vmatprep.subr.mxu0 0.0
    %3796 = vmatpush1.msra.mxu0 0.0
    %3797 = vmatprep.subr.mxu0 0.0
    %3798 = vmatpush1.msra.mxu0 0.0
    %3799 = vmatprep.subr.mxu0 0.0
    %3800 = vmatpush1.msra.mxu0 0.0
    %3801 = vmatprep.subr.mxu0 0.0
    %3802 = vmatpush1.msra.mxu0 0.0
    %3803 = vmatprep.subr.mxu0 0.0
    %3804 = vmatpush1.msra.mxu0 0.0
    %3805 = vmatprep.mubr.f32.mxu0 0.0
    %3806 = vmatmul.mubr.f32.gmra.mrb[0].mxu0 %v571
    %v3807 = vpop.f32.mrb[0].mxu0
    %v3808 = vadd.f32 0.0, %v3807
    %v3809 = vpop.f32.mrb[0].mxu0
    %3810 = vmatprep.mubr.f32.mxu0 0.0
    %3811 = vmatmul.mubr.f32.gmra.mrb[0].mxu0 %v574
    %v3812 = vpop.f32.mrb[0].mxu0
    %v3813 = vadd.f32 0.0, %v3812
    %v3814 = vpop.f32.mrb[0].mxu0
    %3815 = vdwg.mxu0
    %v3816 = vadd.f32 %v3734, %v3808
    %v3817 = vadd.f32 %v3735, %v3813
    %v3818 = vtanh.pop %v3816
    %v3819 = vtanh.pop %v3817
    %v3820 = vsub.f32 %v3818, %v3638
    %v3821 = vsub.f32 %v3819, %v3639
    %v3822 = vmul.f32 %v3731, %v3820
    %v3823 = vmul.f32 %v3733, %v3821
    %v3824 = vadd.f32 %v3638, %v3822
    %v3825 = vadd.f32 %v3639, %v3823
    %v3826 = vld [vmem:[%s433] sm:$0xff]
    %v3827 = vld [vmem:[%s433 + $0x8] sm:$0x3]
    %v3829 = vsel %vm473, %v3825, 0
    %3831 = vmatprep.subr.mxu0 0.0
    %3832 = vmatpush1.msra.mxu0 %v3824
    %3833 = vmatprep.subr.mxu0 0.0
    %3834 = vmatpush1.msra.mxu0 %v3829
    %3835 = vmatprep.subr.mxu0 0.0
    %3836 = vmatpush1.msra.mxu0 0.0
    %3837 = vmatprep.subr.mxu0 0.0
    %3838 = vmatpush1.msra.mxu0 0.0
    %3839 = vmatprep.subr.mxu0 0.0
    %3840 = vmatpush1.msra.mxu0 0.0
    %3841 = vmatprep.subr.mxu0 0.0
    %3842 = vmatpush1.msra.mxu0 0.0
    %3843 = vmatprep.subr.mxu0 0.0
    %3844 = vmatpush1.msra.mxu0 0.0
    %3845 = vmatprep.subr.mxu0 0.0
    %3846 = vmatpush1.msra.mxu0 0.0
    %3847 = vmatprep.subr.mxu0 0.0
    %3848 = vmatpush1.msra.mxu0 0.0
    %3849 = vmatprep.subr.mxu0 0.0
    %3850 = vmatpush1.msra.mxu0 0.0
    %3851 = vmatprep.subr.mxu0 0.0
    %3852 = vmatpush1.msra.mxu0 0.0
    %3853 = vmatprep.subr.mxu0 0.0
    %3854 = vmatpush1.msra.mxu0 0.0
    %3855 = vmatprep.subr.mxu0 0.0
    %3856 = vmatpush1.msra.mxu0 0.0
    %3857 = vmatprep.subr.mxu0 0.0
    %3858 = vmatpush1.msra.mxu0 0.0
    %3859 = vmatprep.subr.mxu0 0.0
    %3860 = vmatpush1.msra.mxu0 0.0
    %3861 = vmatprep.subr.mxu0 0.0
    %3862 = vmatpush1.msra.mxu0 0.0
    %3863 = vmatprep.subr.mxu0 0.0
    %3864 = vmatpush1.msra.mxu0 0.0
    %3865 = vmatprep.subr.mxu0 0.0
    %3866 = vmatpush1.msra.mxu0 0.0
    %3867 = vmatprep.subr.mxu0 0.0
    %3868 = vmatpush1.msra.mxu0 0.0
    %3869 = vmatprep.subr.mxu0 0.0
    %3870 = vmatpush1.msra.mxu0 0.0
    %3871 = vmatprep.subr.mxu0 0.0
    %3872 = vmatpush1.msra.mxu0 0.0
    %3873 = vmatprep.subr.mxu0 0.0
    %3874 = vmatpush1.msra.mxu0 0.0
    %3875 = vmatprep.subr.mxu0 0.0
    %3876 = vmatpush1.msra.mxu0 0.0
    %3877 = vmatprep.subr.mxu0 0.0
    %3878 = vmatpush1.msra.mxu0 0.0
    %3879 = vmatprep.subr.mxu0 0.0
    %3880 = vmatpush1.msra.mxu0 0.0
    %3881 = vmatprep.subr.mxu0 0.0
    %3882 = vmatpush1.msra.mxu0 0.0
    %3883 = vmatprep.subr.mxu0 0.0
    %3884 = vmatpush1.msra.mxu0 0.0
    %3885 = vmatprep.subr.mxu0 0.0
    %3886 = vmatpush1.msra.mxu0 0.0
    %3887 = vmatprep.subr.mxu0 0.0
    %3888 = vmatpush1.msra.mxu0 0.0
    %3889 = vmatprep.subr.mxu0 0.0
    %3890 = vmatpush1.msra.mxu0 0.0
    %3891 = vmatprep.subr.mxu0 0.0
    %3892 = vmatpush1.msra.mxu0 0.0
    %3893 = vmatprep.subr.mxu0 0.0
    %3894 = vmatpush1.msra.mxu0 0.0
    %3895 = vmatprep.mubr.f32.mxu0 0.0
    %3896 = vmatmul.mubr.f32.gmra.mrb[0].mxu0 %v468
    %v3897 = vpop.f32.mrb[0].mxu0
    %v3898 = vadd.f32 0.0, %v3897
    %v3899 = vpop.f32.mrb[0].mxu0
    %3900 = vmatprep.mubr.f32.mxu0 0.0
    %3901 = vmatmul.mubr.f32.gmra.mrb[0].mxu0 %v471
    %v3902 = vpop.f32.mrb[0].mxu0
    %v3903 = vadd.f32 0.0, %v3902
    %v3904 = vpop.f32.mrb[0].mxu0
    %3905 = vdwg.mxu0
    %v3906 = vadd.f32 %v3826, %v3898
    %v3907 = vadd.f32 %v3827, %v3903
    %v3908 = vxor.u32 %v3906, 2147483648
    %v3909 = vxor.u32 %v3907, 2147483648
    %v3910 = vmul.f32 %v3908, 1.442695
    %v3911 = vpow.pop %v3910
    %v3912 = vmul.f32 %v3909, 1.442695
    %v3913 = vpow.pop %v3912
    %v3914 = vadd.f32 %v3911, 1.0
    %v3915 = vadd.f32 %v3913, 1.0
    %v3916 = vrcp.pop %v3914
    %v3917 = vmul.f32 1.0, %v3916
    %v3918 = vrcp.pop %v3915
    %v3919 = vmul.f32 1.0, %v3918
    %v3920 = vld [vmem:[%s440] sm:$0xff]
    %v3921 = vld [vmem:[%s440 + $0x8] sm:$0x3]
    %v3922 = vmul.f32 %v3917, %v3824
    %v3923 = vmul.f32 %v3919, %v3825
    %v3925 = vsel %vm473, %v3923, 0
    %3927 = vmatprep.subr.mxu0 0.0
    %3928 = vmatpush1.msra.mxu0 %v3922
    %3929 = vmatprep.subr.mxu0 0.0
    %3930 = vmatpush1.msra.mxu0 %v3925
    %3931 = vmatprep.subr.mxu0 0.0
    %3932 = vmatpush1.msra.mxu0 0.0
    %3933 = vmatprep.subr.mxu0 0.0
    %3934 = vmatpush1.msra.mxu0 0.0
    %3935 = vmatprep.subr.mxu0 0.0
    %3936 = vmatpush1.msra.mxu0 0.0
    %3937 = vmatprep.subr.mxu0 0.0
    %3938 = vmatpush1.msra.mxu0 0.0
    %3939 = vmatprep.subr.mxu0 0.0
    %3940 = vmatpush1.msra.mxu0 0.0
    %3941 = vmatprep.subr.mxu0 0.0
    %3942 = vmatpush1.msra.mxu0 0.0
    %3943 = vmatprep.subr.mxu0 0.0
    %3944 = vmatpush1.msra.mxu0 0.0
    %3945 = vmatprep.subr.mxu0 0.0
    %3946 = vmatpush1.msra.mxu0 0.0
    %3947 = vmatprep.subr.mxu0 0.0
    %3948 = vmatpush1.msra.mxu0 0.0
    %3949 = vmatprep.subr.mxu0 0.0
    %3950 = vmatpush1.msra.mxu0 0.0
    %3951 = vmatprep.subr.mxu0 0.0
    %3952 = vmatpush1.msra.mxu0 0.0
    %3953 = vmatprep.subr.mxu0 0.0
    %3954 = vmatpush1.msra.mxu0 0.0
    %3955 = vmatprep.subr.mxu0 0.0
    %3956 = vmatpush1.msra.mxu0 0.0
    %3957 = vmatprep.subr.mxu0 0.0
    %3958 = vmatpush1.msra.mxu0 0.0
    %3959 = vmatprep.subr.mxu0 0.0
    %3960 = vmatpush1.msra.mxu0 0.0
    %3961 = vmatprep.subr.mxu0 0.0
    %3962 = vmatpush1.msra.mxu0 0.0
    %3963 = vmatprep.subr.mxu0 0.0
    %3964 = vmatpush1.msra.mxu0 0.0
    %3965 = vmatprep.subr.mxu0 0.0
    %3966 = vmatpush1.msra.mxu0 0.0
    %3967 = vmatprep.subr.mxu0 0.0
    %3968 = vmatpush1.msra.mxu0 0.0
    %3969 = vmatprep.subr.mxu0 0.0
    %3970 = vmatpush1.msra.mxu0 0.0
    %3971 = vmatprep.subr.mxu0 0.0
    %3972 = vmatpush1.msra.mxu0 0.0
    %3973 = vmatprep.subr.mxu0 0.0
    %3974 = vmatpush1.msra.mxu0 0.0
    %3975 = vmatprep.subr.mxu0 0.0
    %3976 = vmatpush1.msra.mxu0 0.0
    %3977 = vmatprep.subr.mxu0 0.0
    %3978 = vmatpush1.msra.mxu0 0.0
    %3979 = vmatprep.subr.mxu0 0.0
    %3980 = vmatpush1.msra.mxu0 0.0
    %3981 = vmatprep.subr.mxu0 0.0
    %3982 = vmatpush1.msra.mxu0 0.0
    %3983 = vmatprep.subr.mxu0 0.0
    %3984 = vmatpush1.msra.mxu0 0.0
    %3985 = vmatprep.subr.mxu0 0.0
    %3986 = vmatpush1.msra.mxu0 0.0
    %3987 = vmatprep.subr.mxu0 0.0
    %3988 = vmatpush1.msra.mxu0 0.0
    %3989 = vmatprep.subr.mxu0 0.0
    %3990 = vmatpush1.msra.mxu0 0.0
    %3991 = vmatprep.mubr.f32.mxu0 0.0
    %3992 = vmatmul.mubr.f32.gmra.mrb[0].mxu0 %v571
    %v3993 = vpop.f32.mrb[0].mxu0
    %v3994 = vadd.f32 0.0, %v3993
    %v3995 = vpop.f32.mrb[0].mxu0
    %3996 = vmatprep.mubr.f32.mxu0 0.0
    %3997 = vmatmul.mubr.f32.gmra.mrb[0].mxu0 %v574
    %v3998 = vpop.f32.mrb[0].mxu0
    %v3999 = vadd.f32 0.0, %v3998
    %v4000 = vpop.f32.mrb[0].mxu0
    %4001 = vdwg.mxu0
    %v4002 = vadd.f32 %v3920, %v3994
    %v4003 = vadd.f32 %v3921, %v3999
    %v4004 = vtanh.pop %v4002
    %v4005 = vtanh.pop %v4003
    %v4006 = vsub.f32 %v4004, %v3824
    %v4007 = vsub.f32 %v4005, %v3825
    %v4008 = vmul.f32 %v3917, %v4006
    %v4009 = vmul.f32 %v3919, %v4007
    %v4010 = vadd.f32 %v3824, %v4008
    %v4011 = vadd.f32 %v3825, %v4009
    %v4012 = vld [vmem:[%s452] sm:$0xff]
    %v4013 = vld [vmem:[%s452 + $0x8] sm:$0x3]
    %v4015 = vsel %vm473, %v4011, 0
    %4017 = vmatprep.subr.mxu0 0.0
    %4018 = vmatpush1.msra.mxu0 %v4010
    %4019 = vmatprep.subr.mxu0 0.0
    %4020 = vmatpush1.msra.mxu0 %v4015
    %4021 = vmatprep.subr.mxu0 0.0
    %4022 = vmatpush1.msra.mxu0 0.0
    %4023 = vmatprep.subr.mxu0 0.0
    %4024 = vmatpush1.msra.mxu0 0.0
    %4025 = vmatprep.subr.mxu0 0.0
    %4026 = vmatpush1.msra.mxu0 0.0
    %4027 = vmatprep.subr.mxu0 0.0
    %4028 = vmatpush1.msra.mxu0 0.0
    %4029 = vmatprep.subr.mxu0 0.0
    %4030 = vmatpush1.msra.mxu0 0.0
    %4031 = vmatprep.subr.mxu0 0.0
    %4032 = vmatpush1.msra.mxu0 0.0
    %4033 = vmatprep.subr.mxu0 0.0
    %4034 = vmatpush1.msra.mxu0 0.0
    %4035 = vmatprep.subr.mxu0 0.0
    %4036 = vmatpush1.msra.mxu0 0.0
    %4037 = vmatprep.subr.mxu0 0.0
    %4038 = vmatpush1.msra.mxu0 0.0
    %4039 = vmatprep.subr.mxu0 0.0
    %4040 = vmatpush1.msra.mxu0 0.0
    %4041 = vmatprep.subr.mxu0 0.0
    %4042 = vmatpush1.msra.mxu0 0.0
    %4043 = vmatprep.subr.mxu0 0.0
    %4044 = vmatpush1.msra.mxu0 0.0
    %4045 = vmatprep.subr.mxu0 0.0
    %4046 = vmatpush1.msra.mxu0 0.0
    %4047 = vmatprep.subr.mxu0 0.0
    %4048 = vmatpush1.msra.mxu0 0.0
    %4049 = vmatprep.subr.mxu0 0.0
    %4050 = vmatpush1.msra.mxu0 0.0
    %4051 = vmatprep.subr.mxu0 0.0
    %4052 = vmatpush1.msra.mxu0 0.0
    %4053 = vmatprep.subr.mxu0 0.0
    %4054 = vmatpush1.msra.mxu0 0.0
    %4055 = vmatprep.subr.mxu0 0.0
    %4056 = vmatpush1.msra.mxu0 0.0
    %4057 = vmatprep.subr.mxu0 0.0
    %4058 = vmatpush1.msra.mxu0 0.0
    %4059 = vmatprep.subr.mxu0 0.0
    %4060 = vmatpush1.msra.mxu0 0.0
    %4061 = vmatprep.subr.mxu0 0.0
    %4062 = vmatpush1.msra.mxu0 0.0
    %4063 = vmatprep.subr.mxu0 0.0
    %4064 = vmatpush1.msra.mxu0 0.0
    %4065 = vmatprep.subr.mxu0 0.0
    %4066 = vmatpush1.msra.mxu0 0.0
    %4067 = vmatprep.subr.mxu0 0.0
    %4068 = vmatpush1.msra.mxu0 0.0
    %4069 = vmatprep.subr.mxu0 0.0
    %4070 = vmatpush1.msra.mxu0 0.0
    %4071 = vmatprep.subr.mxu0 0.0
    %4072 = vmatpush1.msra.mxu0 0.0
    %4073 = vmatprep.subr.mxu0 0.0
    %4074 = vmatpush1.msra.mxu0 0.0
    %4075 = vmatprep.subr.mxu0 0.0
    %4076 = vmatpush1.msra.mxu0 0.0
    %4077 = vmatprep.subr.mxu0 0.0
    %4078 = vmatpush1.msra.mxu0 0.0
    %4079 = vmatprep.subr.mxu0 0.0
    %4080 = vmatpush1.msra.mxu0 0.0
    %4081 = vmatprep.mubr.f32.mxu0 0.0
    %4082 = vmatmul.mubr.f32.gmra.mrb[0].mxu0 %v468
    %v4083 = vpop.f32.mrb[0].mxu0
    %v4084 = vadd.f32 0.0, %v4083
    %v4085 = vpop.f32.mrb[0].mxu0
    %4086 = vmatprep.mubr.f32.mxu0 0.0
    %4087 = vmatmul.mubr.f32.gmra.mrb[0].mxu0 %v471
    %v4088 = vpop.f32.mrb[0].mxu0
    %v4089 = vadd.f32 0.0, %v4088
    %v4090 = vpop.f32.mrb[0].mxu0
    %4091 = vdwg.mxu0
    %v4092 = vadd.f32 %v4012, %v4084
    %v4093 = vadd.f32 %v4013, %v4089
    %v4094 = vxor.u32 %v4092, 2147483648
    %v4095 = vxor.u32 %v4093, 2147483648
    %v4096 = vmul.f32 %v4094, 1.442695
    %v4097 = vpow.pop %v4096
    %v4098 = vmul.f32 %v4095, 1.442695
    %v4099 = vpow.pop %v4098
    %v4100 = vadd.f32 %v4097, 1.0
    %v4101 = vadd.f32 %v4099, 1.0
    %v4102 = vrcp.pop %v4100
    %v4103 = vmul.f32 1.0, %v4102
    %v4104 = vrcp.pop %v4101
    %v4105 = vmul.f32 1.0, %v4104
    %v4106 = vld [vmem:[%s459] sm:$0xff]
    %v4107 = vld [vmem:[%s459 + $0x8] sm:$0x3]
    %v4108 = vmul.f32 %v4103, %v4010
    %v4109 = vmul.f32 %v4105, %v4011
    %v4111 = vsel %vm473, %v4109, 0
    %4113 = vmatprep.subr.mxu0 0.0
    %4114 = vmatpush1.msra.mxu0 %v4108
    %4115 = vmatprep.subr.mxu0 0.0
    %4116 = vmatpush1.msra.mxu0 %v4111
    %4117 = vmatprep.subr.mxu0 0.0
    %4118 = vmatpush1.msra.mxu0 0.0
    %4119 = vmatprep.subr.mxu0 0.0
    %4120 = vmatpush1.msra.mxu0 0.0
    %4121 = vmatprep.subr.mxu0 0.0
    %4122 = vmatpush1.msra.mxu0 0.0
    %4123 = vmatprep.subr.mxu0 0.0
    %4124 = vmatpush1.msra.mxu0 0.0
    %4125 = vmatprep.subr.mxu0 0.0
    %4126 = vmatpush1.msra.mxu0 0.0
    %4127 = vmatprep.subr.mxu0 0.0
    %4128 = vmatpush1.msra.mxu0 0.0
    %4129 = vmatprep.subr.mxu0 0.0
    %4130 = vmatpush1.msra.mxu0 0.0
    %4131 = vmatprep.subr.mxu0 0.0
    %4132 = vmatpush1.msra.mxu0 0.0
    %4133 = vmatprep.subr.mxu0 0.0
    %4134 = vmatpush1.msra.mxu0 0.0
    %4135 = vmatprep.subr.mxu0 0.0
    %4136 = vmatpush1.msra.mxu0 0.0
    %4137 = vmatprep.subr.mxu0 0.0
    %4138 = vmatpush1.msra.mxu0 0.0
    %4139 = vmatprep.subr.mxu0 0.0
    %4140 = vmatpush1.msra.mxu0 0.0
    %4141 = vmatprep.subr.mxu0 0.0
    %4142 = vmatpush1.msra.mxu0 0.0
    %4143 = vmatprep.subr.mxu0 0.0
    %4144 = vmatpush1.msra.mxu0 0.0
    %4145 = vmatprep.subr.mxu0 0.0
    %4146 = vmatpush1.msra.mxu0 0.0
    %4147 = vmatprep.subr.mxu0 0.0
    %4148 = vmatpush1.msra.mxu0 0.0
    %4149 = vmatprep.subr.mxu0 0.0
    %4150 = vmatpush1.msra.mxu0 0.0
    %4151 = vmatprep.subr.mxu0 0.0
    %4152 = vmatpush1.msra.mxu0 0.0
    %4153 = vmatprep.subr.mxu0 0.0
    %4154 = vmatpush1.msra.mxu0 0.0
    %4155 = vmatprep.subr.mxu0 0.0
    %4156 = vmatpush1.msra.mxu0 0.0
    %4157 = vmatprep.subr.mxu0 0.0
    %4158 = vmatpush1.msra.mxu0 0.0
    %4159 = vmatprep.subr.mxu0 0.0
    %4160 = vmatpush1.msra.mxu0 0.0
    %4161 = vmatprep.subr.mxu0 0.0
    %4162 = vmatpush1.msra.mxu0 0.0
    %4163 = vmatprep.subr.mxu0 0.0
    %4164 = vmatpush1.msra.mxu0 0.0
    %4165 = vmatprep.subr.mxu0 0.0
    %4166 = vmatpush1.msra.mxu0 0.0
    %4167 = vmatprep.subr.mxu0 0.0
    %4168 = vmatpush1.msra.mxu0 0.0
    %4169 = vmatprep.subr.mxu0 0.0
    %4170 = vmatpush1.msra.mxu0 0.0
    %4171 = vmatprep.subr.mxu0 0.0
    %4172 = vmatpush1.msra.mxu0 0.0
    %4173 = vmatprep.subr.mxu0 0.0
    %4174 = vmatpush1.msra.mxu0 0.0
    %4175 = vmatprep.subr.mxu0 0.0
    %4176 = vmatpush1.msra.mxu0 0.0
    %4177 = vmatprep.mubr.f32.mxu0 0.0
    %4178 = vmatmul.mubr.f32.gmra.mrb[0].mxu0 %v571
    %v4179 = vpop.f32.mrb[0].mxu0
    %v4180 = vadd.f32 0.0, %v4179
    %v4181 = vpop.f32.mrb[0].mxu0
    %4182 = vmatprep.mubr.f32.mxu0 0.0
    %4183 = vmatmul.mubr.f32.gmra.mrb[0].mxu0 %v574
    %v4184 = vpop.f32.mrb[0].mxu0
    %v4185 = vadd.f32 0.0, %v4184
    %v4186 = vpop.f32.mrb[0].mxu0
    %4187 = vdwg.mxu0
    %v4188 = vadd.f32 %v4106, %v4180
    %v4189 = vadd.f32 %v4107, %v4185
    %v4190 = vtanh.pop %v4188
    %v4191 = vtanh.pop %v4189
    %v4192 = vsub.f32 %v4190, %v4010
    %v4193 = vsub.f32 %v4191, %v4011
    %v4194 = vmul.f32 %v4103, %v4192
    %v4195 = vmul.f32 %v4105, %v4193
    %v4196 = vadd.f32 %v4010, %v4194
    %v4197 = vadd.f32 %v4011, %v4195
    %v4198 = vld [vmem:[%s6] sm:$0xff]
    %v4199 = vld [vmem:[%s6 + $0x8] sm:$0x3]
    %4201 = vset.pattern.permute.xlu0 0
    %4202 = vperm.xlu0 %4201, %v4198
    %v4203 = vpop.permute.xlu0 %4202
    %4206 = vset.pattern.permute.xlu0 0
    %4207 = vperm.xlu0 %4206, %v4199
    %v4208 = vpop.permute.xlu0 %4207
    %v4210 = vmul.f32 %v4196, %v4203
    %v4211 = vmul.f32 %v4197, %v4208
    %v4212 = vsel %vm473, %v4211, 0.0
    %v4213 = vadd.f32 %v4210, %v4212
    %v4214 = vrot.slane %v4213, 4
    %v4215 = vadd.f32 %v4213, %v4214
    %v4216 = vrot.slane %v4215, 2
    %v4217 = vadd.f32 %v4215, %v4216
    %v4218 = vrot.slane %v4217, 1
    %v4219 = vadd.f32 %v4217, %v4218
    %v4220 = vld [vmem:[#allocation4] sm:$0x1]
    %4222 = vset.pattern.permute.xlu0 0
    %4223 = vperm.xlu0 %4222, %v4220
    %v4224 = vpop.permute.xlu0 %4223
    %v4226 = vlaneseq
    %v4227 = vshrl.u32 %v4226, 7
    %v4228 = vsub.s32 0, %v4227
    %v4229 = vrot.slane %v4224, %v4228
    %v4230 = vadd.f32 %v4219, %v4229
    %4231 = vst [vmem:[#allocation5] sm:$0x1] %v4230
    // Predicated region
    $region34: #{tpu_custom_call.1} parent=1 // pred_check
      _
    $region35: #{tpu_custom_call.1} parent=1 // pred_check_branch
      %4233 = sbr.rel (0) target = $region37
    $region36: #{tpu_custom_call.1} parent=1 // pred_region
      %s4235 = ssub.s32 16, 16
      %4236 = vsyncadd [#allocation6], %s4235
      %s4238 = sshll.u32 [#allocation5], 4
      %s4239 = int_to_ptr.vmem [resolvable:$true] %s4238
      %4241 = dma.vmem_to_hbm [thread:$0]  %s4239, 16, %s8, [#allocation6]
    $region37: #{tpu_custom_call.1} parent=1 // pred_fallthru
      _
    // Predicated region
    $region38: #{tpu_custom_call.1} parent=1 // pred_check
      _
    $region39: #{tpu_custom_call.1} parent=1 // pred_check_branch
      %4243 = sbr.rel (0) target = $region41
    $region40: #{tpu_custom_call.1} parent=1 // pred_region
      %4244 = dma.done [#allocation6], 16
    $region41: #{tpu_custom_call.1} parent=1 // pred_fallthru
      _
    %4245 = vsyncpa [#allocation6], 1

</llo_original>
